<compile_context>
chip_gen: v5e
topology: v5e:2x2
jax: 0.10.0
libtpu: 0.0.40
codegen_flags: <defaults>
</compile_context>

<pallas_src>
import math

import jax
import jax.numpy as jnp
import numpy as np
from jax import lax
from jax.experimental import pallas as pl
from jax.experimental.pallas import tpu as pltpu


def gcn_bert_kernel(pool_s_ref, tok_ref, pool_t_ref, tag_ref, adj_ref, w_ref,
                    out_ref, sent_sc, x1t_sc):
    step = pl.program_id(0)

    @pl.when(step == 0)
    def _():
        # Masked mean-pools as MXU matmuls (1/count folded into the pool rows).
        sent = jnp.dot(pool_s_ref[...], tok_ref[...],
                       preferred_element_type=jnp.float32)           # (B, H)
        tag = jnp.dot(pool_t_ref[...], tag_ref[...],
                      preferred_element_type=jnp.float32)            # (C, H)

        # gc1: adj @ (tag @ W1), bf16 operands, f32 accumulation.
        s1 = jnp.dot(tag.astype(jnp.bfloat16), w_ref[0],             # w_ref = w1
                     preferred_element_type=jnp.float32)             # (C, H)
        x1 = jnp.dot(adj_ref[...], s1,
                     preferred_element_type=jnp.float32)             # (C, H)
        # LeakyReLU(0.2) in f32.
        x1 = jnp.where(x1 > 0, x1, 0.2 * x1)

        sent_sc[...] = sent
        # Transpose x1 here (hidden under the w2 prefetch DMA) so step 1 only
        # has standard, non-transposed long contractions.
        x1t_sc[...] = x1.T                                           # (H, C)

    @pl.when(step == 1)
    def _():
        # Re-associated layer 2 + projection:  out = sent @ w2^T @ x1^T @ adj^T
        p = jnp.dot(sent_sc[...].astype(jnp.bfloat16), w_ref[0],     # w_ref = w2^T
                    preferred_element_type=jnp.float32)              # (B, H)
        q = jnp.dot(p, x1t_sc[...],
                    preferred_element_type=jnp.float32)              # (B, C)
        # q @ adj^T -- tiny (C x C) transposed contraction.
        out_ref[...] = lax.dot_general(
            q, adj_ref[...], (((1,), (1,)), ((), ())),
            preferred_element_type=jnp.float32)                      # (B, C)


def _pool_matrix(mask):
    """(N, L) mask -> (N, N*L) block-diagonal mean-pooling matrix."""
    n, l = mask.shape
    norm = mask / jnp.sum(mask, axis=1, keepdims=True)        # (N, L)
    eye = jnp.eye(n, dtype=mask.dtype)                        # (N, N)
    return (eye[:, :, None] * norm[:, None, :]).reshape(n, n * l)


def _full(shape):
    n = len(shape)
    return pl.BlockSpec(shape, lambda i, n=n: (0,) * n)


def gcn_bert_forward(token_feat, attention_mask, tag_tok_emb, tag_mask,
                     adj, w1, w2):
    B, L, H = token_feat.shape
    C, Lt, _ = tag_tok_emb.shape

    pool_s = _pool_matrix(attention_mask.astype(jnp.float32))   # (B, B*L)
    pool_t = _pool_matrix(tag_mask.astype(jnp.float32))         # (C, C*Lt)
    tok_flat = token_feat.reshape(B * L, H)
    tag_flat = tag_tok_emb.reshape(C * Lt, H)

    # bf16 weights (HBM DMA is the bottleneck); w2 pre-transposed for the
    # re-associated layer-2 contraction against the (B, H) sentence features.
    w_stack = jnp.stack([w1, w2.T]).astype(jnp.bfloat16)        # (2, H, H)

    grid_spec = pltpu.PrefetchScalarGridSpec(
        num_scalar_prefetch=0,
        grid=(2,),
        in_specs=[
            _full((B, B * L)),
            _full((B * L, H)),
            _full((C, C * Lt)),
            _full((C * Lt, H)),
            _full((C, C)),
            # step i consumes w_stack[i]; Pallas prefetches w2^T during step 0.
            pl.BlockSpec((1, H, H), lambda i: (i, 0, 0)),
        ],
        out_specs=_full((B, C)),
        scratch_shapes=[
            pltpu.VMEM((B, H), jnp.float32),   # sentence-feature carry
            pltpu.VMEM((H, C), jnp.float32),   # x1^T carry
        ],
    )

    # TODO(synk): for real BERT shapes (e.g. B=32, L=512) tile over B/L with a
    # 'parallel' grid axis and set vmem_limit_bytes; at these toy sizes the
    # full-array blocks fit the default VMEM budget on all generations.
    return pl.pallas_call(
        gcn_bert_kernel,
        out_shape=jax.ShapeDtypeStruct((B, C), jnp.float32),
        grid_spec=grid_spec,
        compiler_params=pltpu.CompilerParams(
            dimension_semantics=("arbitrary",)),   # sequential carry via scratch
    )(pool_s, tok_flat, pool_t, tag_flat, adj, w_stack)


def ref_forward(token_feat, attention_mask, tag_tok_emb, tag_mask, adj, w1, w2):
    sent = (token_feat * attention_mask[..., None]).sum(1) / \
        attention_mask.sum(1, keepdims=True)
    tag = (tag_tok_emb * tag_mask[..., None]).sum(1) / \
        tag_mask.sum(1, keepdims=True)
    x = adj @ (tag @ w1)
    x = jnp.where(x > 0, x, 0.2 * x)
    x = adj @ (x @ w2)
    return sent @ x.T


if __name__ == "__main__":
    key = jax.random.PRNGKey(0)
    k_tok, k_emb, k_tag, k_adj, k_w1, k_w2 = jax.random.split(key, 6)

    B, L = 2, 16          # batch, sequence length
    H = 768               # hidden size (fixed by GraphConvolution(768, 768))
    C = 8                 # num_classes
    Lt = 8                # tag token length
    VOCAB = 100

    # "BERT" outputs / embeddings (synthetic, deterministic)
    token_feat = jax.random.normal(k_tok, (B, L, H), dtype=jnp.float32)
    attention_mask = jnp.concatenate(
        [jnp.ones((B, L - 4), jnp.float32), jnp.zeros((B, 4), jnp.float32)],
        axis=1)

    emb_table = jax.random.normal(k_emb, (VOCAB, H), dtype=jnp.float32) * 0.02
    encoded_tag = jax.random.randint(k_tag, (C, Lt), 0, VOCAB)
    tag_tok_emb = emb_table[encoded_tag]                      # JAX glue gather
    tag_mask = jnp.concatenate(
        [jnp.ones((C, Lt - 2), jnp.float32), jnp.zeros((C, 2), jnp.float32)],
        axis=1)

    # synthetic gen_A / gen_adj: binary graph + self loops, D^-1/2 normalization
    a = (jax.random.uniform(k_adj, (C, C)) > 0.6).astype(jnp.float32)
    a = jnp.maximum(a, jnp.eye(C, dtype=jnp.float32))
    d = jnp.power(a.sum(axis=1), -0.5)
    adj = ((a * d[None, :]).T) * d[None, :]                   # (C, C)

    # GraphConvolution weights: uniform(-stdv, stdv), stdv = 1/sqrt(out_features)
    stdv = 1.0 / math.sqrt(H)
    w1 = jax.random.uniform(k_w1, (H, H), jnp.float32, -stdv, stdv)
    w2 = jax.random.uniform(k_w2, (H, H), jnp.float32, -stdv, stdv)

    out = gcn_bert_forward(token_feat, attention_mask, tag_tok_emb, tag_mask,
                           adj, w1, w2)
    out = jax.block_until_ready(out)

    ref = ref_forward(token_feat, attention_mask, tag_tok_emb, tag_mask,
                      adj, w1, w2)
    # bf16 weights/activation casts in the kernel -> loosened tolerance
    # (accumulation stays f32).
    np.testing.assert_allclose(np.asarray(out), np.asarray(ref),
                               rtol=2e-2, atol=5e-3)

    print("KERNEL_OK")
</pallas_src>

<mosaic_0001>
module attributes {stable_mosaic.version = 11 : i64} {
  func.func @gcn_bert_kernel(%arg0: i32, %arg1: memref<2x32xf32, #tpu.memory_space<vmem>>, %arg2: memref<32x768xf32, #tpu.memory_space<vmem>>, %arg3: memref<8x64xf32, #tpu.memory_space<vmem>>, %arg4: memref<64x768xf32, #tpu.memory_space<vmem>>, %arg5: memref<8x8xf32, #tpu.memory_space<vmem>>, %arg6: memref<1x768x768xbf16, #tpu.memory_space<vmem>>, %arg7: memref<2x8xf32, #tpu.memory_space<vmem>>, %arg8: memref<2x768xf32, #tpu.memory_space<vmem>>, %arg9: memref<768x8xf32, #tpu.memory_space<vmem>>) attributes {dimension_semantics = [#tpu.dimension_semantics<arbitrary>], iteration_bounds = array<i64: 2>, scalar_prefetch = 0 : i64, scratch_operands = 2 : i64, tpu.core_type = #tpu.core_type<tc>, window_params = [{pipeline_mode = #tpu.pipeline_mode<synchronous>, transform_indices = @transform_0, window_bounds = array<i64: 2, 32>}, {pipeline_mode = #tpu.pipeline_mode<synchronous>, transform_indices = @transform_1, window_bounds = array<i64: 32, 768>}, {pipeline_mode = #tpu.pipeline_mode<synchronous>, transform_indices = @transform_2, window_bounds = array<i64: 8, 64>}, {pipeline_mode = #tpu.pipeline_mode<synchronous>, transform_indices = @transform_3, window_bounds = array<i64: 64, 768>}, {pipeline_mode = #tpu.pipeline_mode<synchronous>, transform_indices = @transform_4, window_bounds = array<i64: 8, 8>}, {transform_indices = @transform_5, window_bounds = array<i64: 1, 768, 768>}, {pipeline_mode = #tpu.pipeline_mode<synchronous>, transform_indices = @transform_6, window_bounds = array<i64: 2, 8>}]} {
    %c0_i32 = arith.constant 0 : i32
    %0 = arith.cmpi eq, %arg0, %c0_i32 : i32
    %1 = arith.extui %0 : i1 to i32
    %c0_i32_0 = arith.constant 0 : i32
    %2 = arith.cmpi ne, %1, %c0_i32_0 : i32
    scf.if %2 {
      %c0 = arith.constant 0 : index
      %c0_2 = arith.constant 0 : index
      %6 = vector.load %arg1[%c0, %c0_2] : memref<2x32xf32, #tpu.memory_space<vmem>>, vector<2x32xf32>
      %c0_3 = arith.constant 0 : index
      %c0_4 = arith.constant 0 : index
      %7 = vector.load %arg2[%c0_3, %c0_4] : memref<32x768xf32, #tpu.memory_space<vmem>>, vector<32x768xf32>
      %cst = arith.constant dense<0.000000e+00> : vector<2x768xf32>
      %8 = tpu.matmul %6, %7, %cst {dimension_numbers = #tpu.dot_dimension_numbers<[1], [0], [0], [1], [0, 0, 1, 1], [], []>} : vector<2x32xf32>, vector<32x768xf32>, vector<2x768xf32> -> vector<2x768xf32>
      %c0_5 = arith.constant 0 : index
      %c0_6 = arith.constant 0 : index
      %9 = vector.load %arg3[%c0_5, %c0_6] : memref<8x64xf32, #tpu.memory_space<vmem>>, vector<8x64xf32>
      %c0_7 = arith.constant 0 : index
      %c0_8 = arith.constant 0 : index
      %10 = vector.load %arg4[%c0_7, %c0_8] : memref<64x768xf32, #tpu.memory_space<vmem>>, vector<64x768xf32>
      %cst_9 = arith.constant dense<0.000000e+00> : vector<8x768xf32>
      %11 = tpu.matmul %9, %10, %cst_9 {dimension_numbers = #tpu.dot_dimension_numbers<[1], [0], [0], [1], [0, 0, 1, 1], [], []>} : vector<8x64xf32>, vector<64x768xf32>, vector<8x768xf32> -> vector<8x768xf32>
      %12 = arith.truncf %11 : vector<8x768xf32> to vector<8x768xbf16>
      %c0_10 = arith.constant 0 : index
      %c0_11 = arith.constant 0 : index
      %c0_12 = arith.constant 0 : index
      %13 = vector.load %arg6[%c0_10, %c0_11, %c0_12] : memref<1x768x768xbf16, #tpu.memory_space<vmem>>, vector<1x768x768xbf16>
      %14 = vector.shape_cast %13 : vector<1x768x768xbf16> to vector<768x768xbf16>
      %cst_13 = arith.constant dense<0.000000e+00> : vector<8x768xf32>
      %15 = tpu.matmul %12, %14, %cst_13 {dimension_numbers = #tpu.dot_dimension_numbers<[1], [0], [0], [1], [0, 0, 1, 1], [], []>} : vector<8x768xbf16>, vector<768x768xbf16>, vector<8x768xf32> -> vector<8x768xf32>
      %c0_14 = arith.constant 0 : index
      %c0_15 = arith.constant 0 : index
      %16 = vector.load %arg5[%c0_14, %c0_15] : memref<8x8xf32, #tpu.memory_space<vmem>>, vector<8x8xf32>
      %cst_16 = arith.constant dense<0.000000e+00> : vector<8x768xf32>
      %17 = tpu.matmul %16, %15, %cst_16 {dimension_numbers = #tpu.dot_dimension_numbers<[1], [0], [0], [1], [0, 0, 1, 1], [], []>} : vector<8x8xf32>, vector<8x768xf32>, vector<8x768xf32> -> vector<8x768xf32>
      %cst_17 = arith.constant 0.000000e+00 : f32
      %18 = vector.broadcast %cst_17 : f32 to vector<8x768xf32>
      %19 = arith.cmpf ogt, %17, %18 : vector<8x768xf32>
      %cst_18 = arith.constant 2.000000e-01 : f32
      %20 = vector.broadcast %cst_18 : f32 to vector<8x768xf32>
      %21 = arith.mulf %20, %17 : vector<8x768xf32>
      %22 = arith.select %19, %17, %21 : vector<8x768xi1>, vector<8x768xf32>
      %c0_19 = arith.constant 0 : index
      %c0_20 = arith.constant 0 : index
      %23 = vector.load %arg8[%c0_19, %c0_20] : memref<2x768xf32, #tpu.memory_space<vmem>>, vector<2x768xf32>
      tpu.vector_store %arg8[%c0_19, %c0_20], %8 {strides = array<i32>} : memref<2x768xf32, #tpu.memory_space<vmem>>, vector<2x768xf32>,
      %24 = tpu.transpose %22, [1, 0] : vector<8x768xf32> -> vector<768x8xf32>
      %c0_21 = arith.constant 0 : index
      %c0_22 = arith.constant 0 : index
      %25 = vector.load %arg9[%c0_21, %c0_22] : memref<768x8xf32, #tpu.memory_space<vmem>>, vector<768x8xf32>
      tpu.vector_store %arg9[%c0_21, %c0_22], %24 {strides = array<i32>} : memref<768x8xf32, #tpu.memory_space<vmem>>, vector<768x8xf32>,
    } else {
    }
    %c1_i32 = arith.constant 1 : i32
    %3 = arith.cmpi eq, %arg0, %c1_i32 : i32
    %4 = arith.extui %3 : i1 to i32
    %c0_i32_1 = arith.constant 0 : i32
    %5 = arith.cmpi ne, %4, %c0_i32_1 : i32
    scf.if %5 {
      %c0 = arith.constant 0 : index
      %c0_2 = arith.constant 0 : index
      %6 = vector.load %arg8[%c0, %c0_2] : memref<2x768xf32, #tpu.memory_space<vmem>>, vector<2x768xf32>
      %7 = arith.truncf %6 : vector<2x768xf32> to vector<2x768xbf16>
      %c0_3 = arith.constant 0 : index
      %c0_4 = arith.constant 0 : index
      %c0_5 = arith.constant 0 : index
      %8 = vector.load %arg6[%c0_3, %c0_4, %c0_5] : memref<1x768x768xbf16, #tpu.memory_space<vmem>>, vector<1x768x768xbf16>
      %9 = vector.shape_cast %8 : vector<1x768x768xbf16> to vector<768x768xbf16>
      %cst = arith.constant dense<0.000000e+00> : vector<2x768xf32>
      %10 = tpu.matmul %7, %9, %cst {dimension_numbers = #tpu.dot_dimension_numbers<[1], [0], [0], [1], [0, 0, 1, 1], [], []>} : vector<2x768xbf16>, vector<768x768xbf16>, vector<2x768xf32> -> vector<2x768xf32>
      %c0_6 = arith.constant 0 : index
      %c0_7 = arith.constant 0 : index
      %11 = vector.load %arg9[%c0_6, %c0_7] : memref<768x8xf32, #tpu.memory_space<vmem>>, vector<768x8xf32>
      %cst_8 = arith.constant dense<0.000000e+00> : vector<2x8xf32>
      %12 = tpu.matmul %10, %11, %cst_8 {dimension_numbers = #tpu.dot_dimension_numbers<[1], [0], [0], [1], [0, 0, 1, 1], [], []>} : vector<2x768xf32>, vector<768x8xf32>, vector<2x8xf32> -> vector<2x8xf32>
      %c0_9 = arith.constant 0 : index
      %c0_10 = arith.constant 0 : index
      %13 = vector.load %arg5[%c0_9, %c0_10] : memref<8x8xf32, #tpu.memory_space<vmem>>, vector<8x8xf32>
      %cst_11 = arith.constant dense<0.000000e+00> : vector<2x8xf32>
      %14 = tpu.matmul %12, %13, %cst_11 {dimension_numbers = #tpu.dot_dimension_numbers<[1], [1], [0], [0], [0, 0, 1, 0], [], []>} : vector<2x8xf32>, vector<8x8xf32>, vector<2x8xf32> -> vector<2x8xf32>
      %c0_12 = arith.constant 0 : index
      %c0_13 = arith.constant 0 : index
      %15 = vector.load %arg7[%c0_12, %c0_13] : memref<2x8xf32, #tpu.memory_space<vmem>>, vector<2x8xf32>
      tpu.vector_store %arg7[%c0_12, %c0_13], %14 {strides = array<i32>} : memref<2x8xf32, #tpu.memory_space<vmem>>, vector<2x8xf32>,
    } else {
    }
    return
  }
  func.func @transform_0(%arg0: i32) -> (i32, i32) {
    %c0_i32 = arith.constant 0 : i32
    %c0_i32_0 = arith.constant 0 : i32
    %c0_i32_1 = arith.constant 0 : i32
    return %c0_i32, %c0_i32_0 : i32, i32
  }
  func.func @transform_1(%arg0: i32) -> (i32, i32) {
    %c0_i32 = arith.constant 0 : i32
    %c0_i32_0 = arith.constant 0 : i32
    %c0_i32_1 = arith.constant 0 : i32
    return %c0_i32, %c0_i32_0 : i32, i32
  }
  func.func @transform_2(%arg0: i32) -> (i32, i32) {
    %c0_i32 = arith.constant 0 : i32
    %c0_i32_0 = arith.constant 0 : i32
    %c0_i32_1 = arith.constant 0 : i32
    return %c0_i32, %c0_i32_0 : i32, i32
  }
  func.func @transform_3(%arg0: i32) -> (i32, i32) {
    %c0_i32 = arith.constant 0 : i32
    %c0_i32_0 = arith.constant 0 : i32
    %c0_i32_1 = arith.constant 0 : i32
    return %c0_i32, %c0_i32_0 : i32, i32
  }
  func.func @transform_4(%arg0: i32) -> (i32, i32) {
    %c0_i32 = arith.constant 0 : i32
    %c0_i32_0 = arith.constant 0 : i32
    %c0_i32_1 = arith.constant 0 : i32
    return %c0_i32, %c0_i32_0 : i32, i32
  }
  func.func @transform_5(%arg0: i32) -> (i32, i32, i32) {
    %c0_i32 = arith.constant 0 : i32
    %c0_i32_0 = arith.constant 0 : i32
    %c0_i32_1 = arith.constant 0 : i32
    return %arg0, %c0_i32, %c0_i32_0 : i32, i32, i32
  }
  func.func @transform_6(%arg0: i32) -> (i32, i32) {
    %c0_i32 = arith.constant 0 : i32
    %c0_i32_0 = arith.constant 0 : i32
    %c0_i32_1 = arith.constant 0 : i32
    return %c0_i32, %c0_i32_0 : i32, i32
  }
}

</mosaic_0001>

<llo_original>
// kernel: tpu_custom_call.1
$region0: #{tpu_custom_call.1}
  #allocation0 [shape = 'u32[]', space=smem, size = 0x4, offset = 0x4, fixed_abs, tag = 'smem constant byte address 0x4 - core index']
  #allocation1 [shape = 'u32[72,128]{1,0:T(1,128)}', space=vmem, size = 0x9000, scoped, tag = 'internal scratch']
  #allocation2 [shape = 'f32[2,768]{1,0:T(2,128)}', space=vmem, size = 0x1800, scoped, tag = 'scratch operand']
  #allocation3 [shape = 'f32[768,8]{1,0:T(8,128)}', space=vmem, size = 0x60000, scoped, tag = 'scratch operand']
  %s0 = inlined_call_operand.hbm [shape: f32[2,32], index: 0, kind: input, shape index: {}]
  %s1 = inlined_call_operand.hbm [shape: f32[32,768], index: 1, kind: input, shape index: {}]
  %s2 = inlined_call_operand.hbm [shape: f32[8,64], index: 2, kind: input, shape index: {}]
  %s3 = inlined_call_operand.hbm [shape: f32[64,768], index: 3, kind: input, shape index: {}]
  %s4 = inlined_call_operand.hbm [shape: f32[8,8], index: 4, kind: input, shape index: {}]
  %s5 = inlined_call_operand.hbm [shape: bf16[2,768,768], index: 5, kind: input, shape index: {}]
  %s6 = inlined_call_operand.hbm [shape: f32[2,8], index: 6, kind: output, shape index: {}]
  %s7 = sld [smem:[#allocation0]]
  $region89: #{tpu_custom_call.1} parent=0
    _
  %s9 = ssub.s32 1, %s7
  %s10 = scalar_select 0, %s9, %s7
  $region1: #{tpu_custom_call.1} parent=0
    #allocation4 [shape = 'u8[1024]{0}', space=vmem, size = 0x400, scoped, tag = 'input window, operand 0, single buffered']
    #allocation5 [shape = 's32[2]{0}', space=sflag, size = 0x8, scoped, tag = 'scoped memory for tpu_custom_call.1']
    #allocation6 [shape = 's32[2]{0}', space=sflag, size = 0x8, scoped, tag = 'scoped memory for tpu_custom_call.1']
    #allocation7 [shape = 'u8[98304]{0}', space=vmem, size = 0x18000, scoped, tag = 'input window, operand 1, single buffered']
    #allocation8 [shape = 's32[1]{0}', space=sflag, size = 0x4, scoped, tag = 'scoped memory for tpu_custom_call.1']
    #allocation9 [shape = 'u8[4096]{0}', space=vmem, size = 0x1000, scoped, tag = 'input window, operand 2, single buffered']
    #allocation10 [shape = 'u8[196608]{0}', space=vmem, size = 0x30000, scoped, tag = 'input window, operand 3, single buffered']
    #allocation11 [shape = 's32[1]{0}', space=sflag, size = 0x4, scoped, tag = 'scoped memory for tpu_custom_call.1']
    #allocation12 [shape = 'u8[4096]{0}', space=vmem, size = 0x1000, scoped, tag = 'input window, operand 4, single buffered']
    #allocation13 [shape = 'u8[2359296]{0}', space=vmem, size = 0x240000, scoped, tag = 'input window, operand 5']
    #allocation14 [shape = 's32[2]{0}', space=sflag, size = 0x8, scoped, tag = 'scoped memory for tpu_custom_call.1']
    #allocation15 [shape = 'u8[1024]{0}', space=vmem, size = 0x400, scoped, tag = 'output window, operand 0, single buffered']
    %11 = vsyncpa [#allocation5], 0
    %12 = vsyncpa [#allocation8], 0
    %13 = vsyncpa [#allocation11], 0
    %14 = vsyncpa [#allocation14], 0
    %s15 = scalar_lea.sflag [#allocation14], 1
    %16 = vsyncpa %s15, 0
    %17 = vsyncpa [#allocation6], 0
    loop: start=0, step=1, limit=4
    $region2: #{tpu_custom_call.1} parent=1 // loop_pre_header
      _
    $region3: #{tpu_custom_call.1} parent=1 // loop_header
      %s19 = sphi 0, %s23
      %p20 = scmp.ge.s32.totalorder %s19, 4
      %s27 = sphi 0, %s27
      %s29 = sphi 0, %s27
      %s30 = sphi 0, %s29
      %s44 = sphi 0, %s30
      %s48 = sphi 0, %s48
      %s50 = sphi 0, %s48
      %s51 = sphi 0, %s50
      %s65 = sphi 0, %s51
      %s69 = sphi 0, %s69
      %s71 = sphi 0, %s69
      %s72 = sphi 0, %s71
      %s86 = sphi 0, %s72
      %s90 = sphi 0, %s90
      %s92 = sphi 0, %s90
      %s93 = sphi 0, %s92
      %s107 = sphi 0, %s93
      %s111 = sphi 0, %s111
      %s113 = sphi 0, %s111
      %s114 = sphi 0, %s113
      %s128 = sphi 0, %s114
      %s134 = sphi 0, %s136
      %s137 = sphi 0, %s134
      %s138 = sphi 0, %s137
      %s154 = sphi 0, %s138
      %s158 = sphi 0, %s158
      %s160 = sphi 0, %s158
      %s161 = sphi 0, %s160
      %s175 = sphi 0, %s161
    $region4: #{tpu_custom_call.1} parent=1 // loop_header_branch
      %22 = sbr.rel (%p20) target = $region8
    $region5: #{tpu_custom_call.1} parent=1 // loop_body
      %s24 = ssub.s32 %s19, 1
      %s25 = ssub.s32 %s19, 2
      %s26 = sadd.s32 %s19, 1
      %s28 = sadd.s32 %s27, 1
      %p31 = scmp.eq.s32.totalorder %s19, 1
      %p32 = scmp.ne.s32.totalorder %s27, %s29
      %p33 = scmp.eq.s32.totalorder %s19, 0
      %p34 = por %p32, %p33
      %p35 = scmp.ne.s32.totalorder %s27, %s29
      %p36 = scmp.eq.s32.totalorder %s24, 1
      %p37 = por %p35, %p36
      %p38 = scmp.ne.s32.totalorder %s29, %s30
      %p39 = scmp.eq.s32.totalorder %s24, 0
      %p40 = por %p38, %p39
      %p41 = scmp.ne.s32.totalorder %s29, %s30
      %p42 = scmp.eq.s32.totalorder %s25, 1
      %p43 = por %p41, %p42
      %p45 = scmp.ne.s32.totalorder %s30, %s44
      %p46 = scmp.eq.s32.totalorder %s25, 0
      %p47 = por %p45, %p46
      %s49 = sadd.s32 %s48, 1
      %p52 = scmp.eq.s32.totalorder %s19, 1
      %p53 = scmp.ne.s32.totalorder %s48, %s50
      %p54 = scmp.eq.s32.totalorder %s19, 0
      %p55 = por %p53, %p54
      %p56 = scmp.ne.s32.totalorder %s48, %s50
      %p57 = scmp.eq.s32.totalorder %s24, 1
      %p58 = por %p56, %p57
      %p59 = scmp.ne.s32.totalorder %s50, %s51
      %p60 = scmp.eq.s32.totalorder %s24, 0
      %p61 = por %p59, %p60
      %p62 = scmp.ne.s32.totalorder %s50, %s51
      %p63 = scmp.eq.s32.totalorder %s25, 1
      %p64 = por %p62, %p63
      %p66 = scmp.ne.s32.totalorder %s51, %s65
      %p67 = scmp.eq.s32.totalorder %s25, 0
      %p68 = por %p66, %p67
      %s70 = sadd.s32 %s69, 1
      %p73 = scmp.eq.s32.totalorder %s19, 1
      %p74 = scmp.ne.s32.totalorder %s69, %s71
      %p75 = scmp.eq.s32.totalorder %s19, 0
      %p76 = por %p74, %p75
      %p77 = scmp.ne.s32.totalorder %s69, %s71
      %p78 = scmp.eq.s32.totalorder %s24, 1
      %p79 = por %p77, %p78
      %p80 = scmp.ne.s32.totalorder %s71, %s72
      %p81 = scmp.eq.s32.totalorder %s24, 0
      %p82 = por %p80, %p81
      %p83 = scmp.ne.s32.totalorder %s71, %s72
      %p84 = scmp.eq.s32.totalorder %s25, 1
      %p85 = por %p83, %p84
      %p87 = scmp.ne.s32.totalorder %s72, %s86
      %p88 = scmp.eq.s32.totalorder %s25, 0
      %p89 = por %p87, %p88
      %s91 = sadd.s32 %s90, 1
      %p94 = scmp.eq.s32.totalorder %s19, 1
      %p95 = scmp.ne.s32.totalorder %s90, %s92
      %p96 = scmp.eq.s32.totalorder %s19, 0
      %p97 = por %p95, %p96
      %p98 = scmp.ne.s32.totalorder %s90, %s92
      %p99 = scmp.eq.s32.totalorder %s24, 1
      %p100 = por %p98, %p99
      %p101 = scmp.ne.s32.totalorder %s92, %s93
      %p102 = scmp.eq.s32.totalorder %s24, 0
      %p103 = por %p101, %p102
      %p104 = scmp.ne.s32.totalorder %s92, %s93
      %p105 = scmp.eq.s32.totalorder %s25, 1
      %p106 = por %p104, %p105
      %p108 = scmp.ne.s32.totalorder %s93, %s107
      %p109 = scmp.eq.s32.totalorder %s25, 0
      %p110 = por %p108, %p109
      %s112 = sadd.s32 %s111, 1
      %p115 = scmp.eq.s32.totalorder %s19, 1
      %p116 = scmp.ne.s32.totalorder %s111, %s113
      %p117 = scmp.eq.s32.totalorder %s19, 0
      %p118 = por %p116, %p117
      %p119 = scmp.ne.s32.totalorder %s111, %s113
      %p120 = scmp.eq.s32.totalorder %s24, 1
      %p121 = por %p119, %p120
      %p122 = scmp.ne.s32.totalorder %s113, %s114
      %p123 = scmp.eq.s32.totalorder %s24, 0
      %p124 = por %p122, %p123
      %p125 = scmp.ne.s32.totalorder %s113, %s114
      %p126 = scmp.eq.s32.totalorder %s25, 1
      %p127 = por %p125, %p126
      %p129 = scmp.ne.s32.totalorder %s114, %s128
      %p130 = scmp.eq.s32.totalorder %s25, 0
      %p131 = por %p129, %p130
      %s132 = ssub.s32 %s19, %s26
      %p133 = scmp.eq.s32.totalorder %s132, 0
      %s135 = sadd.s32 %s134, 1
      %s136 = scalar_select %p133, %s134, %s135
      %p139 = pneg %p133
      %p140 = scmp.eq.s32.totalorder %s19, 1
      %p141 = por %p139, %p140
      %p142 = scmp.ne.s32.totalorder %s134, %s137
      %p143 = scmp.eq.s32.totalorder %s19, 0
      %p144 = por %p142, %p143
      %p145 = scmp.ne.s32.totalorder %s134, %s137
      %p146 = scmp.eq.s32.totalorder %s24, 1
      %p147 = por %p145, %p146
      %p148 = scmp.ne.s32.totalorder %s137, %s138
      %p149 = scmp.eq.s32.totalorder %s24, 0
      %p150 = por %p148, %p149
      %p151 = scmp.ne.s32.totalorder %s137, %s138
      %p152 = scmp.eq.s32.totalorder %s25, 1
      %p153 = por %p151, %p152
      %p155 = scmp.ne.s32.totalorder %s138, %s154
      %p156 = scmp.eq.s32.totalorder %s25, 0
      %p157 = por %p155, %p156
      %s159 = sadd.s32 %s158, 1
      %p162 = scmp.eq.s32.totalorder %s19, 1
      %p163 = scmp.ne.s32.totalorder %s158, %s160
      %p164 = scmp.eq.s32.totalorder %s19, 0
      %p165 = por %p163, %p164
      %p166 = scmp.ne.s32.totalorder %s158, %s160
      %p167 = scmp.eq.s32.totalorder %s24, 1
      %p168 = por %p166, %p167
      %p169 = scmp.ne.s32.totalorder %s160, %s161
      %p170 = scmp.eq.s32.totalorder %s24, 0
      %p171 = por %p169, %p170
      %p172 = scmp.ne.s32.totalorder %s160, %s161
      %p173 = scmp.eq.s32.totalorder %s25, 1
      %p174 = por %p172, %p173
      %p176 = scmp.ne.s32.totalorder %s161, %s175
      %p177 = scmp.eq.s32.totalorder %s25, 0
      %p178 = por %p176, %p177
      %p179 = scmp.le.s32.totalorder 1, %s19
      %p180 = scmp.lt.s32.totalorder %s19, 3
      %p181 = pnand %p179, %p180
      %p182 = pneg %p181
      // Predicated region
      $region9: #{tpu_custom_call.1} parent=5 // pred_check
        _
      $region10: #{tpu_custom_call.1} parent=5 // pred_check_branch
        %184 = sbr.rel (%p181) target = $region12
      $region11: #{tpu_custom_call.1} parent=5 // pred_region
        %s185 = ssub.s32 %s19, 1
        // Predicated region
        $region13: #{tpu_custom_call.1} parent=11 // pred_check
          %p186 = pneg %p40
        $region14: #{tpu_custom_call.1} parent=11 // pred_check_branch
          %188 = sbr.rel (%p186) target = $region16
        $region15: #{tpu_custom_call.1} parent=11 // pred_region
          %190 = vsyncadd [#allocation5], 0
          %s192 = sshll.u32 %s0, 4
          %s193 = int_to_ptr.hbm [resolvable:$true] %s192
          %s194 = sshll.u32 [#allocation4], 4
          %s195 = int_to_ptr.vmem [resolvable:$true] %s194
          %197 = dma.hbm_to_vmem [thread:$0]  %s193, 32, %s195, [#allocation5]
        $region16: #{tpu_custom_call.1} parent=11 // pred_fallthru
          _
        // Predicated region
        $region17: #{tpu_custom_call.1} parent=11 // pred_check
          %p198 = pneg %p61
        $region18: #{tpu_custom_call.1} parent=11 // pred_check_branch
          %200 = sbr.rel (%p198) target = $region20
        $region19: #{tpu_custom_call.1} parent=11 // pred_region
          %202 = vsyncadd [#allocation8], 0
          %s203 = sshll.u32 %s1, 4
          %s204 = int_to_ptr.hbm [resolvable:$true] %s203
          %s205 = sshll.u32 [#allocation7], 4
          %s206 = int_to_ptr.vmem [resolvable:$true] %s205
          %211 = dma.hbm_to_vmem [thread:$0]  %s204, 3072, %s206, [#allocation8], 768, 768, 48
        $region20: #{tpu_custom_call.1} parent=11 // pred_fallthru
          _
        // Predicated region
        $region21: #{tpu_custom_call.1} parent=11 // pred_check
          %p212 = pneg %p82
        $region22: #{tpu_custom_call.1} parent=11 // pred_check_branch
          %214 = sbr.rel (%p212) target = $region24
        $region23: #{tpu_custom_call.1} parent=11 // pred_region
          %216 = vsyncadd [#allocation8], 0
          %s218 = sshll.u32 %s2, 4
          %s219 = int_to_ptr.hbm [resolvable:$true] %s218
          %s220 = sshll.u32 [#allocation9], 4
          %s221 = int_to_ptr.vmem [resolvable:$true] %s220
          %223 = dma.hbm_to_vmem [thread:$0]  %s219, 128, %s221, [#allocation8]
        $region24: #{tpu_custom_call.1} parent=11 // pred_fallthru
          _
        // Predicated region
        $region25: #{tpu_custom_call.1} parent=11 // pred_check
          %p224 = pneg %p103
        $region26: #{tpu_custom_call.1} parent=11 // pred_check_branch
          %226 = sbr.rel (%p224) target = $region28
        $region27: #{tpu_custom_call.1} parent=11 // pred_region
          %228 = vsyncadd [#allocation11], 0
          %s229 = sshll.u32 %s3, 4
          %s230 = int_to_ptr.hbm [resolvable:$true] %s229
          %s231 = sshll.u32 [#allocation10], 4
          %s232 = int_to_ptr.vmem [resolvable:$true] %s231
          %237 = dma.hbm_to_vmem [thread:$0]  %s230, 6144, %s232, [#allocation11], 768, 768, 48
        $region28: #{tpu_custom_call.1} parent=11 // pred_fallthru
          _
        // Predicated region
        $region29: #{tpu_custom_call.1} parent=11 // pred_check
          %p238 = pneg %p124
        $region30: #{tpu_custom_call.1} parent=11 // pred_check_branch
          %240 = sbr.rel (%p238) target = $region32
        $region31: #{tpu_custom_call.1} parent=11 // pred_region
          %242 = vsyncadd [#allocation11], 0
          %s244 = sshll.u32 %s4, 4
          %s245 = int_to_ptr.hbm [resolvable:$true] %s244
          %s246 = sshll.u32 [#allocation12], 4
          %s247 = int_to_ptr.vmem [resolvable:$true] %s246
          %249 = dma.hbm_to_vmem [thread:$0]  %s245, 128, %s247, [#allocation11]
        $region32: #{tpu_custom_call.1} parent=11 // pred_fallthru
          _
      $region12: #{tpu_custom_call.1} parent=5 // pred_fallthru
        _
      %p250 = scmp.lt.s32.totalorder %s19, 2
      // Predicated region
      $region33: #{tpu_custom_call.1} parent=5 // pred_check
        %p251 = pneg %p250
      $region34: #{tpu_custom_call.1} parent=5 // pred_check_branch
        %253 = sbr.rel (%p251) target = $region36
      $region35: #{tpu_custom_call.1} parent=5 // pred_region
        // Predicated region
        $region37: #{tpu_custom_call.1} parent=35 // pred_check
          %p254 = pneg %p144
        $region38: #{tpu_custom_call.1} parent=35 // pred_check_branch
          %256 = sbr.rel (%p254) target = $region40
        $region39: #{tpu_custom_call.1} parent=35 // pred_region
          %s257 = sand.u32 %s134, 1
          %s258 = scalar_lea.sflag [#allocation14], %s257
          %s259 = sand.u32 %s134, 1
          %s260 = smul.addr %s259, 2304
          %s261 = scalar_lea.vmem [#allocation13], %s260
          %263 = vsyncadd %s258, 0
          %s264 = smul.addr %s19, 576
          %s265 = smul.addr %s264, 4
          %s266 = scalar_lea.hbm %s5, %s265
          %s267 = sshll.u32 %s266, 4
          %s268 = int_to_ptr.hbm [resolvable:$true] %s267
          %s269 = sshll.u32 %s261, 4
          %s270 = int_to_ptr.vmem [resolvable:$true] %s269
          %275 = dma.hbm_to_vmem [thread:$0]  %s268, 36864, %s270, %s258, 384, 384, 24
        $region40: #{tpu_custom_call.1} parent=35 // pred_fallthru
          _
      $region36: #{tpu_custom_call.1} parent=5 // pred_fallthru
        _
      %p276 = scmp.le.s32.totalorder 1, %s19
      %p277 = scmp.lt.s32.totalorder %s19, 3
      %p278 = pnand %p276, %p277
      %p279 = pneg %p278
      // Predicated region
      $region41: #{tpu_custom_call.1} parent=5 // pred_check
        _
      $region42: #{tpu_custom_call.1} parent=5 // pred_check_branch
        %281 = sbr.rel (%p278) target = $region44
      $region43: #{tpu_custom_call.1} parent=5 // pred_region
        %s282 = ssub.s32 %s19, 1
        // Predicated region
        $region45: #{tpu_custom_call.1} parent=43 // pred_check
          %p283 = pneg %p40
        $region46: #{tpu_custom_call.1} parent=43 // pred_check_branch
          %285 = sbr.rel (%p283) target = $region48
        $region47: #{tpu_custom_call.1} parent=43 // pred_region
          %287 = dma.done [#allocation5], 32
        $region48: #{tpu_custom_call.1} parent=43 // pred_fallthru
          _
        // Predicated region
        $region49: #{tpu_custom_call.1} parent=43 // pred_check
          %p288 = pneg %p61
        $region50: #{tpu_custom_call.1} parent=43 // pred_check_branch
          %290 = sbr.rel (%p288) target = $region52
        $region51: #{tpu_custom_call.1} parent=43 // pred_region
          %292 = dma.done [#allocation8], 3072
        $region52: #{tpu_custom_call.1} parent=43 // pred_fallthru
          _
        // Predicated region
        $region53: #{tpu_custom_call.1} parent=43 // pred_check
          %p293 = pneg %p82
        $region54: #{tpu_custom_call.1} parent=43 // pred_check_branch
          %295 = sbr.rel (%p293) target = $region56
        $region55: #{tpu_custom_call.1} parent=43 // pred_region
          %297 = dma.done [#allocation8], 128
        $region56: #{tpu_custom_call.1} parent=43 // pred_fallthru
          _
        // Predicated region
        $region57: #{tpu_custom_call.1} parent=43 // pred_check
          %p298 = pneg %p103
        $region58: #{tpu_custom_call.1} parent=43 // pred_check_branch
          %300 = sbr.rel (%p298) target = $region60
        $region59: #{tpu_custom_call.1} parent=43 // pred_region
          %302 = dma.done [#allocation11], 6144
        $region60: #{tpu_custom_call.1} parent=43 // pred_fallthru
          _
        // Predicated region
        $region61: #{tpu_custom_call.1} parent=43 // pred_check
          %p303 = pneg %p124
        $region62: #{tpu_custom_call.1} parent=43 // pred_check_branch
          %305 = sbr.rel (%p303) target = $region64
        $region63: #{tpu_custom_call.1} parent=43 // pred_region
          %307 = dma.done [#allocation11], 128
        $region64: #{tpu_custom_call.1} parent=43 // pred_fallthru
          _
        %s308 = sand.u32 %s137, 1
        %s309 = scalar_lea.sflag [#allocation14], %s308
        %s310 = sand.u32 %s137, 1
        %s311 = smul.addr %s310, 2304
        %s312 = scalar_lea.vmem [#allocation13], %s311
        // Predicated region
        $region65: #{tpu_custom_call.1} parent=43 // pred_check
          %p313 = pneg %p150
        $region66: #{tpu_custom_call.1} parent=43 // pred_check_branch
          %315 = sbr.rel (%p313) target = $region68
        $region67: #{tpu_custom_call.1} parent=43 // pred_region
          %317 = dma.done %s309, 36864
        $region68: #{tpu_custom_call.1} parent=43 // pred_fallthru
          _
        %p318 = pneg %p40
        %p319 = pneg %p37
        %p320 = pneg %p61
        %p321 = pneg %p58
        %p322 = pneg %p82
        %p323 = pneg %p79
        %p324 = pneg %p103
        %p325 = pneg %p100
        %p326 = pneg %p124
        %p327 = pneg %p121
        %s328 = sand.u32 %s137, 1
        %s329 = scalar_lea.sflag [#allocation14], %s328
        %s330 = sand.u32 %s137, 1
        %s331 = smul.addr %s330, 2304
        %s332 = scalar_lea.vmem [#allocation13], %s331
        %p333 = pneg %p150
        %p334 = pneg %p147
        %p335 = pneg %p171
        %p336 = pneg %p168
        %p337 = scmp.eq.s32.totalorder %s24, 0
        // Predicated region
        $region69: #{tpu_custom_call.1} parent=43 // pred_check
          %p338 = pneg %p337
        $region70: #{tpu_custom_call.1} parent=43 // pred_check_branch
          %340 = sbr.rel (%p338) target = $region72
        $region71: #{tpu_custom_call.1} parent=43 // pred_region
          %v341 = vld [vmem:[#allocation4] sm:$0x3]
          %v342 = vld [vmem:[#allocation7] sm:$0xff]
          %v343 = vld [vmem:[#allocation7 + $0x8] sm:$0xff]
          %v344 = vld [vmem:[#allocation7 + $0x10] sm:$0xff]
          %v345 = vld [vmem:[#allocation7 + $0x18] sm:$0xff]
          %v346 = vld [vmem:[#allocation7 + $0x20] sm:$0xff]
          %v347 = vld [vmem:[#allocation7 + $0x28] sm:$0xff]
          %v348 = vld [vmem:[#allocation7 + $0x30] sm:$0xff]
          %v349 = vld [vmem:[#allocation7 + $0x38] sm:$0xff]
          %v350 = vld [vmem:[#allocation7 + $0x40] sm:$0xff]
          %v351 = vld [vmem:[#allocation7 + $0x48] sm:$0xff]
          %v352 = vld [vmem:[#allocation7 + $0x50] sm:$0xff]
          %v353 = vld [vmem:[#allocation7 + $0x58] sm:$0xff]
          %v354 = vld [vmem:[#allocation7 + $0x60] sm:$0xff]
          %v355 = vld [vmem:[#allocation7 + $0x68] sm:$0xff]
          %v356 = vld [vmem:[#allocation7 + $0x70] sm:$0xff]
          %v357 = vld [vmem:[#allocation7 + $0x78] sm:$0xff]
          %v358 = vld [vmem:[#allocation7 + $0x80] sm:$0xff]
          %v359 = vld [vmem:[#allocation7 + $0x88] sm:$0xff]
          %v360 = vld [vmem:[#allocation7 + $0x90] sm:$0xff]
          %v361 = vld [vmem:[#allocation7 + $0x98] sm:$0xff]
          %v362 = vld [vmem:[#allocation7 + $0xa0] sm:$0xff]
          %v363 = vld [vmem:[#allocation7 + $0xa8] sm:$0xff]
          %v364 = vld [vmem:[#allocation7 + $0xb0] sm:$0xff]
          %v365 = vld [vmem:[#allocation7 + $0xb8] sm:$0xff]
          %vm366 = vcmask 261120
          %v368 = vsel %vm366, %v341, 0
          %370 = vmatpush.msra.mxu0 0.0
          %371 = vmatpush.msra.mxu0 0.0
          %372 = vmatpush.msra.mxu0 0.0
          %373 = vmatpush.msra.mxu0 0.0
          %374 = vmatpush.msra.mxu0 0.0
          %375 = vmatpush.msra.mxu0 0.0
          %376 = vmatpush.msra.mxu0 0.0
          %377 = vmatpush.msra.mxu0 0.0
          %378 = vmatpush.msra.mxu0 0.0
          %379 = vmatpush.msra.mxu0 0.0
          %380 = vmatpush.msra.mxu0 0.0
          %381 = vmatpush.msra.mxu0 0.0
          %382 = vmatpush.msra.mxu0 %v360
          %383 = vmatpush.msra.mxu0 %v354
          %384 = vmatpush.msra.mxu0 %v348
          %385 = vmatpush.msra.mxu0 %v342
          %386 = vmatmul.f32.gmra.mxu0 %v368
          %v387 = vpop.f32.mrf.mxu0
          %v388 = vadd.f32 0.0, %v387
          %389 = vdwg.mxu0
          %390 = vmatpush.msra.mxu0 0.0
          %391 = vmatpush.msra.mxu0 0.0
          %392 = vmatpush.msra.mxu0 0.0
          %393 = vmatpush.msra.mxu0 0.0
          %394 = vmatpush.msra.mxu0 0.0
          %395 = vmatpush.msra.mxu0 0.0
          %396 = vmatpush.msra.mxu0 0.0
          %397 = vmatpush.msra.mxu0 0.0
          %398 = vmatpush.msra.mxu0 0.0
          %399 = vmatpush.msra.mxu0 0.0
          %400 = vmatpush.msra.mxu0 0.0
          %401 = vmatpush.msra.mxu0 0.0
          %402 = vmatpush.msra.mxu0 %v361
          %403 = vmatpush.msra.mxu0 %v355
          %404 = vmatpush.msra.mxu0 %v349
          %405 = vmatpush.msra.mxu0 %v343
          %406 = vmatmul.f32.gmra.mxu0 %v368
          %v407 = vpop.f32.mrf.mxu0
          %v408 = vadd.f32 0.0, %v407
          %409 = vdwg.mxu0
          %410 = vmatpush.msra.mxu0 0.0
          %411 = vmatpush.msra.mxu0 0.0
          %412 = vmatpush.msra.mxu0 0.0
          %413 = vmatpush.msra.mxu0 0.0
          %414 = vmatpush.msra.mxu0 0.0
          %415 = vmatpush.msra.mxu0 0.0
          %416 = vmatpush.msra.mxu0 0.0
          %417 = vmatpush.msra.mxu0 0.0
          %418 = vmatpush.msra.mxu0 0.0
          %419 = vmatpush.msra.mxu0 0.0
          %420 = vmatpush.msra.mxu0 0.0
          %421 = vmatpush.msra.mxu0 0.0
          %422 = vmatpush.msra.mxu0 %v362
          %423 = vmatpush.msra.mxu0 %v356
          %424 = vmatpush.msra.mxu0 %v350
          %425 = vmatpush.msra.mxu0 %v344
          %426 = vmatmul.f32.gmra.mxu0 %v368
          %v427 = vpop.f32.mrf.mxu0
          %v428 = vadd.f32 0.0, %v427
          %429 = vdwg.mxu0
          %430 = vmatpush.msra.mxu0 0.0
          %431 = vmatpush.msra.mxu0 0.0
          %432 = vmatpush.msra.mxu0 0.0
          %433 = vmatpush.msra.mxu0 0.0
          %434 = vmatpush.msra.mxu0 0.0
          %435 = vmatpush.msra.mxu0 0.0
          %436 = vmatpush.msra.mxu0 0.0
          %437 = vmatpush.msra.mxu0 0.0
          %438 = vmatpush.msra.mxu0 0.0
          %439 = vmatpush.msra.mxu0 0.0
          %440 = vmatpush.msra.mxu0 0.0
          %441 = vmatpush.msra.mxu0 0.0
          %442 = vmatpush.msra.mxu0 %v363
          %443 = vmatpush.msra.mxu0 %v357
          %444 = vmatpush.msra.mxu0 %v351
          %445 = vmatpush.msra.mxu0 %v345
          %446 = vmatmul.f32.gmra.mxu0 %v368
          %v447 = vpop.f32.mrf.mxu0
          %v448 = vadd.f32 0.0, %v447
          %449 = vdwg.mxu0
          %450 = vmatpush.msra.mxu0 0.0
          %451 = vmatpush.msra.mxu0 0.0
          %452 = vmatpush.msra.mxu0 0.0
          %453 = vmatpush.msra.mxu0 0.0
          %454 = vmatpush.msra.mxu0 0.0
          %455 = vmatpush.msra.mxu0 0.0
          %456 = vmatpush.msra.mxu0 0.0
          %457 = vmatpush.msra.mxu0 0.0
          %458 = vmatpush.msra.mxu0 0.0
          %459 = vmatpush.msra.mxu0 0.0
          %460 = vmatpush.msra.mxu0 0.0
          %461 = vmatpush.msra.mxu0 0.0
          %462 = vmatpush.msra.mxu0 %v364
          %463 = vmatpush.msra.mxu0 %v358
          %464 = vmatpush.msra.mxu0 %v352
          %465 = vmatpush.msra.mxu0 %v346
          %466 = vmatmul.f32.gmra.mxu0 %v368
          %v467 = vpop.f32.mrf.mxu0
          %v468 = vadd.f32 0.0, %v467
          %469 = vdwg.mxu0
          %470 = vmatpush.msra.mxu0 0.0
          %471 = vmatpush.msra.mxu0 0.0
          %472 = vmatpush.msra.mxu0 0.0
          %473 = vmatpush.msra.mxu0 0.0
          %474 = vmatpush.msra.mxu0 0.0
          %475 = vmatpush.msra.mxu0 0.0
          %476 = vmatpush.msra.mxu0 0.0
          %477 = vmatpush.msra.mxu0 0.0
          %478 = vmatpush.msra.mxu0 0.0
          %479 = vmatpush.msra.mxu0 0.0
          %480 = vmatpush.msra.mxu0 0.0
          %481 = vmatpush.msra.mxu0 0.0
          %482 = vmatpush.msra.mxu0 %v365
          %483 = vmatpush.msra.mxu0 %v359
          %484 = vmatpush.msra.mxu0 %v353
          %485 = vmatpush.msra.mxu0 %v347
          %486 = vmatmul.f32.gmra.mxu0 %v368
          %v487 = vpop.f32.mrf.mxu0
          %v488 = vadd.f32 0.0, %v487
          %489 = vdwg.mxu0
          %v490 = vld [vmem:[#allocation9] sm:$0xff]
          %v491 = vld [vmem:[#allocation10] sm:$0xff]
          %v492 = vld [vmem:[#allocation10 + $0x8] sm:$0xff]
          %v493 = vld [vmem:[#allocation10 + $0x10] sm:$0xff]
          %v494 = vld [vmem:[#allocation10 + $0x18] sm:$0xff]
          %v495 = vld [vmem:[#allocation10 + $0x20] sm:$0xff]
          %v496 = vld [vmem:[#allocation10 + $0x28] sm:$0xff]
          %v497 = vld [vmem:[#allocation10 + $0x30] sm:$0xff]
          %v498 = vld [vmem:[#allocation10 + $0x38] sm:$0xff]
          %v499 = vld [vmem:[#allocation10 + $0x40] sm:$0xff]
          %v500 = vld [vmem:[#allocation10 + $0x48] sm:$0xff]
          %v501 = vld [vmem:[#allocation10 + $0x50] sm:$0xff]
          %v502 = vld [vmem:[#allocation10 + $0x58] sm:$0xff]
          %v503 = vld [vmem:[#allocation10 + $0x60] sm:$0xff]
          %v504 = vld [vmem:[#allocation10 + $0x68] sm:$0xff]
          %v505 = vld [vmem:[#allocation10 + $0x70] sm:$0xff]
          %v506 = vld [vmem:[#allocation10 + $0x78] sm:$0xff]
          %v507 = vld [vmem:[#allocation10 + $0x80] sm:$0xff]
          %v508 = vld [vmem:[#allocation10 + $0x88] sm:$0xff]
          %v509 = vld [vmem:[#allocation10 + $0x90] sm:$0xff]
          %v510 = vld [vmem:[#allocation10 + $0x98] sm:$0xff]
          %v511 = vld [vmem:[#allocation10 + $0xa0] sm:$0xff]
          %v512 = vld [vmem:[#allocation10 + $0xa8] sm:$0xff]
          %v513 = vld [vmem:[#allocation10 + $0xb0] sm:$0xff]
          %v514 = vld [vmem:[#allocation10 + $0xb8] sm:$0xff]
          %v515 = vld [vmem:[#allocation10 + $0xc0] sm:$0xff]
          %v516 = vld [vmem:[#allocation10 + $0xc8] sm:$0xff]
          %v517 = vld [vmem:[#allocation10 + $0xd0] sm:$0xff]
          %v518 = vld [vmem:[#allocation10 + $0xd8] sm:$0xff]
          %v519 = vld [vmem:[#allocation10 + $0xe0] sm:$0xff]
          %v520 = vld [vmem:[#allocation10 + $0xe8] sm:$0xff]
          %v521 = vld [vmem:[#allocation10 + $0xf0] sm:$0xff]
          %v522 = vld [vmem:[#allocation10 + $0xf8] sm:$0xff]
          %v523 = vld [vmem:[#allocation10 + $0x100] sm:$0xff]
          %v524 = vld [vmem:[#allocation10 + $0x108] sm:$0xff]
          %v525 = vld [vmem:[#allocation10 + $0x110] sm:$0xff]
          %v526 = vld [vmem:[#allocation10 + $0x118] sm:$0xff]
          %v527 = vld [vmem:[#allocation10 + $0x120] sm:$0xff]
          %v528 = vld [vmem:[#allocation10 + $0x128] sm:$0xff]
          %v529 = vld [vmem:[#allocation10 + $0x130] sm:$0xff]
          %v530 = vld [vmem:[#allocation10 + $0x138] sm:$0xff]
          %v531 = vld [vmem:[#allocation10 + $0x140] sm:$0xff]
          %v532 = vld [vmem:[#allocation10 + $0x148] sm:$0xff]
          %v533 = vld [vmem:[#allocation10 + $0x150] sm:$0xff]
          %v534 = vld [vmem:[#allocation10 + $0x158] sm:$0xff]
          %v535 = vld [vmem:[#allocation10 + $0x160] sm:$0xff]
          %v536 = vld [vmem:[#allocation10 + $0x168] sm:$0xff]
          %v537 = vld [vmem:[#allocation10 + $0x170] sm:$0xff]
          %v538 = vld [vmem:[#allocation10 + $0x178] sm:$0xff]
          %vm539 = vcmask 523264
          %v541 = vsel %vm539, %v490, 0
          %543 = vmatpush.msra.mxu0 0.0
          %544 = vmatpush.msra.mxu0 0.0
          %545 = vmatpush.msra.mxu0 0.0
          %546 = vmatpush.msra.mxu0 0.0
          %547 = vmatpush.msra.mxu0 0.0
          %548 = vmatpush.msra.mxu0 0.0
          %549 = vmatpush.msra.mxu0 0.0
          %550 = vmatpush.msra.mxu0 0.0
          %551 = vmatpush.msra.mxu0 %v533
          %552 = vmatpush.msra.mxu0 %v527
          %553 = vmatpush.msra.mxu0 %v521
          %554 = vmatpush.msra.mxu0 %v515
          %555 = vmatpush.msra.mxu0 %v509
          %556 = vmatpush.msra.mxu0 %v503
          %557 = vmatpush.msra.mxu0 %v497
          %558 = vmatpush.msra.mxu0 %v491
          %559 = vmatmul.f32.gmra.mxu0 %v541
          %v560 = vpop.f32.mrf.mxu0
          %v561 = vadd.f32 0.0, %v560
          %562 = vdwg.mxu0
          %563 = vmatpush.msra.mxu0 0.0
          %564 = vmatpush.msra.mxu0 0.0
          %565 = vmatpush.msra.mxu0 0.0
          %566 = vmatpush.msra.mxu0 0.0
          %567 = vmatpush.msra.mxu0 0.0
          %568 = vmatpush.msra.mxu0 0.0
          %569 = vmatpush.msra.mxu0 0.0
          %570 = vmatpush.msra.mxu0 0.0
          %571 = vmatpush.msra.mxu0 %v534
          %572 = vmatpush.msra.mxu0 %v528
          %573 = vmatpush.msra.mxu0 %v522
          %574 = vmatpush.msra.mxu0 %v516
          %575 = vmatpush.msra.mxu0 %v510
          %576 = vmatpush.msra.mxu0 %v504
          %577 = vmatpush.msra.mxu0 %v498
          %578 = vmatpush.msra.mxu0 %v492
          %579 = vmatmul.f32.gmra.mxu0 %v541
          %v580 = vpop.f32.mrf.mxu0
          %v581 = vadd.f32 0.0, %v580
          %582 = vdwg.mxu0
          %583 = vmatpush.msra.mxu0 0.0
          %584 = vmatpush.msra.mxu0 0.0
          %585 = vmatpush.msra.mxu0 0.0
          %586 = vmatpush.msra.mxu0 0.0
          %587 = vmatpush.msra.mxu0 0.0
          %588 = vmatpush.msra.mxu0 0.0
          %589 = vmatpush.msra.mxu0 0.0
          %590 = vmatpush.msra.mxu0 0.0
          %591 = vmatpush.msra.mxu0 %v535
          %592 = vmatpush.msra.mxu0 %v529
          %593 = vmatpush.msra.mxu0 %v523
          %594 = vmatpush.msra.mxu0 %v517
          %595 = vmatpush.msra.mxu0 %v511
          %596 = vmatpush.msra.mxu0 %v505
          %597 = vmatpush.msra.mxu0 %v499
          %598 = vmatpush.msra.mxu0 %v493
          %599 = vmatmul.f32.gmra.mxu0 %v541
          %v600 = vpop.f32.mrf.mxu0
          %v601 = vadd.f32 0.0, %v600
          %602 = vdwg.mxu0
          %603 = vmatpush.msra.mxu0 0.0
          %604 = vmatpush.msra.mxu0 0.0
          %605 = vmatpush.msra.mxu0 0.0
          %606 = vmatpush.msra.mxu0 0.0
          %607 = vmatpush.msra.mxu0 0.0
          %608 = vmatpush.msra.mxu0 0.0
          %609 = vmatpush.msra.mxu0 0.0
          %610 = vmatpush.msra.mxu0 0.0
          %611 = vmatpush.msra.mxu0 %v536
          %612 = vmatpush.msra.mxu0 %v530
          %613 = vmatpush.msra.mxu0 %v524
          %614 = vmatpush.msra.mxu0 %v518
          %615 = vmatpush.msra.mxu0 %v512
          %616 = vmatpush.msra.mxu0 %v506
          %617 = vmatpush.msra.mxu0 %v500
          %618 = vmatpush.msra.mxu0 %v494
          %619 = vmatmul.f32.gmra.mxu0 %v541
          %v620 = vpop.f32.mrf.mxu0
          %v621 = vadd.f32 0.0, %v620
          %622 = vdwg.mxu0
          %623 = vmatpush.msra.mxu0 0.0
          %624 = vmatpush.msra.mxu0 0.0
          %625 = vmatpush.msra.mxu0 0.0
          %626 = vmatpush.msra.mxu0 0.0
          %627 = vmatpush.msra.mxu0 0.0
          %628 = vmatpush.msra.mxu0 0.0
          %629 = vmatpush.msra.mxu0 0.0
          %630 = vmatpush.msra.mxu0 0.0
          %631 = vmatpush.msra.mxu0 %v537
          %632 = vmatpush.msra.mxu0 %v531
          %633 = vmatpush.msra.mxu0 %v525
          %634 = vmatpush.msra.mxu0 %v519
          %635 = vmatpush.msra.mxu0 %v513
          %636 = vmatpush.msra.mxu0 %v507
          %637 = vmatpush.msra.mxu0 %v501
          %638 = vmatpush.msra.mxu0 %v495
          %639 = vmatmul.f32.gmra.mxu0 %v541
          %v640 = vpop.f32.mrf.mxu0
          %v641 = vadd.f32 0.0, %v640
          %642 = vdwg.mxu0
          %643 = vmatpush.msra.mxu0 0.0
          %644 = vmatpush.msra.mxu0 0.0
          %645 = vmatpush.msra.mxu0 0.0
          %646 = vmatpush.msra.mxu0 0.0
          %647 = vmatpush.msra.mxu0 0.0
          %648 = vmatpush.msra.mxu0 0.0
          %649 = vmatpush.msra.mxu0 0.0
          %650 = vmatpush.msra.mxu0 0.0
          %651 = vmatpush.msra.mxu0 %v538
          %652 = vmatpush.msra.mxu0 %v532
          %653 = vmatpush.msra.mxu0 %v526
          %654 = vmatpush.msra.mxu0 %v520
          %655 = vmatpush.msra.mxu0 %v514
          %656 = vmatpush.msra.mxu0 %v508
          %657 = vmatpush.msra.mxu0 %v502
          %658 = vmatpush.msra.mxu0 %v496
          %659 = vmatmul.f32.gmra.mxu0 %v541
          %v660 = vpop.f32.mrf.mxu0
          %v661 = vadd.f32 0.0, %v660
          %662 = vdwg.mxu0
          %v663 = vpack.c.bf16 %v561, %v561
          %v664 = vpack.c.bf16 %v581, %v581
          %v665 = vpack.c.bf16 %v601, %v601
          %v666 = vpack.c.bf16 %v621, %v621
          %v667 = vpack.c.bf16 %v641, %v641
          %v668 = vpack.c.bf16 %v661, %v661
          %v669 = vld [vmem:[%s312] sm:$0xff]
          %v670 = vld [vmem:[%s312 + $0x8] sm:$0xff]
          %v671 = vld [vmem:[%s312 + $0x10] sm:$0xff]
          %v672 = vld [vmem:[%s312 + $0x18] sm:$0xff]
          %v673 = vld [vmem:[%s312 + $0x20] sm:$0xff]
          %v674 = vld [vmem:[%s312 + $0x28] sm:$0xff]
          %v675 = vld [vmem:[%s312 + $0x30] sm:$0xff]
          %v676 = vld [vmem:[%s312 + $0x38] sm:$0xff]
          %v677 = vld [vmem:[%s312 + $0x40] sm:$0xff]
          %v678 = vld [vmem:[%s312 + $0x48] sm:$0xff]
          %v679 = vld [vmem:[%s312 + $0x50] sm:$0xff]
          %v680 = vld [vmem:[%s312 + $0x58] sm:$0xff]
          %v681 = vld [vmem:[%s312 + $0x60] sm:$0xff]
          %v682 = vld [vmem:[%s312 + $0x68] sm:$0xff]
          %v683 = vld [vmem:[%s312 + $0x70] sm:$0xff]
          %v684 = vld [vmem:[%s312 + $0x78] sm:$0xff]
          %v685 = vld [vmem:[%s312 + $0x80] sm:$0xff]
          %v686 = vld [vmem:[%s312 + $0x88] sm:$0xff]
          %v687 = vld [vmem:[%s312 + $0x90] sm:$0xff]
          %v688 = vld [vmem:[%s312 + $0x98] sm:$0xff]
          %v689 = vld [vmem:[%s312 + $0xa0] sm:$0xff]
          %v690 = vld [vmem:[%s312 + $0xa8] sm:$0xff]
          %v691 = vld [vmem:[%s312 + $0xb0] sm:$0xff]
          %v692 = vld [vmem:[%s312 + $0xb8] sm:$0xff]
          %v693 = vld [vmem:[%s312 + $0xc0] sm:$0xff]
          %v694 = vld [vmem:[%s312 + $0xc8] sm:$0xff]
          %v695 = vld [vmem:[%s312 + $0xd0] sm:$0xff]
          %v696 = vld [vmem:[%s312 + $0xd8] sm:$0xff]
          %v697 = vld [vmem:[%s312 + $0xe0] sm:$0xff]
          %v698 = vld [vmem:[%s312 + $0xe8] sm:$0xff]
          %v699 = vld [vmem:[%s312 + $0xf0] sm:$0xff]
          %v700 = vld [vmem:[%s312 + $0xf8] sm:$0xff]
          %v701 = vld [vmem:[%s312 + $0x100] sm:$0xff]
          %v702 = vld [vmem:[%s312 + $0x108] sm:$0xff]
          %v703 = vld [vmem:[%s312 + $0x110] sm:$0xff]
          %v704 = vld [vmem:[%s312 + $0x118] sm:$0xff]
          %v705 = vld [vmem:[%s312 + $0x120] sm:$0xff]
          %v706 = vld [vmem:[%s312 + $0x128] sm:$0xff]
          %v707 = vld [vmem:[%s312 + $0x130] sm:$0xff]
          %v708 = vld [vmem:[%s312 + $0x138] sm:$0xff]
          %v709 = vld [vmem:[%s312 + $0x140] sm:$0xff]
          %v710 = vld [vmem:[%s312 + $0x148] sm:$0xff]
          %v711 = vld [vmem:[%s312 + $0x150] sm:$0xff]
          %v712 = vld [vmem:[%s312 + $0x158] sm:$0xff]
          %v713 = vld [vmem:[%s312 + $0x160] sm:$0xff]
          %v714 = vld [vmem:[%s312 + $0x168] sm:$0xff]
          %v715 = vld [vmem:[%s312 + $0x170] sm:$0xff]
          %v716 = vld [vmem:[%s312 + $0x178] sm:$0xff]
          %v717 = vld [vmem:[%s312 + $0x180] sm:$0xff]
          %v718 = vld [vmem:[%s312 + $0x188] sm:$0xff]
          %v719 = vld [vmem:[%s312 + $0x190] sm:$0xff]
          %v720 = vld [vmem:[%s312 + $0x198] sm:$0xff]
          %v721 = vld [vmem:[%s312 + $0x1a0] sm:$0xff]
          %v722 = vld [vmem:[%s312 + $0x1a8] sm:$0xff]
          %v723 = vld [vmem:[%s312 + $0x1b0] sm:$0xff]
          %v724 = vld [vmem:[%s312 + $0x1b8] sm:$0xff]
          %v725 = vld [vmem:[%s312 + $0x1c0] sm:$0xff]
          %v726 = vld [vmem:[%s312 + $0x1c8] sm:$0xff]
          %v727 = vld [vmem:[%s312 + $0x1d0] sm:$0xff]
          %v728 = vld [vmem:[%s312 + $0x1d8] sm:$0xff]
          %v729 = vld [vmem:[%s312 + $0x1e0] sm:$0xff]
          %v730 = vld [vmem:[%s312 + $0x1e8] sm:$0xff]
          %v731 = vld [vmem:[%s312 + $0x1f0] sm:$0xff]
          %v732 = vld [vmem:[%s312 + $0x1f8] sm:$0xff]
          %v733 = vld [vmem:[%s312 + $0x200] sm:$0xff]
          %v734 = vld [vmem:[%s312 + $0x208] sm:$0xff]
          %v735 = vld [vmem:[%s312 + $0x210] sm:$0xff]
          %v736 = vld [vmem:[%s312 + $0x218] sm:$0xff]
          %v737 = vld [vmem:[%s312 + $0x220] sm:$0xff]
          %v738 = vld [vmem:[%s312 + $0x228] sm:$0xff]
          %v739 = vld [vmem:[%s312 + $0x230] sm:$0xff]
          %v740 = vld [vmem:[%s312 + $0x238] sm:$0xff]
          %v741 = vld [vmem:[%s312 + $0x240] sm:$0xff]
          %v742 = vld [vmem:[%s312 + $0x248] sm:$0xff]
          %v743 = vld [vmem:[%s312 + $0x250] sm:$0xff]
          %v744 = vld [vmem:[%s312 + $0x258] sm:$0xff]
          %v745 = vld [vmem:[%s312 + $0x260] sm:$0xff]
          %v746 = vld [vmem:[%s312 + $0x268] sm:$0xff]
          %v747 = vld [vmem:[%s312 + $0x270] sm:$0xff]
          %v748 = vld [vmem:[%s312 + $0x278] sm:$0xff]
          %v749 = vld [vmem:[%s312 + $0x280] sm:$0xff]
          %v750 = vld [vmem:[%s312 + $0x288] sm:$0xff]
          %v751 = vld [vmem:[%s312 + $0x290] sm:$0xff]
          %v752 = vld [vmem:[%s312 + $0x298] sm:$0xff]
          %v753 = vld [vmem:[%s312 + $0x2a0] sm:$0xff]
          %v754 = vld [vmem:[%s312 + $0x2a8] sm:$0xff]
          %v755 = vld [vmem:[%s312 + $0x2b0] sm:$0xff]
          %v756 = vld [vmem:[%s312 + $0x2b8] sm:$0xff]
          %v757 = vld [vmem:[%s312 + $0x2c0] sm:$0xff]
          %v758 = vld [vmem:[%s312 + $0x2c8] sm:$0xff]
          %v759 = vld [vmem:[%s312 + $0x2d0] sm:$0xff]
          %v760 = vld [vmem:[%s312 + $0x2d8] sm:$0xff]
          %v761 = vld [vmem:[%s312 + $0x2e0] sm:$0xff]
          %v762 = vld [vmem:[%s312 + $0x2e8] sm:$0xff]
          %v763 = vld [vmem:[%s312 + $0x2f0] sm:$0xff]
          %v764 = vld [vmem:[%s312 + $0x2f8] sm:$0xff]
          %v765 = vld [vmem:[%s312 + $0x300] sm:$0xff]
          %v766 = vld [vmem:[%s312 + $0x308] sm:$0xff]
          %v767 = vld [vmem:[%s312 + $0x310] sm:$0xff]
          %v768 = vld [vmem:[%s312 + $0x318] sm:$0xff]
          %v769 = vld [vmem:[%s312 + $0x320] sm:$0xff]
          %v770 = vld [vmem:[%s312 + $0x328] sm:$0xff]
          %v771 = vld [vmem:[%s312 + $0x330] sm:$0xff]
          %v772 = vld [vmem:[%s312 + $0x338] sm:$0xff]
          %v773 = vld [vmem:[%s312 + $0x340] sm:$0xff]
          %v774 = vld [vmem:[%s312 + $0x348] sm:$0xff]
          %v775 = vld [vmem:[%s312 + $0x350] sm:$0xff]
          %v776 = vld [vmem:[%s312 + $0x358] sm:$0xff]
          %v777 = vld [vmem:[%s312 + $0x360] sm:$0xff]
          %v778 = vld [vmem:[%s312 + $0x368] sm:$0xff]
          %v779 = vld [vmem:[%s312 + $0x370] sm:$0xff]
          %v780 = vld [vmem:[%s312 + $0x378] sm:$0xff]
          %v781 = vld [vmem:[%s312 + $0x380] sm:$0xff]
          %v782 = vld [vmem:[%s312 + $0x388] sm:$0xff]
          %v783 = vld [vmem:[%s312 + $0x390] sm:$0xff]
          %v784 = vld [vmem:[%s312 + $0x398] sm:$0xff]
          %v785 = vld [vmem:[%s312 + $0x3a0] sm:$0xff]
          %v786 = vld [vmem:[%s312 + $0x3a8] sm:$0xff]
          %v787 = vld [vmem:[%s312 + $0x3b0] sm:$0xff]
          %v788 = vld [vmem:[%s312 + $0x3b8] sm:$0xff]
          %v789 = vld [vmem:[%s312 + $0x3c0] sm:$0xff]
          %v790 = vld [vmem:[%s312 + $0x3c8] sm:$0xff]
          %v791 = vld [vmem:[%s312 + $0x3d0] sm:$0xff]
          %v792 = vld [vmem:[%s312 + $0x3d8] sm:$0xff]
          %v793 = vld [vmem:[%s312 + $0x3e0] sm:$0xff]
          %v794 = vld [vmem:[%s312 + $0x3e8] sm:$0xff]
          %v795 = vld [vmem:[%s312 + $0x3f0] sm:$0xff]
          %v796 = vld [vmem:[%s312 + $0x3f8] sm:$0xff]
          %v797 = vld [vmem:[%s312 + $0x400] sm:$0xff]
          %v798 = vld [vmem:[%s312 + $0x408] sm:$0xff]
          %v799 = vld [vmem:[%s312 + $0x410] sm:$0xff]
          %v800 = vld [vmem:[%s312 + $0x418] sm:$0xff]
          %v801 = vld [vmem:[%s312 + $0x420] sm:$0xff]
          %v802 = vld [vmem:[%s312 + $0x428] sm:$0xff]
          %v803 = vld [vmem:[%s312 + $0x430] sm:$0xff]
          %v804 = vld [vmem:[%s312 + $0x438] sm:$0xff]
          %v805 = vld [vmem:[%s312 + $0x440] sm:$0xff]
          %v806 = vld [vmem:[%s312 + $0x448] sm:$0xff]
          %v807 = vld [vmem:[%s312 + $0x450] sm:$0xff]
          %v808 = vld [vmem:[%s312 + $0x458] sm:$0xff]
          %v809 = vld [vmem:[%s312 + $0x460] sm:$0xff]
          %v810 = vld [vmem:[%s312 + $0x468] sm:$0xff]
          %v811 = vld [vmem:[%s312 + $0x470] sm:$0xff]
          %v812 = vld [vmem:[%s312 + $0x478] sm:$0xff]
          %v813 = vld [vmem:[%s312 + $0x480] sm:$0xff]
          %v814 = vld [vmem:[%s312 + $0x488] sm:$0xff]
          %v815 = vld [vmem:[%s312 + $0x490] sm:$0xff]
          %v816 = vld [vmem:[%s312 + $0x498] sm:$0xff]
          %v817 = vld [vmem:[%s312 + $0x4a0] sm:$0xff]
          %v818 = vld [vmem:[%s312 + $0x4a8] sm:$0xff]
          %v819 = vld [vmem:[%s312 + $0x4b0] sm:$0xff]
          %v820 = vld [vmem:[%s312 + $0x4b8] sm:$0xff]
          %v821 = vld [vmem:[%s312 + $0x4c0] sm:$0xff]
          %v822 = vld [vmem:[%s312 + $0x4c8] sm:$0xff]
          %v823 = vld [vmem:[%s312 + $0x4d0] sm:$0xff]
          %v824 = vld [vmem:[%s312 + $0x4d8] sm:$0xff]
          %v825 = vld [vmem:[%s312 + $0x4e0] sm:$0xff]
          %v826 = vld [vmem:[%s312 + $0x4e8] sm:$0xff]
          %v827 = vld [vmem:[%s312 + $0x4f0] sm:$0xff]
          %v828 = vld [vmem:[%s312 + $0x4f8] sm:$0xff]
          %v829 = vld [vmem:[%s312 + $0x500] sm:$0xff]
          %v830 = vld [vmem:[%s312 + $0x508] sm:$0xff]
          %v831 = vld [vmem:[%s312 + $0x510] sm:$0xff]
          %v832 = vld [vmem:[%s312 + $0x518] sm:$0xff]
          %v833 = vld [vmem:[%s312 + $0x520] sm:$0xff]
          %v834 = vld [vmem:[%s312 + $0x528] sm:$0xff]
          %v835 = vld [vmem:[%s312 + $0x530] sm:$0xff]
          %v836 = vld [vmem:[%s312 + $0x538] sm:$0xff]
          %v837 = vld [vmem:[%s312 + $0x540] sm:$0xff]
          %v838 = vld [vmem:[%s312 + $0x548] sm:$0xff]
          %v839 = vld [vmem:[%s312 + $0x550] sm:$0xff]
          %v840 = vld [vmem:[%s312 + $0x558] sm:$0xff]
          %v841 = vld [vmem:[%s312 + $0x560] sm:$0xff]
          %v842 = vld [vmem:[%s312 + $0x568] sm:$0xff]
          %v843 = vld [vmem:[%s312 + $0x570] sm:$0xff]
          %v844 = vld [vmem:[%s312 + $0x578] sm:$0xff]
          %v845 = vld [vmem:[%s312 + $0x580] sm:$0xff]
          %v846 = vld [vmem:[%s312 + $0x588] sm:$0xff]
          %v847 = vld [vmem:[%s312 + $0x590] sm:$0xff]
          %v848 = vld [vmem:[%s312 + $0x598] sm:$0xff]
          %v849 = vld [vmem:[%s312 + $0x5a0] sm:$0xff]
          %v850 = vld [vmem:[%s312 + $0x5a8] sm:$0xff]
          %v851 = vld [vmem:[%s312 + $0x5b0] sm:$0xff]
          %v852 = vld [vmem:[%s312 + $0x5b8] sm:$0xff]
          %v853 = vld [vmem:[%s312 + $0x5c0] sm:$0xff]
          %v854 = vld [vmem:[%s312 + $0x5c8] sm:$0xff]
          %v855 = vld [vmem:[%s312 + $0x5d0] sm:$0xff]
          %v856 = vld [vmem:[%s312 + $0x5d8] sm:$0xff]
          %v857 = vld [vmem:[%s312 + $0x5e0] sm:$0xff]
          %v858 = vld [vmem:[%s312 + $0x5e8] sm:$0xff]
          %v859 = vld [vmem:[%s312 + $0x5f0] sm:$0xff]
          %v860 = vld [vmem:[%s312 + $0x5f8] sm:$0xff]
          %v861 = vld [vmem:[%s312 + $0x600] sm:$0xff]
          %v862 = vld [vmem:[%s312 + $0x608] sm:$0xff]
          %v863 = vld [vmem:[%s312 + $0x610] sm:$0xff]
          %v864 = vld [vmem:[%s312 + $0x618] sm:$0xff]
          %v865 = vld [vmem:[%s312 + $0x620] sm:$0xff]
          %v866 = vld [vmem:[%s312 + $0x628] sm:$0xff]
          %v867 = vld [vmem:[%s312 + $0x630] sm:$0xff]
          %v868 = vld [vmem:[%s312 + $0x638] sm:$0xff]
          %v869 = vld [vmem:[%s312 + $0x640] sm:$0xff]
          %v870 = vld [vmem:[%s312 + $0x648] sm:$0xff]
          %v871 = vld [vmem:[%s312 + $0x650] sm:$0xff]
          %v872 = vld [vmem:[%s312 + $0x658] sm:$0xff]
          %v873 = vld [vmem:[%s312 + $0x660] sm:$0xff]
          %v874 = vld [vmem:[%s312 + $0x668] sm:$0xff]
          %v875 = vld [vmem:[%s312 + $0x670] sm:$0xff]
          %v876 = vld [vmem:[%s312 + $0x678] sm:$0xff]
          %v877 = vld [vmem:[%s312 + $0x680] sm:$0xff]
          %v878 = vld [vmem:[%s312 + $0x688] sm:$0xff]
          %v879 = vld [vmem:[%s312 + $0x690] sm:$0xff]
          %v880 = vld [vmem:[%s312 + $0x698] sm:$0xff]
          %v881 = vld [vmem:[%s312 + $0x6a0] sm:$0xff]
          %v882 = vld [vmem:[%s312 + $0x6a8] sm:$0xff]
          %v883 = vld [vmem:[%s312 + $0x6b0] sm:$0xff]
          %v884 = vld [vmem:[%s312 + $0x6b8] sm:$0xff]
          %v885 = vld [vmem:[%s312 + $0x6c0] sm:$0xff]
          %v886 = vld [vmem:[%s312 + $0x6c8] sm:$0xff]
          %v887 = vld [vmem:[%s312 + $0x6d0] sm:$0xff]
          %v888 = vld [vmem:[%s312 + $0x6d8] sm:$0xff]
          %v889 = vld [vmem:[%s312 + $0x6e0] sm:$0xff]
          %v890 = vld [vmem:[%s312 + $0x6e8] sm:$0xff]
          %v891 = vld [vmem:[%s312 + $0x6f0] sm:$0xff]
          %v892 = vld [vmem:[%s312 + $0x6f8] sm:$0xff]
          %v893 = vld [vmem:[%s312 + $0x700] sm:$0xff]
          %v894 = vld [vmem:[%s312 + $0x708] sm:$0xff]
          %v895 = vld [vmem:[%s312 + $0x710] sm:$0xff]
          %v896 = vld [vmem:[%s312 + $0x718] sm:$0xff]
          %v897 = vld [vmem:[%s312 + $0x720] sm:$0xff]
          %v898 = vld [vmem:[%s312 + $0x728] sm:$0xff]
          %v899 = vld [vmem:[%s312 + $0x730] sm:$0xff]
          %v900 = vld [vmem:[%s312 + $0x738] sm:$0xff]
          %v901 = vld [vmem:[%s312 + $0x740] sm:$0xff]
          %v902 = vld [vmem:[%s312 + $0x748] sm:$0xff]
          %v903 = vld [vmem:[%s312 + $0x750] sm:$0xff]
          %v904 = vld [vmem:[%s312 + $0x758] sm:$0xff]
          %v905 = vld [vmem:[%s312 + $0x760] sm:$0xff]
          %v906 = vld [vmem:[%s312 + $0x768] sm:$0xff]
          %v907 = vld [vmem:[%s312 + $0x770] sm:$0xff]
          %v908 = vld [vmem:[%s312 + $0x778] sm:$0xff]
          %v909 = vld [vmem:[%s312 + $0x780] sm:$0xff]
          %v910 = vld [vmem:[%s312 + $0x788] sm:$0xff]
          %v911 = vld [vmem:[%s312 + $0x790] sm:$0xff]
          %v912 = vld [vmem:[%s312 + $0x798] sm:$0xff]
          %v913 = vld [vmem:[%s312 + $0x7a0] sm:$0xff]
          %v914 = vld [vmem:[%s312 + $0x7a8] sm:$0xff]
          %v915 = vld [vmem:[%s312 + $0x7b0] sm:$0xff]
          %v916 = vld [vmem:[%s312 + $0x7b8] sm:$0xff]
          %v917 = vld [vmem:[%s312 + $0x7c0] sm:$0xff]
          %v918 = vld [vmem:[%s312 + $0x7c8] sm:$0xff]
          %v919 = vld [vmem:[%s312 + $0x7d0] sm:$0xff]
          %v920 = vld [vmem:[%s312 + $0x7d8] sm:$0xff]
          %v921 = vld [vmem:[%s312 + $0x7e0] sm:$0xff]
          %v922 = vld [vmem:[%s312 + $0x7e8] sm:$0xff]
          %v923 = vld [vmem:[%s312 + $0x7f0] sm:$0xff]
          %v924 = vld [vmem:[%s312 + $0x7f8] sm:$0xff]
          %v925 = vld [vmem:[%s312 + $0x800] sm:$0xff]
          %v926 = vld [vmem:[%s312 + $0x808] sm:$0xff]
          %v927 = vld [vmem:[%s312 + $0x810] sm:$0xff]
          %v928 = vld [vmem:[%s312 + $0x818] sm:$0xff]
          %v929 = vld [vmem:[%s312 + $0x820] sm:$0xff]
          %v930 = vld [vmem:[%s312 + $0x828] sm:$0xff]
          %v931 = vld [vmem:[%s312 + $0x830] sm:$0xff]
          %v932 = vld [vmem:[%s312 + $0x838] sm:$0xff]
          %v933 = vld [vmem:[%s312 + $0x840] sm:$0xff]
          %v934 = vld [vmem:[%s312 + $0x848] sm:$0xff]
          %v935 = vld [vmem:[%s312 + $0x850] sm:$0xff]
          %v936 = vld [vmem:[%s312 + $0x858] sm:$0xff]
          %v937 = vld [vmem:[%s312 + $0x860] sm:$0xff]
          %v938 = vld [vmem:[%s312 + $0x868] sm:$0xff]
          %v939 = vld [vmem:[%s312 + $0x870] sm:$0xff]
          %v940 = vld [vmem:[%s312 + $0x878] sm:$0xff]
          %v941 = vld [vmem:[%s312 + $0x880] sm:$0xff]
          %v942 = vld [vmem:[%s312 + $0x888] sm:$0xff]
          %v943 = vld [vmem:[%s312 + $0x890] sm:$0xff]
          %v944 = vld [vmem:[%s312 + $0x898] sm:$0xff]
          %v945 = vld [vmem:[%s312 + $0x8a0] sm:$0xff]
          %v946 = vld [vmem:[%s312 + $0x8a8] sm:$0xff]
          %v947 = vld [vmem:[%s312 + $0x8b0] sm:$0xff]
          %v948 = vld [vmem:[%s312 + $0x8b8] sm:$0xff]
          %v949 = vld [vmem:[%s312 + $0x8c0] sm:$0xff]
          %v950 = vld [vmem:[%s312 + $0x8c8] sm:$0xff]
          %v951 = vld [vmem:[%s312 + $0x8d0] sm:$0xff]
          %v952 = vld [vmem:[%s312 + $0x8d8] sm:$0xff]
          %v953 = vld [vmem:[%s312 + $0x8e0] sm:$0xff]
          %v954 = vld [vmem:[%s312 + $0x8e8] sm:$0xff]
          %v955 = vld [vmem:[%s312 + $0x8f0] sm:$0xff]
          %v956 = vld [vmem:[%s312 + $0x8f8] sm:$0xff]
          %v1245 = vunpack.c.l.b16 %v669
          %v1246 = vunpack.c.h.b16 %v669
          %v1247 = vunpack.c.l.b16 %v670
          %v1248 = vunpack.c.h.b16 %v670
          %v1249 = vunpack.c.l.b16 %v671
          %v1250 = vunpack.c.h.b16 %v671
          %v1251 = vunpack.c.l.b16 %v672
          %v1252 = vunpack.c.h.b16 %v672
          %v1253 = vunpack.c.l.b16 %v673
          %v1254 = vunpack.c.h.b16 %v673
          %v1255 = vunpack.c.l.b16 %v674
          %v1256 = vunpack.c.h.b16 %v674
          %v1257 = vunpack.c.l.b16 %v675
          %v1258 = vunpack.c.h.b16 %v675
          %v1259 = vunpack.c.l.b16 %v676
          %v1260 = vunpack.c.h.b16 %v676
          %v1261 = vunpack.c.l.b16 %v677
          %v1262 = vunpack.c.h.b16 %v677
          %v1263 = vunpack.c.l.b16 %v678
          %v1264 = vunpack.c.h.b16 %v678
          %v1265 = vunpack.c.l.b16 %v679
          %v1266 = vunpack.c.h.b16 %v679
          %v1267 = vunpack.c.l.b16 %v680
          %v1268 = vunpack.c.h.b16 %v680
          %v1269 = vunpack.c.l.b16 %v681
          %v1270 = vunpack.c.h.b16 %v681
          %v1271 = vunpack.c.l.b16 %v682
          %v1272 = vunpack.c.h.b16 %v682
          %v1273 = vunpack.c.l.b16 %v683
          %v1274 = vunpack.c.h.b16 %v683
          %v1275 = vunpack.c.l.b16 %v684
          %v1276 = vunpack.c.h.b16 %v684
          %v1277 = vunpack.c.l.b16 %v685
          %v1278 = vunpack.c.h.b16 %v685
          %v1279 = vunpack.c.l.b16 %v686
          %v1280 = vunpack.c.h.b16 %v686
          %v1281 = vunpack.c.l.b16 %v687
          %v1282 = vunpack.c.h.b16 %v687
          %v1283 = vunpack.c.l.b16 %v688
          %v1284 = vunpack.c.h.b16 %v688
          %v1285 = vunpack.c.l.b16 %v689
          %v1286 = vunpack.c.h.b16 %v689
          %v1287 = vunpack.c.l.b16 %v690
          %v1288 = vunpack.c.h.b16 %v690
          %v1289 = vunpack.c.l.b16 %v691
          %v1290 = vunpack.c.h.b16 %v691
          %v1291 = vunpack.c.l.b16 %v692
          %v1292 = vunpack.c.h.b16 %v692
          %v1293 = vunpack.c.l.b16 %v693
          %v1294 = vunpack.c.h.b16 %v693
          %v1295 = vunpack.c.l.b16 %v694
          %v1296 = vunpack.c.h.b16 %v694
          %v1297 = vunpack.c.l.b16 %v695
          %v1298 = vunpack.c.h.b16 %v695
          %v1299 = vunpack.c.l.b16 %v696
          %v1300 = vunpack.c.h.b16 %v696
          %v1301 = vunpack.c.l.b16 %v697
          %v1302 = vunpack.c.h.b16 %v697
          %v1303 = vunpack.c.l.b16 %v698
          %v1304 = vunpack.c.h.b16 %v698
          %v1305 = vunpack.c.l.b16 %v699
          %v1306 = vunpack.c.h.b16 %v699
          %v1307 = vunpack.c.l.b16 %v700
          %v1308 = vunpack.c.h.b16 %v700
          %v1309 = vunpack.c.l.b16 %v701
          %v1310 = vunpack.c.h.b16 %v701
          %v1311 = vunpack.c.l.b16 %v702
          %v1312 = vunpack.c.h.b16 %v702
          %v1313 = vunpack.c.l.b16 %v703
          %v1314 = vunpack.c.h.b16 %v703
          %v1315 = vunpack.c.l.b16 %v704
          %v1316 = vunpack.c.h.b16 %v704
          %v1317 = vunpack.c.l.b16 %v705
          %v1318 = vunpack.c.h.b16 %v705
          %v1319 = vunpack.c.l.b16 %v706
          %v1320 = vunpack.c.h.b16 %v706
          %v1321 = vunpack.c.l.b16 %v707
          %v1322 = vunpack.c.h.b16 %v707
          %v1323 = vunpack.c.l.b16 %v708
          %v1324 = vunpack.c.h.b16 %v708
          %v1325 = vunpack.c.l.b16 %v709
          %v1326 = vunpack.c.h.b16 %v709
          %v1327 = vunpack.c.l.b16 %v710
          %v1328 = vunpack.c.h.b16 %v710
          %v1329 = vunpack.c.l.b16 %v711
          %v1330 = vunpack.c.h.b16 %v711
          %v1331 = vunpack.c.l.b16 %v712
          %v1332 = vunpack.c.h.b16 %v712
          %v1333 = vunpack.c.l.b16 %v713
          %v1334 = vunpack.c.h.b16 %v713
          %v1335 = vunpack.c.l.b16 %v714
          %v1336 = vunpack.c.h.b16 %v714
          %v1337 = vunpack.c.l.b16 %v715
          %v1338 = vunpack.c.h.b16 %v715
          %v1339 = vunpack.c.l.b16 %v716
          %v1340 = vunpack.c.h.b16 %v716
          %v1341 = vunpack.c.l.b16 %v717
          %v1342 = vunpack.c.h.b16 %v717
          %v1343 = vunpack.c.l.b16 %v718
          %v1344 = vunpack.c.h.b16 %v718
          %v1345 = vunpack.c.l.b16 %v719
          %v1346 = vunpack.c.h.b16 %v719
          %v1347 = vunpack.c.l.b16 %v720
          %v1348 = vunpack.c.h.b16 %v720
          %v1349 = vunpack.c.l.b16 %v721
          %v1350 = vunpack.c.h.b16 %v721
          %v1351 = vunpack.c.l.b16 %v722
          %v1352 = vunpack.c.h.b16 %v722
          %v1353 = vunpack.c.l.b16 %v723
          %v1354 = vunpack.c.h.b16 %v723
          %v1355 = vunpack.c.l.b16 %v724
          %v1356 = vunpack.c.h.b16 %v724
          %v1357 = vunpack.c.l.b16 %v725
          %v1358 = vunpack.c.h.b16 %v725
          %v1359 = vunpack.c.l.b16 %v726
          %v1360 = vunpack.c.h.b16 %v726
          %v1361 = vunpack.c.l.b16 %v727
          %v1362 = vunpack.c.h.b16 %v727
          %v1363 = vunpack.c.l.b16 %v728
          %v1364 = vunpack.c.h.b16 %v728
          %v1365 = vunpack.c.l.b16 %v729
          %v1366 = vunpack.c.h.b16 %v729
          %v1367 = vunpack.c.l.b16 %v730
          %v1368 = vunpack.c.h.b16 %v730
          %v1369 = vunpack.c.l.b16 %v731
          %v1370 = vunpack.c.h.b16 %v731
          %v1371 = vunpack.c.l.b16 %v732
          %v1372 = vunpack.c.h.b16 %v732
          %v1373 = vunpack.c.l.b16 %v733
          %v1374 = vunpack.c.h.b16 %v733
          %v1375 = vunpack.c.l.b16 %v734
          %v1376 = vunpack.c.h.b16 %v734
          %v1377 = vunpack.c.l.b16 %v735
          %v1378 = vunpack.c.h.b16 %v735
          %v1379 = vunpack.c.l.b16 %v736
          %v1380 = vunpack.c.h.b16 %v736
          %v1381 = vunpack.c.l.b16 %v737
          %v1382 = vunpack.c.h.b16 %v737
          %v1383 = vunpack.c.l.b16 %v738
          %v1384 = vunpack.c.h.b16 %v738
          %v1385 = vunpack.c.l.b16 %v739
          %v1386 = vunpack.c.h.b16 %v739
          %v1387 = vunpack.c.l.b16 %v740
          %v1388 = vunpack.c.h.b16 %v740
          %v1389 = vunpack.c.l.b16 %v741
          %v1390 = vunpack.c.h.b16 %v741
          %v1391 = vunpack.c.l.b16 %v742
          %v1392 = vunpack.c.h.b16 %v742
          %v1393 = vunpack.c.l.b16 %v743
          %v1394 = vunpack.c.h.b16 %v743
          %v1395 = vunpack.c.l.b16 %v744
          %v1396 = vunpack.c.h.b16 %v744
          %v1397 = vunpack.c.l.b16 %v745
          %v1398 = vunpack.c.h.b16 %v745
          %v1399 = vunpack.c.l.b16 %v746
          %v1400 = vunpack.c.h.b16 %v746
          %v1401 = vunpack.c.l.b16 %v747
          %v1402 = vunpack.c.h.b16 %v747
          %v1403 = vunpack.c.l.b16 %v748
          %v1404 = vunpack.c.h.b16 %v748
          %v1405 = vunpack.c.l.b16 %v749
          %v1406 = vunpack.c.h.b16 %v749
          %v1407 = vunpack.c.l.b16 %v750
          %v1408 = vunpack.c.h.b16 %v750
          %v1409 = vunpack.c.l.b16 %v751
          %v1410 = vunpack.c.h.b16 %v751
          %v1411 = vunpack.c.l.b16 %v752
          %v1412 = vunpack.c.h.b16 %v752
          %v1413 = vunpack.c.l.b16 %v753
          %v1414 = vunpack.c.h.b16 %v753
          %v1415 = vunpack.c.l.b16 %v754
          %v1416 = vunpack.c.h.b16 %v754
          %v1417 = vunpack.c.l.b16 %v755
          %v1418 = vunpack.c.h.b16 %v755
          %v1419 = vunpack.c.l.b16 %v756
          %v1420 = vunpack.c.h.b16 %v756
          %v1421 = vunpack.c.l.b16 %v757
          %v1422 = vunpack.c.h.b16 %v757
          %v1423 = vunpack.c.l.b16 %v758
          %v1424 = vunpack.c.h.b16 %v758
          %v1425 = vunpack.c.l.b16 %v759
          %v1426 = vunpack.c.h.b16 %v759
          %v1427 = vunpack.c.l.b16 %v760
          %v1428 = vunpack.c.h.b16 %v760
          %v1429 = vunpack.c.l.b16 %v761
          %v1430 = vunpack.c.h.b16 %v761
          %v1431 = vunpack.c.l.b16 %v762
          %v1432 = vunpack.c.h.b16 %v762
          %v1433 = vunpack.c.l.b16 %v763
          %v1434 = vunpack.c.h.b16 %v763
          %v1435 = vunpack.c.l.b16 %v764
          %v1436 = vunpack.c.h.b16 %v764
          %v1437 = vunpack.c.l.b16 %v765
          %v1438 = vunpack.c.h.b16 %v765
          %v1439 = vunpack.c.l.b16 %v766
          %v1440 = vunpack.c.h.b16 %v766
          %v1441 = vunpack.c.l.b16 %v767
          %v1442 = vunpack.c.h.b16 %v767
          %v1443 = vunpack.c.l.b16 %v768
          %v1444 = vunpack.c.h.b16 %v768
          %v1445 = vunpack.c.l.b16 %v769
          %v1446 = vunpack.c.h.b16 %v769
          %v1447 = vunpack.c.l.b16 %v770
          %v1448 = vunpack.c.h.b16 %v770
          %v1449 = vunpack.c.l.b16 %v771
          %v1450 = vunpack.c.h.b16 %v771
          %v1451 = vunpack.c.l.b16 %v772
          %v1452 = vunpack.c.h.b16 %v772
          %v1453 = vunpack.c.l.b16 %v773
          %v1454 = vunpack.c.h.b16 %v773
          %v1455 = vunpack.c.l.b16 %v774
          %v1456 = vunpack.c.h.b16 %v774
          %v1457 = vunpack.c.l.b16 %v775
          %v1458 = vunpack.c.h.b16 %v775
          %v1459 = vunpack.c.l.b16 %v776
          %v1460 = vunpack.c.h.b16 %v776
          %v1461 = vunpack.c.l.b16 %v777
          %v1462 = vunpack.c.h.b16 %v777
          %v1463 = vunpack.c.l.b16 %v778
          %v1464 = vunpack.c.h.b16 %v778
          %v1465 = vunpack.c.l.b16 %v779
          %v1466 = vunpack.c.h.b16 %v779
          %v1467 = vunpack.c.l.b16 %v780
          %v1468 = vunpack.c.h.b16 %v780
          %v1469 = vunpack.c.l.b16 %v781
          %v1470 = vunpack.c.h.b16 %v781
          %v1471 = vunpack.c.l.b16 %v782
          %v1472 = vunpack.c.h.b16 %v782
          %v1473 = vunpack.c.l.b16 %v783
          %v1474 = vunpack.c.h.b16 %v783
          %v1475 = vunpack.c.l.b16 %v784
          %v1476 = vunpack.c.h.b16 %v784
          %v1477 = vunpack.c.l.b16 %v785
          %v1478 = vunpack.c.h.b16 %v785
          %v1479 = vunpack.c.l.b16 %v786
          %v1480 = vunpack.c.h.b16 %v786
          %v1481 = vunpack.c.l.b16 %v787
          %v1482 = vunpack.c.h.b16 %v787
          %v1483 = vunpack.c.l.b16 %v788
          %v1484 = vunpack.c.h.b16 %v788
          %v1485 = vunpack.c.l.b16 %v789
          %v1486 = vunpack.c.h.b16 %v789
          %v1487 = vunpack.c.l.b16 %v790
          %v1488 = vunpack.c.h.b16 %v790
          %v1489 = vunpack.c.l.b16 %v791
          %v1490 = vunpack.c.h.b16 %v791
          %v1491 = vunpack.c.l.b16 %v792
          %v1492 = vunpack.c.h.b16 %v792
          %v1493 = vunpack.c.l.b16 %v793
          %v1494 = vunpack.c.h.b16 %v793
          %v1495 = vunpack.c.l.b16 %v794
          %v1496 = vunpack.c.h.b16 %v794
          %v1497 = vunpack.c.l.b16 %v795
          %v1498 = vunpack.c.h.b16 %v795
          %v1499 = vunpack.c.l.b16 %v796
          %v1500 = vunpack.c.h.b16 %v796
          %v1501 = vunpack.c.l.b16 %v797
          %v1502 = vunpack.c.h.b16 %v797
          %v1503 = vunpack.c.l.b16 %v798
          %v1504 = vunpack.c.h.b16 %v798
          %v1505 = vunpack.c.l.b16 %v799
          %v1506 = vunpack.c.h.b16 %v799
          %v1507 = vunpack.c.l.b16 %v800
          %v1508 = vunpack.c.h.b16 %v800
          %v1509 = vunpack.c.l.b16 %v801
          %v1510 = vunpack.c.h.b16 %v801
          %v1511 = vunpack.c.l.b16 %v802
          %v1512 = vunpack.c.h.b16 %v802
          %v1513 = vunpack.c.l.b16 %v803
          %v1514 = vunpack.c.h.b16 %v803
          %v1515 = vunpack.c.l.b16 %v804
          %v1516 = vunpack.c.h.b16 %v804
          %v1517 = vunpack.c.l.b16 %v805
          %v1518 = vunpack.c.h.b16 %v805
          %v1519 = vunpack.c.l.b16 %v806
          %v1520 = vunpack.c.h.b16 %v806
          %v1521 = vunpack.c.l.b16 %v807
          %v1522 = vunpack.c.h.b16 %v807
          %v1523 = vunpack.c.l.b16 %v808
          %v1524 = vunpack.c.h.b16 %v808
          %v1525 = vunpack.c.l.b16 %v809
          %v1526 = vunpack.c.h.b16 %v809
          %v1527 = vunpack.c.l.b16 %v810
          %v1528 = vunpack.c.h.b16 %v810
          %v1529 = vunpack.c.l.b16 %v811
          %v1530 = vunpack.c.h.b16 %v811
          %v1531 = vunpack.c.l.b16 %v812
          %v1532 = vunpack.c.h.b16 %v812
          %v1533 = vunpack.c.l.b16 %v813
          %v1534 = vunpack.c.h.b16 %v813
          %v1535 = vunpack.c.l.b16 %v814
          %v1536 = vunpack.c.h.b16 %v814
          %v1537 = vunpack.c.l.b16 %v815
          %v1538 = vunpack.c.h.b16 %v815
          %v1539 = vunpack.c.l.b16 %v816
          %v1540 = vunpack.c.h.b16 %v816
          %v1541 = vunpack.c.l.b16 %v817
          %v1542 = vunpack.c.h.b16 %v817
          %v1543 = vunpack.c.l.b16 %v818
          %v1544 = vunpack.c.h.b16 %v818
          %v1545 = vunpack.c.l.b16 %v819
          %v1546 = vunpack.c.h.b16 %v819
          %v1547 = vunpack.c.l.b16 %v820
          %v1548 = vunpack.c.h.b16 %v820
          %v1549 = vunpack.c.l.b16 %v821
          %v1550 = vunpack.c.h.b16 %v821
          %v1551 = vunpack.c.l.b16 %v822
          %v1552 = vunpack.c.h.b16 %v822
          %v1553 = vunpack.c.l.b16 %v823
          %v1554 = vunpack.c.h.b16 %v823
          %v1555 = vunpack.c.l.b16 %v824
          %v1556 = vunpack.c.h.b16 %v824
          %v1557 = vunpack.c.l.b16 %v825
          %v1558 = vunpack.c.h.b16 %v825
          %v1559 = vunpack.c.l.b16 %v826
          %v1560 = vunpack.c.h.b16 %v826
          %v1561 = vunpack.c.l.b16 %v827
          %v1562 = vunpack.c.h.b16 %v827
          %v1563 = vunpack.c.l.b16 %v828
          %v1564 = vunpack.c.h.b16 %v828
          %v1565 = vunpack.c.l.b16 %v829
          %v1566 = vunpack.c.h.b16 %v829
          %v1567 = vunpack.c.l.b16 %v830
          %v1568 = vunpack.c.h.b16 %v830
          %v1569 = vunpack.c.l.b16 %v831
          %v1570 = vunpack.c.h.b16 %v831
          %v1571 = vunpack.c.l.b16 %v832
          %v1572 = vunpack.c.h.b16 %v832
          %v1573 = vunpack.c.l.b16 %v833
          %v1574 = vunpack.c.h.b16 %v833
          %v1575 = vunpack.c.l.b16 %v834
          %v1576 = vunpack.c.h.b16 %v834
          %v1577 = vunpack.c.l.b16 %v835
          %v1578 = vunpack.c.h.b16 %v835
          %v1579 = vunpack.c.l.b16 %v836
          %v1580 = vunpack.c.h.b16 %v836
          %v1581 = vunpack.c.l.b16 %v837
          %v1582 = vunpack.c.h.b16 %v837
          %v1583 = vunpack.c.l.b16 %v838
          %v1584 = vunpack.c.h.b16 %v838
          %v1585 = vunpack.c.l.b16 %v839
          %v1586 = vunpack.c.h.b16 %v839
          %v1587 = vunpack.c.l.b16 %v840
          %v1588 = vunpack.c.h.b16 %v840
          %v1589 = vunpack.c.l.b16 %v841
          %v1590 = vunpack.c.h.b16 %v841
          %v1591 = vunpack.c.l.b16 %v842
          %v1592 = vunpack.c.h.b16 %v842
          %v1593 = vunpack.c.l.b16 %v843
          %v1594 = vunpack.c.h.b16 %v843
          %v1595 = vunpack.c.l.b16 %v844
          %v1596 = vunpack.c.h.b16 %v844
          %v1597 = vunpack.c.l.b16 %v845
          %v1598 = vunpack.c.h.b16 %v845
          %v1599 = vunpack.c.l.b16 %v846
          %v1600 = vunpack.c.h.b16 %v846
          %v1601 = vunpack.c.l.b16 %v847
          %v1602 = vunpack.c.h.b16 %v847
          %v1603 = vunpack.c.l.b16 %v848
          %v1604 = vunpack.c.h.b16 %v848
          %v1605 = vunpack.c.l.b16 %v849
          %v1606 = vunpack.c.h.b16 %v849
          %v1607 = vunpack.c.l.b16 %v850
          %v1608 = vunpack.c.h.b16 %v850
          %v1609 = vunpack.c.l.b16 %v851
          %v1610 = vunpack.c.h.b16 %v851
          %v1611 = vunpack.c.l.b16 %v852
          %v1612 = vunpack.c.h.b16 %v852
          %v1613 = vunpack.c.l.b16 %v853
          %v1614 = vunpack.c.h.b16 %v853
          %v1615 = vunpack.c.l.b16 %v854
          %v1616 = vunpack.c.h.b16 %v854
          %v1617 = vunpack.c.l.b16 %v855
          %v1618 = vunpack.c.h.b16 %v855
          %v1619 = vunpack.c.l.b16 %v856
          %v1620 = vunpack.c.h.b16 %v856
          %v1621 = vunpack.c.l.b16 %v857
          %v1622 = vunpack.c.h.b16 %v857
          %v1623 = vunpack.c.l.b16 %v858
          %v1624 = vunpack.c.h.b16 %v858
          %v1625 = vunpack.c.l.b16 %v859
          %v1626 = vunpack.c.h.b16 %v859
          %v1627 = vunpack.c.l.b16 %v860
          %v1628 = vunpack.c.h.b16 %v860
          %v1629 = vunpack.c.l.b16 %v861
          %v1630 = vunpack.c.h.b16 %v861
          %v1631 = vunpack.c.l.b16 %v862
          %v1632 = vunpack.c.h.b16 %v862
          %v1633 = vunpack.c.l.b16 %v863
          %v1634 = vunpack.c.h.b16 %v863
          %v1635 = vunpack.c.l.b16 %v864
          %v1636 = vunpack.c.h.b16 %v864
          %v1637 = vunpack.c.l.b16 %v865
          %v1638 = vunpack.c.h.b16 %v865
          %v1639 = vunpack.c.l.b16 %v866
          %v1640 = vunpack.c.h.b16 %v866
          %v1641 = vunpack.c.l.b16 %v867
          %v1642 = vunpack.c.h.b16 %v867
          %v1643 = vunpack.c.l.b16 %v868
          %v1644 = vunpack.c.h.b16 %v868
          %v1645 = vunpack.c.l.b16 %v869
          %v1646 = vunpack.c.h.b16 %v869
          %v1647 = vunpack.c.l.b16 %v870
          %v1648 = vunpack.c.h.b16 %v870
          %v1649 = vunpack.c.l.b16 %v871
          %v1650 = vunpack.c.h.b16 %v871
          %v1651 = vunpack.c.l.b16 %v872
          %v1652 = vunpack.c.h.b16 %v872
          %v1653 = vunpack.c.l.b16 %v873
          %v1654 = vunpack.c.h.b16 %v873
          %v1655 = vunpack.c.l.b16 %v874
          %v1656 = vunpack.c.h.b16 %v874
          %v1657 = vunpack.c.l.b16 %v875
          %v1658 = vunpack.c.h.b16 %v875
          %v1659 = vunpack.c.l.b16 %v876
          %v1660 = vunpack.c.h.b16 %v876
          %v1661 = vunpack.c.l.b16 %v877
          %v1662 = vunpack.c.h.b16 %v877
          %v1663 = vunpack.c.l.b16 %v878
          %v1664 = vunpack.c.h.b16 %v878
          %v1665 = vunpack.c.l.b16 %v879
          %v1666 = vunpack.c.h.b16 %v879
          %v1667 = vunpack.c.l.b16 %v880
          %v1668 = vunpack.c.h.b16 %v880
          %v1669 = vunpack.c.l.b16 %v881
          %v1670 = vunpack.c.h.b16 %v881
          %v1671 = vunpack.c.l.b16 %v882
          %v1672 = vunpack.c.h.b16 %v882
          %v1673 = vunpack.c.l.b16 %v883
          %v1674 = vunpack.c.h.b16 %v883
          %v1675 = vunpack.c.l.b16 %v884
          %v1676 = vunpack.c.h.b16 %v884
          %v1677 = vunpack.c.l.b16 %v885
          %v1678 = vunpack.c.h.b16 %v885
          %v1679 = vunpack.c.l.b16 %v886
          %v1680 = vunpack.c.h.b16 %v886
          %v1681 = vunpack.c.l.b16 %v887
          %v1682 = vunpack.c.h.b16 %v887
          %v1683 = vunpack.c.l.b16 %v888
          %v1684 = vunpack.c.h.b16 %v888
          %v1685 = vunpack.c.l.b16 %v889
          %v1686 = vunpack.c.h.b16 %v889
          %v1687 = vunpack.c.l.b16 %v890
          %v1688 = vunpack.c.h.b16 %v890
          %v1689 = vunpack.c.l.b16 %v891
          %v1690 = vunpack.c.h.b16 %v891
          %v1691 = vunpack.c.l.b16 %v892
          %v1692 = vunpack.c.h.b16 %v892
          %v1693 = vunpack.c.l.b16 %v893
          %v1694 = vunpack.c.h.b16 %v893
          %v1695 = vunpack.c.l.b16 %v894
          %v1696 = vunpack.c.h.b16 %v894
          %v1697 = vunpack.c.l.b16 %v895
          %v1698 = vunpack.c.h.b16 %v895
          %v1699 = vunpack.c.l.b16 %v896
          %v1700 = vunpack.c.h.b16 %v896
          %v1701 = vunpack.c.l.b16 %v897
          %v1702 = vunpack.c.h.b16 %v897
          %v1703 = vunpack.c.l.b16 %v898
          %v1704 = vunpack.c.h.b16 %v898
          %v1705 = vunpack.c.l.b16 %v899
          %v1706 = vunpack.c.h.b16 %v899
          %v1707 = vunpack.c.l.b16 %v900
          %v1708 = vunpack.c.h.b16 %v900
          %v1709 = vunpack.c.l.b16 %v901
          %v1710 = vunpack.c.h.b16 %v901
          %v1711 = vunpack.c.l.b16 %v902
          %v1712 = vunpack.c.h.b16 %v902
          %v1713 = vunpack.c.l.b16 %v903
          %v1714 = vunpack.c.h.b16 %v903
          %v1715 = vunpack.c.l.b16 %v904
          %v1716 = vunpack.c.h.b16 %v904
          %v1717 = vunpack.c.l.b16 %v905
          %v1718 = vunpack.c.h.b16 %v905
          %v1719 = vunpack.c.l.b16 %v906
          %v1720 = vunpack.c.h.b16 %v906
          %v1721 = vunpack.c.l.b16 %v907
          %v1722 = vunpack.c.h.b16 %v907
          %v1723 = vunpack.c.l.b16 %v908
          %v1724 = vunpack.c.h.b16 %v908
          %v1725 = vunpack.c.l.b16 %v909
          %v1726 = vunpack.c.h.b16 %v909
          %v1727 = vunpack.c.l.b16 %v910
          %v1728 = vunpack.c.h.b16 %v910
          %v1729 = vunpack.c.l.b16 %v911
          %v1730 = vunpack.c.h.b16 %v911
          %v1731 = vunpack.c.l.b16 %v912
          %v1732 = vunpack.c.h.b16 %v912
          %v1733 = vunpack.c.l.b16 %v913
          %v1734 = vunpack.c.h.b16 %v913
          %v1735 = vunpack.c.l.b16 %v914
          %v1736 = vunpack.c.h.b16 %v914
          %v1737 = vunpack.c.l.b16 %v915
          %v1738 = vunpack.c.h.b16 %v915
          %v1739 = vunpack.c.l.b16 %v916
          %v1740 = vunpack.c.h.b16 %v916
          %v1741 = vunpack.c.l.b16 %v917
          %v1742 = vunpack.c.h.b16 %v917
          %v1743 = vunpack.c.l.b16 %v918
          %v1744 = vunpack.c.h.b16 %v918
          %v1745 = vunpack.c.l.b16 %v919
          %v1746 = vunpack.c.h.b16 %v919
          %v1747 = vunpack.c.l.b16 %v920
          %v1748 = vunpack.c.h.b16 %v920
          %v1749 = vunpack.c.l.b16 %v921
          %v1750 = vunpack.c.h.b16 %v921
          %v1751 = vunpack.c.l.b16 %v922
          %v1752 = vunpack.c.h.b16 %v922
          %v1753 = vunpack.c.l.b16 %v923
          %v1754 = vunpack.c.h.b16 %v923
          %v1755 = vunpack.c.l.b16 %v924
          %v1756 = vunpack.c.h.b16 %v924
          %v1757 = vunpack.c.l.b16 %v925
          %v1758 = vunpack.c.h.b16 %v925
          %v1759 = vunpack.c.l.b16 %v926
          %v1760 = vunpack.c.h.b16 %v926
          %v1761 = vunpack.c.l.b16 %v927
          %v1762 = vunpack.c.h.b16 %v927
          %v1763 = vunpack.c.l.b16 %v928
          %v1764 = vunpack.c.h.b16 %v928
          %v1765 = vunpack.c.l.b16 %v929
          %v1766 = vunpack.c.h.b16 %v929
          %v1767 = vunpack.c.l.b16 %v930
          %v1768 = vunpack.c.h.b16 %v930
          %v1769 = vunpack.c.l.b16 %v931
          %v1770 = vunpack.c.h.b16 %v931
          %v1771 = vunpack.c.l.b16 %v932
          %v1772 = vunpack.c.h.b16 %v932
          %v1773 = vunpack.c.l.b16 %v933
          %v1774 = vunpack.c.h.b16 %v933
          %v1775 = vunpack.c.l.b16 %v934
          %v1776 = vunpack.c.h.b16 %v934
          %v1777 = vunpack.c.l.b16 %v935
          %v1778 = vunpack.c.h.b16 %v935
          %v1779 = vunpack.c.l.b16 %v936
          %v1780 = vunpack.c.h.b16 %v936
          %v1781 = vunpack.c.l.b16 %v937
          %v1782 = vunpack.c.h.b16 %v937
          %v1783 = vunpack.c.l.b16 %v938
          %v1784 = vunpack.c.h.b16 %v938
          %v1785 = vunpack.c.l.b16 %v939
          %v1786 = vunpack.c.h.b16 %v939
          %v1787 = vunpack.c.l.b16 %v940
          %v1788 = vunpack.c.h.b16 %v940
          %v1789 = vunpack.c.l.b16 %v941
          %v1790 = vunpack.c.h.b16 %v941
          %v1791 = vunpack.c.l.b16 %v942
          %v1792 = vunpack.c.h.b16 %v942
          %v1793 = vunpack.c.l.b16 %v943
          %v1794 = vunpack.c.h.b16 %v943
          %v1795 = vunpack.c.l.b16 %v944
          %v1796 = vunpack.c.h.b16 %v944
          %v1797 = vunpack.c.l.b16 %v945
          %v1798 = vunpack.c.h.b16 %v945
          %v1799 = vunpack.c.l.b16 %v946
          %v1800 = vunpack.c.h.b16 %v946
          %v1801 = vunpack.c.l.b16 %v947
          %v1802 = vunpack.c.h.b16 %v947
          %v1803 = vunpack.c.l.b16 %v948
          %v1804 = vunpack.c.h.b16 %v948
          %v1805 = vunpack.c.l.b16 %v949
          %v1806 = vunpack.c.h.b16 %v949
          %v1807 = vunpack.c.l.b16 %v950
          %v1808 = vunpack.c.h.b16 %v950
          %v1809 = vunpack.c.l.b16 %v951
          %v1810 = vunpack.c.h.b16 %v951
          %v1811 = vunpack.c.l.b16 %v952
          %v1812 = vunpack.c.h.b16 %v952
          %v1813 = vunpack.c.l.b16 %v953
          %v1814 = vunpack.c.h.b16 %v953
          %v1815 = vunpack.c.l.b16 %v954
          %v1816 = vunpack.c.h.b16 %v954
          %v1817 = vunpack.c.l.b16 %v955
          %v1818 = vunpack.c.h.b16 %v955
          %v1819 = vunpack.c.l.b16 %v956
          %v1820 = vunpack.c.h.b16 %v956
          %v1821 = vpack.c.b16 %v1251, %v1245
          %v1822 = vpack.c.b16 %v1252, %v1246
          %v1823 = vpack.c.b16 %v1253, %v1247
          %v1824 = vpack.c.b16 %v1254, %v1248
          %v1825 = vpack.c.b16 %v1255, %v1249
          %v1826 = vpack.c.b16 %v1256, %v1250
          %v1827 = vpack.c.b16 %v1263, %v1257
          %v1828 = vpack.c.b16 %v1264, %v1258
          %v1829 = vpack.c.b16 %v1265, %v1259
          %v1830 = vpack.c.b16 %v1266, %v1260
          %v1831 = vpack.c.b16 %v1267, %v1261
          %v1832 = vpack.c.b16 %v1268, %v1262
          %v1833 = vpack.c.b16 %v1275, %v1269
          %v1834 = vpack.c.b16 %v1276, %v1270
          %v1835 = vpack.c.b16 %v1277, %v1271
          %v1836 = vpack.c.b16 %v1278, %v1272
          %v1837 = vpack.c.b16 %v1279, %v1273
          %v1838 = vpack.c.b16 %v1280, %v1274
          %v1839 = vpack.c.b16 %v1287, %v1281
          %v1840 = vpack.c.b16 %v1288, %v1282
          %v1841 = vpack.c.b16 %v1289, %v1283
          %v1842 = vpack.c.b16 %v1290, %v1284
          %v1843 = vpack.c.b16 %v1291, %v1285
          %v1844 = vpack.c.b16 %v1292, %v1286
          %v1845 = vpack.c.b16 %v1299, %v1293
          %v1846 = vpack.c.b16 %v1300, %v1294
          %v1847 = vpack.c.b16 %v1301, %v1295
          %v1848 = vpack.c.b16 %v1302, %v1296
          %v1849 = vpack.c.b16 %v1303, %v1297
          %v1850 = vpack.c.b16 %v1304, %v1298
          %v1851 = vpack.c.b16 %v1311, %v1305
          %v1852 = vpack.c.b16 %v1312, %v1306
          %v1853 = vpack.c.b16 %v1313, %v1307
          %v1854 = vpack.c.b16 %v1314, %v1308
          %v1855 = vpack.c.b16 %v1315, %v1309
          %v1856 = vpack.c.b16 %v1316, %v1310
          %v1857 = vpack.c.b16 %v1323, %v1317
          %v1858 = vpack.c.b16 %v1324, %v1318
          %v1859 = vpack.c.b16 %v1325, %v1319
          %v1860 = vpack.c.b16 %v1326, %v1320
          %v1861 = vpack.c.b16 %v1327, %v1321
          %v1862 = vpack.c.b16 %v1328, %v1322
          %v1863 = vpack.c.b16 %v1335, %v1329
          %v1864 = vpack.c.b16 %v1336, %v1330
          %v1865 = vpack.c.b16 %v1337, %v1331
          %v1866 = vpack.c.b16 %v1338, %v1332
          %v1867 = vpack.c.b16 %v1339, %v1333
          %v1868 = vpack.c.b16 %v1340, %v1334
          %v1869 = vpack.c.b16 %v1347, %v1341
          %v1870 = vpack.c.b16 %v1348, %v1342
          %v1871 = vpack.c.b16 %v1349, %v1343
          %v1872 = vpack.c.b16 %v1350, %v1344
          %v1873 = vpack.c.b16 %v1351, %v1345
          %v1874 = vpack.c.b16 %v1352, %v1346
          %v1875 = vpack.c.b16 %v1359, %v1353
          %v1876 = vpack.c.b16 %v1360, %v1354
          %v1877 = vpack.c.b16 %v1361, %v1355
          %v1878 = vpack.c.b16 %v1362, %v1356
          %v1879 = vpack.c.b16 %v1363, %v1357
          %v1880 = vpack.c.b16 %v1364, %v1358
          %v1881 = vpack.c.b16 %v1371, %v1365
          %v1882 = vpack.c.b16 %v1372, %v1366
          %v1883 = vpack.c.b16 %v1373, %v1367
          %v1884 = vpack.c.b16 %v1374, %v1368
          %v1885 = vpack.c.b16 %v1375, %v1369
          %v1886 = vpack.c.b16 %v1376, %v1370
          %v1887 = vpack.c.b16 %v1383, %v1377
          %v1888 = vpack.c.b16 %v1384, %v1378
          %v1889 = vpack.c.b16 %v1385, %v1379
          %v1890 = vpack.c.b16 %v1386, %v1380
          %v1891 = vpack.c.b16 %v1387, %v1381
          %v1892 = vpack.c.b16 %v1388, %v1382
          %v1893 = vpack.c.b16 %v1395, %v1389
          %v1894 = vpack.c.b16 %v1396, %v1390
          %v1895 = vpack.c.b16 %v1397, %v1391
          %v1896 = vpack.c.b16 %v1398, %v1392
          %v1897 = vpack.c.b16 %v1399, %v1393
          %v1898 = vpack.c.b16 %v1400, %v1394
          %v1899 = vpack.c.b16 %v1407, %v1401
          %v1900 = vpack.c.b16 %v1408, %v1402
          %v1901 = vpack.c.b16 %v1409, %v1403
          %v1902 = vpack.c.b16 %v1410, %v1404
          %v1903 = vpack.c.b16 %v1411, %v1405
          %v1904 = vpack.c.b16 %v1412, %v1406
          %v1905 = vpack.c.b16 %v1419, %v1413
          %v1906 = vpack.c.b16 %v1420, %v1414
          %v1907 = vpack.c.b16 %v1421, %v1415
          %v1908 = vpack.c.b16 %v1422, %v1416
          %v1909 = vpack.c.b16 %v1423, %v1417
          %v1910 = vpack.c.b16 %v1424, %v1418
          %v1911 = vpack.c.b16 %v1431, %v1425
          %v1912 = vpack.c.b16 %v1432, %v1426
          %v1913 = vpack.c.b16 %v1433, %v1427
          %v1914 = vpack.c.b16 %v1434, %v1428
          %v1915 = vpack.c.b16 %v1435, %v1429
          %v1916 = vpack.c.b16 %v1436, %v1430
          %v1917 = vpack.c.b16 %v1443, %v1437
          %v1918 = vpack.c.b16 %v1444, %v1438
          %v1919 = vpack.c.b16 %v1445, %v1439
          %v1920 = vpack.c.b16 %v1446, %v1440
          %v1921 = vpack.c.b16 %v1447, %v1441
          %v1922 = vpack.c.b16 %v1448, %v1442
          %v1923 = vpack.c.b16 %v1455, %v1449
          %v1924 = vpack.c.b16 %v1456, %v1450
          %v1925 = vpack.c.b16 %v1457, %v1451
          %v1926 = vpack.c.b16 %v1458, %v1452
          %v1927 = vpack.c.b16 %v1459, %v1453
          %v1928 = vpack.c.b16 %v1460, %v1454
          %v1929 = vpack.c.b16 %v1467, %v1461
          %v1930 = vpack.c.b16 %v1468, %v1462
          %v1931 = vpack.c.b16 %v1469, %v1463
          %v1932 = vpack.c.b16 %v1470, %v1464
          %v1933 = vpack.c.b16 %v1471, %v1465
          %v1934 = vpack.c.b16 %v1472, %v1466
          %v1935 = vpack.c.b16 %v1479, %v1473
          %v1936 = vpack.c.b16 %v1480, %v1474
          %v1937 = vpack.c.b16 %v1481, %v1475
          %v1938 = vpack.c.b16 %v1482, %v1476
          %v1939 = vpack.c.b16 %v1483, %v1477
          %v1940 = vpack.c.b16 %v1484, %v1478
          %v1941 = vpack.c.b16 %v1491, %v1485
          %v1942 = vpack.c.b16 %v1492, %v1486
          %v1943 = vpack.c.b16 %v1493, %v1487
          %v1944 = vpack.c.b16 %v1494, %v1488
          %v1945 = vpack.c.b16 %v1495, %v1489
          %v1946 = vpack.c.b16 %v1496, %v1490
          %v1947 = vpack.c.b16 %v1503, %v1497
          %v1948 = vpack.c.b16 %v1504, %v1498
          %v1949 = vpack.c.b16 %v1505, %v1499
          %v1950 = vpack.c.b16 %v1506, %v1500
          %v1951 = vpack.c.b16 %v1507, %v1501
          %v1952 = vpack.c.b16 %v1508, %v1502
          %v1953 = vpack.c.b16 %v1515, %v1509
          %v1954 = vpack.c.b16 %v1516, %v1510
          %v1955 = vpack.c.b16 %v1517, %v1511
          %v1956 = vpack.c.b16 %v1518, %v1512
          %v1957 = vpack.c.b16 %v1519, %v1513
          %v1958 = vpack.c.b16 %v1520, %v1514
          %v1959 = vpack.c.b16 %v1527, %v1521
          %v1960 = vpack.c.b16 %v1528, %v1522
          %v1961 = vpack.c.b16 %v1529, %v1523
          %v1962 = vpack.c.b16 %v1530, %v1524
          %v1963 = vpack.c.b16 %v1531, %v1525
          %v1964 = vpack.c.b16 %v1532, %v1526
          %v1965 = vpack.c.b16 %v1539, %v1533
          %v1966 = vpack.c.b16 %v1540, %v1534
          %v1967 = vpack.c.b16 %v1541, %v1535
          %v1968 = vpack.c.b16 %v1542, %v1536
          %v1969 = vpack.c.b16 %v1543, %v1537
          %v1970 = vpack.c.b16 %v1544, %v1538
          %v1971 = vpack.c.b16 %v1551, %v1545
          %v1972 = vpack.c.b16 %v1552, %v1546
          %v1973 = vpack.c.b16 %v1553, %v1547
          %v1974 = vpack.c.b16 %v1554, %v1548
          %v1975 = vpack.c.b16 %v1555, %v1549
          %v1976 = vpack.c.b16 %v1556, %v1550
          %v1977 = vpack.c.b16 %v1563, %v1557
          %v1978 = vpack.c.b16 %v1564, %v1558
          %v1979 = vpack.c.b16 %v1565, %v1559
          %v1980 = vpack.c.b16 %v1566, %v1560
          %v1981 = vpack.c.b16 %v1567, %v1561
          %v1982 = vpack.c.b16 %v1568, %v1562
          %v1983 = vpack.c.b16 %v1575, %v1569
          %v1984 = vpack.c.b16 %v1576, %v1570
          %v1985 = vpack.c.b16 %v1577, %v1571
          %v1986 = vpack.c.b16 %v1578, %v1572
          %v1987 = vpack.c.b16 %v1579, %v1573
          %v1988 = vpack.c.b16 %v1580, %v1574
          %v1989 = vpack.c.b16 %v1587, %v1581
          %v1990 = vpack.c.b16 %v1588, %v1582
          %v1991 = vpack.c.b16 %v1589, %v1583
          %v1992 = vpack.c.b16 %v1590, %v1584
          %v1993 = vpack.c.b16 %v1591, %v1585
          %v1994 = vpack.c.b16 %v1592, %v1586
          %v1995 = vpack.c.b16 %v1599, %v1593
          %v1996 = vpack.c.b16 %v1600, %v1594
          %v1997 = vpack.c.b16 %v1601, %v1595
          %v1998 = vpack.c.b16 %v1602, %v1596
          %v1999 = vpack.c.b16 %v1603, %v1597
          %v2000 = vpack.c.b16 %v1604, %v1598
          %v2001 = vpack.c.b16 %v1611, %v1605
          %v2002 = vpack.c.b16 %v1612, %v1606
          %v2003 = vpack.c.b16 %v1613, %v1607
          %v2004 = vpack.c.b16 %v1614, %v1608
          %v2005 = vpack.c.b16 %v1615, %v1609
          %v2006 = vpack.c.b16 %v1616, %v1610
          %v2007 = vpack.c.b16 %v1623, %v1617
          %v2008 = vpack.c.b16 %v1624, %v1618
          %v2009 = vpack.c.b16 %v1625, %v1619
          %v2010 = vpack.c.b16 %v1626, %v1620
          %v2011 = vpack.c.b16 %v1627, %v1621
          %v2012 = vpack.c.b16 %v1628, %v1622
          %v2013 = vpack.c.b16 %v1635, %v1629
          %v2014 = vpack.c.b16 %v1636, %v1630
          %v2015 = vpack.c.b16 %v1637, %v1631
          %v2016 = vpack.c.b16 %v1638, %v1632
          %v2017 = vpack.c.b16 %v1639, %v1633
          %v2018 = vpack.c.b16 %v1640, %v1634
          %v2019 = vpack.c.b16 %v1647, %v1641
          %v2020 = vpack.c.b16 %v1648, %v1642
          %v2021 = vpack.c.b16 %v1649, %v1643
          %v2022 = vpack.c.b16 %v1650, %v1644
          %v2023 = vpack.c.b16 %v1651, %v1645
          %v2024 = vpack.c.b16 %v1652, %v1646
          %v2025 = vpack.c.b16 %v1659, %v1653
          %v2026 = vpack.c.b16 %v1660, %v1654
          %v2027 = vpack.c.b16 %v1661, %v1655
          %v2028 = vpack.c.b16 %v1662, %v1656
          %v2029 = vpack.c.b16 %v1663, %v1657
          %v2030 = vpack.c.b16 %v1664, %v1658
          %v2031 = vpack.c.b16 %v1671, %v1665
          %v2032 = vpack.c.b16 %v1672, %v1666
          %v2033 = vpack.c.b16 %v1673, %v1667
          %v2034 = vpack.c.b16 %v1674, %v1668
          %v2035 = vpack.c.b16 %v1675, %v1669
          %v2036 = vpack.c.b16 %v1676, %v1670
          %v2037 = vpack.c.b16 %v1683, %v1677
          %v2038 = vpack.c.b16 %v1684, %v1678
          %v2039 = vpack.c.b16 %v1685, %v1679
          %v2040 = vpack.c.b16 %v1686, %v1680
          %v2041 = vpack.c.b16 %v1687, %v1681
          %v2042 = vpack.c.b16 %v1688, %v1682
          %v2043 = vpack.c.b16 %v1695, %v1689
          %v2044 = vpack.c.b16 %v1696, %v1690
          %v2045 = vpack.c.b16 %v1697, %v1691
          %v2046 = vpack.c.b16 %v1698, %v1692
          %v2047 = vpack.c.b16 %v1699, %v1693
          %v2048 = vpack.c.b16 %v1700, %v1694
          %v2049 = vpack.c.b16 %v1707, %v1701
          %v2050 = vpack.c.b16 %v1708, %v1702
          %v2051 = vpack.c.b16 %v1709, %v1703
          %v2052 = vpack.c.b16 %v1710, %v1704
          %v2053 = vpack.c.b16 %v1711, %v1705
          %v2054 = vpack.c.b16 %v1712, %v1706
          %v2055 = vpack.c.b16 %v1719, %v1713
          %v2056 = vpack.c.b16 %v1720, %v1714
          %v2057 = vpack.c.b16 %v1721, %v1715
          %v2058 = vpack.c.b16 %v1722, %v1716
          %v2059 = vpack.c.b16 %v1723, %v1717
          %v2060 = vpack.c.b16 %v1724, %v1718
          %v2061 = vpack.c.b16 %v1731, %v1725
          %v2062 = vpack.c.b16 %v1732, %v1726
          %v2063 = vpack.c.b16 %v1733, %v1727
          %v2064 = vpack.c.b16 %v1734, %v1728
          %v2065 = vpack.c.b16 %v1735, %v1729
          %v2066 = vpack.c.b16 %v1736, %v1730
          %v2067 = vpack.c.b16 %v1743, %v1737
          %v2068 = vpack.c.b16 %v1744, %v1738
          %v2069 = vpack.c.b16 %v1745, %v1739
          %v2070 = vpack.c.b16 %v1746, %v1740
          %v2071 = vpack.c.b16 %v1747, %v1741
          %v2072 = vpack.c.b16 %v1748, %v1742
          %v2073 = vpack.c.b16 %v1755, %v1749
          %v2074 = vpack.c.b16 %v1756, %v1750
          %v2075 = vpack.c.b16 %v1757, %v1751
          %v2076 = vpack.c.b16 %v1758, %v1752
          %v2077 = vpack.c.b16 %v1759, %v1753
          %v2078 = vpack.c.b16 %v1760, %v1754
          %v2079 = vpack.c.b16 %v1767, %v1761
          %v2080 = vpack.c.b16 %v1768, %v1762
          %v2081 = vpack.c.b16 %v1769, %v1763
          %v2082 = vpack.c.b16 %v1770, %v1764
          %v2083 = vpack.c.b16 %v1771, %v1765
          %v2084 = vpack.c.b16 %v1772, %v1766
          %v2085 = vpack.c.b16 %v1779, %v1773
          %v2086 = vpack.c.b16 %v1780, %v1774
          %v2087 = vpack.c.b16 %v1781, %v1775
          %v2088 = vpack.c.b16 %v1782, %v1776
          %v2089 = vpack.c.b16 %v1783, %v1777
          %v2090 = vpack.c.b16 %v1784, %v1778
          %v2091 = vpack.c.b16 %v1791, %v1785
          %v2092 = vpack.c.b16 %v1792, %v1786
          %v2093 = vpack.c.b16 %v1793, %v1787
          %v2094 = vpack.c.b16 %v1794, %v1788
          %v2095 = vpack.c.b16 %v1795, %v1789
          %v2096 = vpack.c.b16 %v1796, %v1790
          %v2097 = vpack.c.b16 %v1803, %v1797
          %v2098 = vpack.c.b16 %v1804, %v1798
          %v2099 = vpack.c.b16 %v1805, %v1799
          %v2100 = vpack.c.b16 %v1806, %v1800
          %v2101 = vpack.c.b16 %v1807, %v1801
          %v2102 = vpack.c.b16 %v1808, %v1802
          %v2103 = vpack.c.b16 %v1815, %v1809
          %v2104 = vpack.c.b16 %v1816, %v1810
          %v2105 = vpack.c.b16 %v1817, %v1811
          %v2106 = vpack.c.b16 %v1818, %v1812
          %v2107 = vpack.c.b16 %v1819, %v1813
          %v2108 = vpack.c.b16 %v1820, %v1814
          %2397 = vmatpush.bf16.msra.mxu0 %v1863
          %2398 = vmatpush.bf16.msra.mxu0 %v1857
          %2399 = vmatpush.bf16.msra.mxu0 %v1851
          %2400 = vmatpush.bf16.msra.mxu0 %v1845
          %2401 = vmatpush.bf16.msra.mxu0 %v1839
          %2402 = vmatpush.bf16.msra.mxu0 %v1833
          %2403 = vmatpush.bf16.msra.mxu0 %v1827
          %2404 = vmatpush.bf16.msra.mxu0 %v1821
          %2405 = vmatmul.bf16.gmra.mxu0 %v663
          %v2406 = vpop.f32.mrf.mxu0
          %v2407 = vadd.f32 0.0, %v2406
          %v2408 = vpop.f32.mrf.mxu0
          %2409 = vdwg.mxu0
          %2410 = vmatpush.bf16.msra.mxu0 %v1911
          %2411 = vmatpush.bf16.msra.mxu0 %v1905
          %2412 = vmatpush.bf16.msra.mxu0 %v1899
          %2413 = vmatpush.bf16.msra.mxu0 %v1893
          %2414 = vmatpush.bf16.msra.mxu0 %v1887
          %2415 = vmatpush.bf16.msra.mxu0 %v1881
          %2416 = vmatpush.bf16.msra.mxu0 %v1875
          %2417 = vmatpush.bf16.msra.mxu0 %v1869
          %2418 = vmatmul.bf16.gmra.mxu0 %v664
          %v2419 = vpop.f32.mrf.mxu0
          %v2420 = vadd.f32 %v2407, %v2419
          %v2421 = vpop.f32.mrf.mxu0
          %2422 = vdwg.mxu0
          %2423 = vmatpush.bf16.msra.mxu0 %v1959
          %2424 = vmatpush.bf16.msra.mxu0 %v1953
          %2425 = vmatpush.bf16.msra.mxu0 %v1947
          %2426 = vmatpush.bf16.msra.mxu0 %v1941
          %2427 = vmatpush.bf16.msra.mxu0 %v1935
          %2428 = vmatpush.bf16.msra.mxu0 %v1929
          %2429 = vmatpush.bf16.msra.mxu0 %v1923
          %2430 = vmatpush.bf16.msra.mxu0 %v1917
          %2431 = vmatmul.bf16.gmra.mxu0 %v665
          %v2432 = vpop.f32.mrf.mxu0
          %v2433 = vadd.f32 %v2420, %v2432
          %v2434 = vpop.f32.mrf.mxu0
          %2435 = vdwg.mxu0
          %2436 = vmatpush.bf16.msra.mxu0 %v2007
          %2437 = vmatpush.bf16.msra.mxu0 %v2001
          %2438 = vmatpush.bf16.msra.mxu0 %v1995
          %2439 = vmatpush.bf16.msra.mxu0 %v1989
          %2440 = vmatpush.bf16.msra.mxu0 %v1983
          %2441 = vmatpush.bf16.msra.mxu0 %v1977
          %2442 = vmatpush.bf16.msra.mxu0 %v1971
          %2443 = vmatpush.bf16.msra.mxu0 %v1965
          %2444 = vmatmul.bf16.gmra.mxu0 %v666
          %v2445 = vpop.f32.mrf.mxu0
          %v2446 = vadd.f32 %v2433, %v2445
          %v2447 = vpop.f32.mrf.mxu0
          %2448 = vdwg.mxu0
          %2449 = vmatpush.bf16.msra.mxu0 %v2055
          %2450 = vmatpush.bf16.msra.mxu0 %v2049
          %2451 = vmatpush.bf16.msra.mxu0 %v2043
          %2452 = vmatpush.bf16.msra.mxu0 %v2037
          %2453 = vmatpush.bf16.msra.mxu0 %v2031
          %2454 = vmatpush.bf16.msra.mxu0 %v2025
          %2455 = vmatpush.bf16.msra.mxu0 %v2019
          %2456 = vmatpush.bf16.msra.mxu0 %v2013
          %2457 = vmatmul.bf16.gmra.mxu0 %v667
          %v2458 = vpop.f32.mrf.mxu0
          %v2459 = vadd.f32 %v2446, %v2458
          %v2460 = vpop.f32.mrf.mxu0
          %2461 = vdwg.mxu0
          %2462 = vmatpush.bf16.msra.mxu0 %v2103
          %2463 = vmatpush.bf16.msra.mxu0 %v2097
          %2464 = vmatpush.bf16.msra.mxu0 %v2091
          %2465 = vmatpush.bf16.msra.mxu0 %v2085
          %2466 = vmatpush.bf16.msra.mxu0 %v2079
          %2467 = vmatpush.bf16.msra.mxu0 %v2073
          %2468 = vmatpush.bf16.msra.mxu0 %v2067
          %2469 = vmatpush.bf16.msra.mxu0 %v2061
          %2470 = vmatmul.bf16.gmra.mxu0 %v668
          %v2471 = vpop.f32.mrf.mxu0
          %v2472 = vadd.f32 %v2459, %v2471
          %v2473 = vpop.f32.mrf.mxu0
          %2474 = vdwg.mxu0
          %2475 = vmatpush.bf16.msra.mxu0 %v1864
          %2476 = vmatpush.bf16.msra.mxu0 %v1858
          %2477 = vmatpush.bf16.msra.mxu0 %v1852
          %2478 = vmatpush.bf16.msra.mxu0 %v1846
          %2479 = vmatpush.bf16.msra.mxu0 %v1840
          %2480 = vmatpush.bf16.msra.mxu0 %v1834
          %2481 = vmatpush.bf16.msra.mxu0 %v1828
          %2482 = vmatpush.bf16.msra.mxu0 %v1822
          %2483 = vmatmul.bf16.gmra.mxu0 %v663
          %v2484 = vpop.f32.mrf.mxu0
          %v2485 = vadd.f32 0.0, %v2484
          %v2486 = vpop.f32.mrf.mxu0
          %2487 = vdwg.mxu0
          %2488 = vmatpush.bf16.msra.mxu0 %v1912
          %2489 = vmatpush.bf16.msra.mxu0 %v1906
          %2490 = vmatpush.bf16.msra.mxu0 %v1900
          %2491 = vmatpush.bf16.msra.mxu0 %v1894
          %2492 = vmatpush.bf16.msra.mxu0 %v1888
          %2493 = vmatpush.bf16.msra.mxu0 %v1882
          %2494 = vmatpush.bf16.msra.mxu0 %v1876
          %2495 = vmatpush.bf16.msra.mxu0 %v1870
          %2496 = vmatmul.bf16.gmra.mxu0 %v664
          %v2497 = vpop.f32.mrf.mxu0
          %v2498 = vadd.f32 %v2485, %v2497
          %v2499 = vpop.f32.mrf.mxu0
          %2500 = vdwg.mxu0
          %2501 = vmatpush.bf16.msra.mxu0 %v1960
          %2502 = vmatpush.bf16.msra.mxu0 %v1954
          %2503 = vmatpush.bf16.msra.mxu0 %v1948
          %2504 = vmatpush.bf16.msra.mxu0 %v1942
          %2505 = vmatpush.bf16.msra.mxu0 %v1936
          %2506 = vmatpush.bf16.msra.mxu0 %v1930
          %2507 = vmatpush.bf16.msra.mxu0 %v1924
          %2508 = vmatpush.bf16.msra.mxu0 %v1918
          %2509 = vmatmul.bf16.gmra.mxu0 %v665
          %v2510 = vpop.f32.mrf.mxu0
          %v2511 = vadd.f32 %v2498, %v2510
          %v2512 = vpop.f32.mrf.mxu0
          %2513 = vdwg.mxu0
          %2514 = vmatpush.bf16.msra.mxu0 %v2008
          %2515 = vmatpush.bf16.msra.mxu0 %v2002
          %2516 = vmatpush.bf16.msra.mxu0 %v1996
          %2517 = vmatpush.bf16.msra.mxu0 %v1990
          %2518 = vmatpush.bf16.msra.mxu0 %v1984
          %2519 = vmatpush.bf16.msra.mxu0 %v1978
          %2520 = vmatpush.bf16.msra.mxu0 %v1972
          %2521 = vmatpush.bf16.msra.mxu0 %v1966
          %2522 = vmatmul.bf16.gmra.mxu0 %v666
          %v2523 = vpop.f32.mrf.mxu0
          %v2524 = vadd.f32 %v2511, %v2523
          %v2525 = vpop.f32.mrf.mxu0
          %2526 = vdwg.mxu0
          %2527 = vmatpush.bf16.msra.mxu0 %v2056
          %2528 = vmatpush.bf16.msra.mxu0 %v2050
          %2529 = vmatpush.bf16.msra.mxu0 %v2044
          %2530 = vmatpush.bf16.msra.mxu0 %v2038
          %2531 = vmatpush.bf16.msra.mxu0 %v2032
          %2532 = vmatpush.bf16.msra.mxu0 %v2026
          %2533 = vmatpush.bf16.msra.mxu0 %v2020
          %2534 = vmatpush.bf16.msra.mxu0 %v2014
          %2535 = vmatmul.bf16.gmra.mxu0 %v667
          %v2536 = vpop.f32.mrf.mxu0
          %v2537 = vadd.f32 %v2524, %v2536
          %v2538 = vpop.f32.mrf.mxu0
          %2539 = vdwg.mxu0
          %2540 = vmatpush.bf16.msra.mxu0 %v2104
          %2541 = vmatpush.bf16.msra.mxu0 %v2098
          %2542 = vmatpush.bf16.msra.mxu0 %v2092
          %2543 = vmatpush.bf16.msra.mxu0 %v2086
          %2544 = vmatpush.bf16.msra.mxu0 %v2080
          %2545 = vmatpush.bf16.msra.mxu0 %v2074
          %2546 = vmatpush.bf16.msra.mxu0 %v2068
          %2547 = vmatpush.bf16.msra.mxu0 %v2062
          %2548 = vmatmul.bf16.gmra.mxu0 %v668
          %v2549 = vpop.f32.mrf.mxu0
          %v2550 = vadd.f32 %v2537, %v2549
          %v2551 = vpop.f32.mrf.mxu0
          %2552 = vdwg.mxu0
          %2553 = vmatpush.bf16.msra.mxu0 %v1865
          %2554 = vmatpush.bf16.msra.mxu0 %v1859
          %2555 = vmatpush.bf16.msra.mxu0 %v1853
          %2556 = vmatpush.bf16.msra.mxu0 %v1847
          %2557 = vmatpush.bf16.msra.mxu0 %v1841
          %2558 = vmatpush.bf16.msra.mxu0 %v1835
          %2559 = vmatpush.bf16.msra.mxu0 %v1829
          %2560 = vmatpush.bf16.msra.mxu0 %v1823
          %2561 = vmatmul.bf16.gmra.mxu0 %v663
          %v2562 = vpop.f32.mrf.mxu0
          %v2563 = vadd.f32 0.0, %v2562
          %v2564 = vpop.f32.mrf.mxu0
          %2565 = vdwg.mxu0
          %2566 = vmatpush.bf16.msra.mxu0 %v1913
          %2567 = vmatpush.bf16.msra.mxu0 %v1907
          %2568 = vmatpush.bf16.msra.mxu0 %v1901
          %2569 = vmatpush.bf16.msra.mxu0 %v1895
          %2570 = vmatpush.bf16.msra.mxu0 %v1889
          %2571 = vmatpush.bf16.msra.mxu0 %v1883
          %2572 = vmatpush.bf16.msra.mxu0 %v1877
          %2573 = vmatpush.bf16.msra.mxu0 %v1871
          %2574 = vmatmul.bf16.gmra.mxu0 %v664
          %v2575 = vpop.f32.mrf.mxu0
          %v2576 = vadd.f32 %v2563, %v2575
          %v2577 = vpop.f32.mrf.mxu0
          %2578 = vdwg.mxu0
          %2579 = vmatpush.bf16.msra.mxu0 %v1961
          %2580 = vmatpush.bf16.msra.mxu0 %v1955
          %2581 = vmatpush.bf16.msra.mxu0 %v1949
          %2582 = vmatpush.bf16.msra.mxu0 %v1943
          %2583 = vmatpush.bf16.msra.mxu0 %v1937
          %2584 = vmatpush.bf16.msra.mxu0 %v1931
          %2585 = vmatpush.bf16.msra.mxu0 %v1925
          %2586 = vmatpush.bf16.msra.mxu0 %v1919
          %2587 = vmatmul.bf16.gmra.mxu0 %v665
          %v2588 = vpop.f32.mrf.mxu0
          %v2589 = vadd.f32 %v2576, %v2588
          %v2590 = vpop.f32.mrf.mxu0
          %2591 = vdwg.mxu0
          %2592 = vmatpush.bf16.msra.mxu0 %v2009
          %2593 = vmatpush.bf16.msra.mxu0 %v2003
          %2594 = vmatpush.bf16.msra.mxu0 %v1997
          %2595 = vmatpush.bf16.msra.mxu0 %v1991
          %2596 = vmatpush.bf16.msra.mxu0 %v1985
          %2597 = vmatpush.bf16.msra.mxu0 %v1979
          %2598 = vmatpush.bf16.msra.mxu0 %v1973
          %2599 = vmatpush.bf16.msra.mxu0 %v1967
          %2600 = vmatmul.bf16.gmra.mxu0 %v666
          %v2601 = vpop.f32.mrf.mxu0
          %v2602 = vadd.f32 %v2589, %v2601
          %v2603 = vpop.f32.mrf.mxu0
          %2604 = vdwg.mxu0
          %2605 = vmatpush.bf16.msra.mxu0 %v2057
          %2606 = vmatpush.bf16.msra.mxu0 %v2051
          %2607 = vmatpush.bf16.msra.mxu0 %v2045
          %2608 = vmatpush.bf16.msra.mxu0 %v2039
          %2609 = vmatpush.bf16.msra.mxu0 %v2033
          %2610 = vmatpush.bf16.msra.mxu0 %v2027
          %2611 = vmatpush.bf16.msra.mxu0 %v2021
          %2612 = vmatpush.bf16.msra.mxu0 %v2015
          %2613 = vmatmul.bf16.gmra.mxu0 %v667
          %v2614 = vpop.f32.mrf.mxu0
          %v2615 = vadd.f32 %v2602, %v2614
          %v2616 = vpop.f32.mrf.mxu0
          %2617 = vdwg.mxu0
          %2618 = vmatpush.bf16.msra.mxu0 %v2105
          %2619 = vmatpush.bf16.msra.mxu0 %v2099
          %2620 = vmatpush.bf16.msra.mxu0 %v2093
          %2621 = vmatpush.bf16.msra.mxu0 %v2087
          %2622 = vmatpush.bf16.msra.mxu0 %v2081
          %2623 = vmatpush.bf16.msra.mxu0 %v2075
          %2624 = vmatpush.bf16.msra.mxu0 %v2069
          %2625 = vmatpush.bf16.msra.mxu0 %v2063
          %2626 = vmatmul.bf16.gmra.mxu0 %v668
          %v2627 = vpop.f32.mrf.mxu0
          %v2628 = vadd.f32 %v2615, %v2627
          %v2629 = vpop.f32.mrf.mxu0
          %2630 = vdwg.mxu0
          %2631 = vmatpush.bf16.msra.mxu0 %v1866
          %2632 = vmatpush.bf16.msra.mxu0 %v1860
          %2633 = vmatpush.bf16.msra.mxu0 %v1854
          %2634 = vmatpush.bf16.msra.mxu0 %v1848
          %2635 = vmatpush.bf16.msra.mxu0 %v1842
          %2636 = vmatpush.bf16.msra.mxu0 %v1836
          %2637 = vmatpush.bf16.msra.mxu0 %v1830
          %2638 = vmatpush.bf16.msra.mxu0 %v1824
          %2639 = vmatmul.bf16.gmra.mxu0 %v663
          %v2640 = vpop.f32.mrf.mxu0
          %v2641 = vadd.f32 0.0, %v2640
          %v2642 = vpop.f32.mrf.mxu0
          %2643 = vdwg.mxu0
          %2644 = vmatpush.bf16.msra.mxu0 %v1914
          %2645 = vmatpush.bf16.msra.mxu0 %v1908
          %2646 = vmatpush.bf16.msra.mxu0 %v1902
          %2647 = vmatpush.bf16.msra.mxu0 %v1896
          %2648 = vmatpush.bf16.msra.mxu0 %v1890
          %2649 = vmatpush.bf16.msra.mxu0 %v1884
          %2650 = vmatpush.bf16.msra.mxu0 %v1878
          %2651 = vmatpush.bf16.msra.mxu0 %v1872
          %2652 = vmatmul.bf16.gmra.mxu0 %v664
          %v2653 = vpop.f32.mrf.mxu0
          %v2654 = vadd.f32 %v2641, %v2653
          %v2655 = vpop.f32.mrf.mxu0
          %2656 = vdwg.mxu0
          %2657 = vmatpush.bf16.msra.mxu0 %v1962
          %2658 = vmatpush.bf16.msra.mxu0 %v1956
          %2659 = vmatpush.bf16.msra.mxu0 %v1950
          %2660 = vmatpush.bf16.msra.mxu0 %v1944
          %2661 = vmatpush.bf16.msra.mxu0 %v1938
          %2662 = vmatpush.bf16.msra.mxu0 %v1932
          %2663 = vmatpush.bf16.msra.mxu0 %v1926
          %2664 = vmatpush.bf16.msra.mxu0 %v1920
          %2665 = vmatmul.bf16.gmra.mxu0 %v665
          %v2666 = vpop.f32.mrf.mxu0
          %v2667 = vadd.f32 %v2654, %v2666
          %v2668 = vpop.f32.mrf.mxu0
          %2669 = vdwg.mxu0
          %2670 = vmatpush.bf16.msra.mxu0 %v2010
          %2671 = vmatpush.bf16.msra.mxu0 %v2004
          %2672 = vmatpush.bf16.msra.mxu0 %v1998
          %2673 = vmatpush.bf16.msra.mxu0 %v1992
          %2674 = vmatpush.bf16.msra.mxu0 %v1986
          %2675 = vmatpush.bf16.msra.mxu0 %v1980
          %2676 = vmatpush.bf16.msra.mxu0 %v1974
          %2677 = vmatpush.bf16.msra.mxu0 %v1968
          %2678 = vmatmul.bf16.gmra.mxu0 %v666
          %v2679 = vpop.f32.mrf.mxu0
          %v2680 = vadd.f32 %v2667, %v2679
          %v2681 = vpop.f32.mrf.mxu0
          %2682 = vdwg.mxu0
          %2683 = vmatpush.bf16.msra.mxu0 %v2058
          %2684 = vmatpush.bf16.msra.mxu0 %v2052
          %2685 = vmatpush.bf16.msra.mxu0 %v2046
          %2686 = vmatpush.bf16.msra.mxu0 %v2040
          %2687 = vmatpush.bf16.msra.mxu0 %v2034
          %2688 = vmatpush.bf16.msra.mxu0 %v2028
          %2689 = vmatpush.bf16.msra.mxu0 %v2022
          %2690 = vmatpush.bf16.msra.mxu0 %v2016
          %2691 = vmatmul.bf16.gmra.mxu0 %v667
          %v2692 = vpop.f32.mrf.mxu0
          %v2693 = vadd.f32 %v2680, %v2692
          %v2694 = vpop.f32.mrf.mxu0
          %2695 = vdwg.mxu0
          %2696 = vmatpush.bf16.msra.mxu0 %v2106
          %2697 = vmatpush.bf16.msra.mxu0 %v2100
          %2698 = vmatpush.bf16.msra.mxu0 %v2094
          %2699 = vmatpush.bf16.msra.mxu0 %v2088
          %2700 = vmatpush.bf16.msra.mxu0 %v2082
          %2701 = vmatpush.bf16.msra.mxu0 %v2076
          %2702 = vmatpush.bf16.msra.mxu0 %v2070
          %2703 = vmatpush.bf16.msra.mxu0 %v2064
          %2704 = vmatmul.bf16.gmra.mxu0 %v668
          %v2705 = vpop.f32.mrf.mxu0
          %v2706 = vadd.f32 %v2693, %v2705
          %v2707 = vpop.f32.mrf.mxu0
          %2708 = vdwg.mxu0
          %2709 = vmatpush.bf16.msra.mxu0 %v1867
          %2710 = vmatpush.bf16.msra.mxu0 %v1861
          %2711 = vmatpush.bf16.msra.mxu0 %v1855
          %2712 = vmatpush.bf16.msra.mxu0 %v1849
          %2713 = vmatpush.bf16.msra.mxu0 %v1843
          %2714 = vmatpush.bf16.msra.mxu0 %v1837
          %2715 = vmatpush.bf16.msra.mxu0 %v1831
          %2716 = vmatpush.bf16.msra.mxu0 %v1825
          %2717 = vmatmul.bf16.gmra.mxu0 %v663
          %v2718 = vpop.f32.mrf.mxu0
          %v2719 = vadd.f32 0.0, %v2718
          %v2720 = vpop.f32.mrf.mxu0
          %2721 = vdwg.mxu0
          %2722 = vmatpush.bf16.msra.mxu0 %v1915
          %2723 = vmatpush.bf16.msra.mxu0 %v1909
          %2724 = vmatpush.bf16.msra.mxu0 %v1903
          %2725 = vmatpush.bf16.msra.mxu0 %v1897
          %2726 = vmatpush.bf16.msra.mxu0 %v1891
          %2727 = vmatpush.bf16.msra.mxu0 %v1885
          %2728 = vmatpush.bf16.msra.mxu0 %v1879
          %2729 = vmatpush.bf16.msra.mxu0 %v1873
          %2730 = vmatmul.bf16.gmra.mxu0 %v664
          %v2731 = vpop.f32.mrf.mxu0
          %v2732 = vadd.f32 %v2719, %v2731
          %v2733 = vpop.f32.mrf.mxu0
          %2734 = vdwg.mxu0
          %2735 = vmatpush.bf16.msra.mxu0 %v1963
          %2736 = vmatpush.bf16.msra.mxu0 %v1957
          %2737 = vmatpush.bf16.msra.mxu0 %v1951
          %2738 = vmatpush.bf16.msra.mxu0 %v1945
          %2739 = vmatpush.bf16.msra.mxu0 %v1939
          %2740 = vmatpush.bf16.msra.mxu0 %v1933
          %2741 = vmatpush.bf16.msra.mxu0 %v1927
          %2742 = vmatpush.bf16.msra.mxu0 %v1921
          %2743 = vmatmul.bf16.gmra.mxu0 %v665
          %v2744 = vpop.f32.mrf.mxu0
          %v2745 = vadd.f32 %v2732, %v2744
          %v2746 = vpop.f32.mrf.mxu0
          %2747 = vdwg.mxu0
          %2748 = vmatpush.bf16.msra.mxu0 %v2011
          %2749 = vmatpush.bf16.msra.mxu0 %v2005
          %2750 = vmatpush.bf16.msra.mxu0 %v1999
          %2751 = vmatpush.bf16.msra.mxu0 %v1993
          %2752 = vmatpush.bf16.msra.mxu0 %v1987
          %2753 = vmatpush.bf16.msra.mxu0 %v1981
          %2754 = vmatpush.bf16.msra.mxu0 %v1975
          %2755 = vmatpush.bf16.msra.mxu0 %v1969
          %2756 = vmatmul.bf16.gmra.mxu0 %v666
          %v2757 = vpop.f32.mrf.mxu0
          %v2758 = vadd.f32 %v2745, %v2757
          %v2759 = vpop.f32.mrf.mxu0
          %2760 = vdwg.mxu0
          %2761 = vmatpush.bf16.msra.mxu0 %v2059
          %2762 = vmatpush.bf16.msra.mxu0 %v2053
          %2763 = vmatpush.bf16.msra.mxu0 %v2047
          %2764 = vmatpush.bf16.msra.mxu0 %v2041
          %2765 = vmatpush.bf16.msra.mxu0 %v2035
          %2766 = vmatpush.bf16.msra.mxu0 %v2029
          %2767 = vmatpush.bf16.msra.mxu0 %v2023
          %2768 = vmatpush.bf16.msra.mxu0 %v2017
          %2769 = vmatmul.bf16.gmra.mxu0 %v667
          %v2770 = vpop.f32.mrf.mxu0
          %v2771 = vadd.f32 %v2758, %v2770
          %v2772 = vpop.f32.mrf.mxu0
          %2773 = vdwg.mxu0
          %2774 = vmatpush.bf16.msra.mxu0 %v2107
          %2775 = vmatpush.bf16.msra.mxu0 %v2101
          %2776 = vmatpush.bf16.msra.mxu0 %v2095
          %2777 = vmatpush.bf16.msra.mxu0 %v2089
          %2778 = vmatpush.bf16.msra.mxu0 %v2083
          %2779 = vmatpush.bf16.msra.mxu0 %v2077
          %2780 = vmatpush.bf16.msra.mxu0 %v2071
          %2781 = vmatpush.bf16.msra.mxu0 %v2065
          %2782 = vmatmul.bf16.gmra.mxu0 %v668
          %v2783 = vpop.f32.mrf.mxu0
          %v2784 = vadd.f32 %v2771, %v2783
          %v2785 = vpop.f32.mrf.mxu0
          %2786 = vdwg.mxu0
          %2787 = vmatpush.bf16.msra.mxu0 %v1868
          %2788 = vmatpush.bf16.msra.mxu0 %v1862
          %2789 = vmatpush.bf16.msra.mxu0 %v1856
          %2790 = vmatpush.bf16.msra.mxu0 %v1850
          %2791 = vmatpush.bf16.msra.mxu0 %v1844
          %2792 = vmatpush.bf16.msra.mxu0 %v1838
          %2793 = vmatpush.bf16.msra.mxu0 %v1832
          %2794 = vmatpush.bf16.msra.mxu0 %v1826
          %2795 = vmatmul.bf16.gmra.mxu0 %v663
          %v2796 = vpop.f32.mrf.mxu0
          %v2797 = vadd.f32 0.0, %v2796
          %v2798 = vpop.f32.mrf.mxu0
          %2799 = vdwg.mxu0
          %2800 = vmatpush.bf16.msra.mxu0 %v1916
          %2801 = vmatpush.bf16.msra.mxu0 %v1910
          %2802 = vmatpush.bf16.msra.mxu0 %v1904
          %2803 = vmatpush.bf16.msra.mxu0 %v1898
          %2804 = vmatpush.bf16.msra.mxu0 %v1892
          %2805 = vmatpush.bf16.msra.mxu0 %v1886
          %2806 = vmatpush.bf16.msra.mxu0 %v1880
          %2807 = vmatpush.bf16.msra.mxu0 %v1874
          %2808 = vmatmul.bf16.gmra.mxu0 %v664
          %v2809 = vpop.f32.mrf.mxu0
          %v2810 = vadd.f32 %v2797, %v2809
          %v2811 = vpop.f32.mrf.mxu0
          %2812 = vdwg.mxu0
          %2813 = vmatpush.bf16.msra.mxu0 %v1964
          %2814 = vmatpush.bf16.msra.mxu0 %v1958
          %2815 = vmatpush.bf16.msra.mxu0 %v1952
          %2816 = vmatpush.bf16.msra.mxu0 %v1946
          %2817 = vmatpush.bf16.msra.mxu0 %v1940
          %2818 = vmatpush.bf16.msra.mxu0 %v1934
          %2819 = vmatpush.bf16.msra.mxu0 %v1928
          %2820 = vmatpush.bf16.msra.mxu0 %v1922
          %2821 = vmatmul.bf16.gmra.mxu0 %v665
          %v2822 = vpop.f32.mrf.mxu0
          %v2823 = vadd.f32 %v2810, %v2822
          %v2824 = vpop.f32.mrf.mxu0
          %2825 = vdwg.mxu0
          %2826 = vmatpush.bf16.msra.mxu0 %v2012
          %2827 = vmatpush.bf16.msra.mxu0 %v2006
          %2828 = vmatpush.bf16.msra.mxu0 %v2000
          %2829 = vmatpush.bf16.msra.mxu0 %v1994
          %2830 = vmatpush.bf16.msra.mxu0 %v1988
          %2831 = vmatpush.bf16.msra.mxu0 %v1982
          %2832 = vmatpush.bf16.msra.mxu0 %v1976
          %2833 = vmatpush.bf16.msra.mxu0 %v1970
          %2834 = vmatmul.bf16.gmra.mxu0 %v666
          %v2835 = vpop.f32.mrf.mxu0
          %v2836 = vadd.f32 %v2823, %v2835
          %v2837 = vpop.f32.mrf.mxu0
          %2838 = vdwg.mxu0
          %2839 = vmatpush.bf16.msra.mxu0 %v2060
          %2840 = vmatpush.bf16.msra.mxu0 %v2054
          %2841 = vmatpush.bf16.msra.mxu0 %v2048
          %2842 = vmatpush.bf16.msra.mxu0 %v2042
          %2843 = vmatpush.bf16.msra.mxu0 %v2036
          %2844 = vmatpush.bf16.msra.mxu0 %v2030
          %2845 = vmatpush.bf16.msra.mxu0 %v2024
          %2846 = vmatpush.bf16.msra.mxu0 %v2018
          %2847 = vmatmul.bf16.gmra.mxu0 %v667
          %v2848 = vpop.f32.mrf.mxu0
          %v2849 = vadd.f32 %v2836, %v2848
          %v2850 = vpop.f32.mrf.mxu0
          %2851 = vdwg.mxu0
          %2852 = vmatpush.bf16.msra.mxu0 %v2108
          %2853 = vmatpush.bf16.msra.mxu0 %v2102
          %2854 = vmatpush.bf16.msra.mxu0 %v2096
          %2855 = vmatpush.bf16.msra.mxu0 %v2090
          %2856 = vmatpush.bf16.msra.mxu0 %v2084
          %2857 = vmatpush.bf16.msra.mxu0 %v2078
          %2858 = vmatpush.bf16.msra.mxu0 %v2072
          %2859 = vmatpush.bf16.msra.mxu0 %v2066
          %2860 = vmatmul.bf16.gmra.mxu0 %v668
          %v2861 = vpop.f32.mrf.mxu0
          %v2862 = vadd.f32 %v2849, %v2861
          %v2863 = vpop.f32.mrf.mxu0
          %2864 = vdwg.mxu0
          %v2865 = vld [vmem:[#allocation12] sm:$0xff]
          %vm2866 = vcmask 64512
          %v2868 = vsel %vm2866, %v2865, 0
          %2870 = vmatpush.msra.mxu0 0.0
          %2871 = vmatpush.msra.mxu0 0.0
          %2872 = vmatpush.msra.mxu0 0.0
          %2873 = vmatpush.msra.mxu0 0.0
          %2874 = vmatpush.msra.mxu0 0.0
          %2875 = vmatpush.msra.mxu0 0.0
          %2876 = vmatpush.msra.mxu0 0.0
          %2877 = vmatpush.msra.mxu0 0.0
          %2878 = vmatpush.msra.mxu0 0.0
          %2879 = vmatpush.msra.mxu0 0.0
          %2880 = vmatpush.msra.mxu0 0.0
          %2881 = vmatpush.msra.mxu0 0.0
          %2882 = vmatpush.msra.mxu0 0.0
          %2883 = vmatpush.msra.mxu0 0.0
          %2884 = vmatpush.msra.mxu0 0.0
          %2885 = vmatpush.msra.mxu0 %v2472
          %2886 = vmatmul.f32.gmra.mxu0 %v2868
          %v2887 = vpop.f32.mrf.mxu0
          %v2888 = vadd.f32 0.0, %v2887
          %2889 = vdwg.mxu0
          %2890 = vmatpush.msra.mxu0 0.0
          %2891 = vmatpush.msra.mxu0 0.0
          %2892 = vmatpush.msra.mxu0 0.0
          %2893 = vmatpush.msra.mxu0 0.0
          %2894 = vmatpush.msra.mxu0 0.0
          %2895 = vmatpush.msra.mxu0 0.0
          %2896 = vmatpush.msra.mxu0 0.0
          %2897 = vmatpush.msra.mxu0 0.0
          %2898 = vmatpush.msra.mxu0 0.0
          %2899 = vmatpush.msra.mxu0 0.0
          %2900 = vmatpush.msra.mxu0 0.0
          %2901 = vmatpush.msra.mxu0 0.0
          %2902 = vmatpush.msra.mxu0 0.0
          %2903 = vmatpush.msra.mxu0 0.0
          %2904 = vmatpush.msra.mxu0 0.0
          %2905 = vmatpush.msra.mxu0 %v2550
          %2906 = vmatmul.f32.gmra.mxu0 %v2868
          %v2907 = vpop.f32.mrf.mxu0
          %v2908 = vadd.f32 0.0, %v2907
          %2909 = vdwg.mxu0
          %2910 = vmatpush.msra.mxu0 0.0
          %2911 = vmatpush.msra.mxu0 0.0
          %2912 = vmatpush.msra.mxu0 0.0
          %2913 = vmatpush.msra.mxu0 0.0
          %2914 = vmatpush.msra.mxu0 0.0
          %2915 = vmatpush.msra.mxu0 0.0
          %2916 = vmatpush.msra.mxu0 0.0
          %2917 = vmatpush.msra.mxu0 0.0
          %2918 = vmatpush.msra.mxu0 0.0
          %2919 = vmatpush.msra.mxu0 0.0
          %2920 = vmatpush.msra.mxu0 0.0
          %2921 = vmatpush.msra.mxu0 0.0
          %2922 = vmatpush.msra.mxu0 0.0
          %2923 = vmatpush.msra.mxu0 0.0
          %2924 = vmatpush.msra.mxu0 0.0
          %2925 = vmatpush.msra.mxu0 %v2628
          %2926 = vmatmul.f32.gmra.mxu0 %v2868
          %v2927 = vpop.f32.mrf.mxu0
          %v2928 = vadd.f32 0.0, %v2927
          %2929 = vdwg.mxu0
          %2930 = vmatpush.msra.mxu0 0.0
          %2931 = vmatpush.msra.mxu0 0.0
          %2932 = vmatpush.msra.mxu0 0.0
          %2933 = vmatpush.msra.mxu0 0.0
          %2934 = vmatpush.msra.mxu0 0.0
          %2935 = vmatpush.msra.mxu0 0.0
          %2936 = vmatpush.msra.mxu0 0.0
          %2937 = vmatpush.msra.mxu0 0.0
          %2938 = vmatpush.msra.mxu0 0.0
          %2939 = vmatpush.msra.mxu0 0.0
          %2940 = vmatpush.msra.mxu0 0.0
          %2941 = vmatpush.msra.mxu0 0.0
          %2942 = vmatpush.msra.mxu0 0.0
          %2943 = vmatpush.msra.mxu0 0.0
          %2944 = vmatpush.msra.mxu0 0.0
          %2945 = vmatpush.msra.mxu0 %v2706
          %2946 = vmatmul.f32.gmra.mxu0 %v2868
          %v2947 = vpop.f32.mrf.mxu0
          %v2948 = vadd.f32 0.0, %v2947
          %2949 = vdwg.mxu0
          %2950 = vmatpush.msra.mxu0 0.0
          %2951 = vmatpush.msra.mxu0 0.0
          %2952 = vmatpush.msra.mxu0 0.0
          %2953 = vmatpush.msra.mxu0 0.0
          %2954 = vmatpush.msra.mxu0 0.0
          %2955 = vmatpush.msra.mxu0 0.0
          %2956 = vmatpush.msra.mxu0 0.0
          %2957 = vmatpush.msra.mxu0 0.0
          %2958 = vmatpush.msra.mxu0 0.0
          %2959 = vmatpush.msra.mxu0 0.0
          %2960 = vmatpush.msra.mxu0 0.0
          %2961 = vmatpush.msra.mxu0 0.0
          %2962 = vmatpush.msra.mxu0 0.0
          %2963 = vmatpush.msra.mxu0 0.0
          %2964 = vmatpush.msra.mxu0 0.0
          %2965 = vmatpush.msra.mxu0 %v2784
          %2966 = vmatmul.f32.gmra.mxu0 %v2868
          %v2967 = vpop.f32.mrf.mxu0
          %v2968 = vadd.f32 0.0, %v2967
          %2969 = vdwg.mxu0
          %2970 = vmatpush.msra.mxu0 0.0
          %2971 = vmatpush.msra.mxu0 0.0
          %2972 = vmatpush.msra.mxu0 0.0
          %2973 = vmatpush.msra.mxu0 0.0
          %2974 = vmatpush.msra.mxu0 0.0
          %2975 = vmatpush.msra.mxu0 0.0
          %2976 = vmatpush.msra.mxu0 0.0
          %2977 = vmatpush.msra.mxu0 0.0
          %2978 = vmatpush.msra.mxu0 0.0
          %2979 = vmatpush.msra.mxu0 0.0
          %2980 = vmatpush.msra.mxu0 0.0
          %2981 = vmatpush.msra.mxu0 0.0
          %2982 = vmatpush.msra.mxu0 0.0
          %2983 = vmatpush.msra.mxu0 0.0
          %2984 = vmatpush.msra.mxu0 0.0
          %2985 = vmatpush.msra.mxu0 %v2862
          %2986 = vmatmul.f32.gmra.mxu0 %v2868
          %v2987 = vpop.f32.mrf.mxu0
          %v2988 = vadd.f32 0.0, %v2987
          %2989 = vdwg.mxu0
          %vm2990 = vcmp.gt.f32.partialorder %v2888, 0.0
          %vm2991 = vcmp.gt.f32.partialorder %v2908, 0.0
          %vm2992 = vcmp.gt.f32.partialorder %v2928, 0.0
          %vm2993 = vcmp.gt.f32.partialorder %v2948, 0.0
          %vm2994 = vcmp.gt.f32.partialorder %v2968, 0.0
          %vm2995 = vcmp.gt.f32.partialorder %v2988, 0.0
          %v2996 = vmul.f32 %v2888, 0.2
          %v2997 = vmul.f32 %v2908, 0.2
          %v2998 = vmul.f32 %v2928, 0.2
          %v2999 = vmul.f32 %v2948, 0.2
          %v3000 = vmul.f32 %v2968, 0.2
          %v3001 = vmul.f32 %v2988, 0.2
          %v3002 = vsel %vm2990, %v2888, %v2996
          %v3003 = vsel %vm2991, %v2908, %v2997
          %v3004 = vsel %vm2992, %v2928, %v2998
          %v3005 = vsel %vm2993, %v2948, %v2999
          %v3006 = vsel %vm2994, %v2968, %v3000
          %v3007 = vsel %vm2995, %v2988, %v3001
          %v3014 = vrot.slane %v408, 6
          %v3015 = vrot.slane %v428, 4
          %v3016 = vrot.slane %v448, 2
          %v3017 = vrot.slane %v488, 6
          %vm3018 = vcmask 1041408
          %v3019 = vsel %vm3018, %v388, %v3014
          %vm3020 = vcmask 1045508
          %v3021 = vsel %vm3020, %v3015, %v3016
          %vm3022 = vcmask 1043456
          %v3023 = vsel %vm3022, %v3019, %v3021
          %v3024 = vsel %vm3018, %v468, %v3017
          %3027 = vst [vmem:[#allocation2] sm:$0xff] %v3023
          %3028 = vst [vmem:[#allocation2 + $0x8] sm:$0xf] %v3024
          %3029 = vxpose.xlu0.b32.start [1/16] %v3002, 128
          %3030 = vxpose.xlu0.b32.cont [2/16] 0.0, 128
          %3031 = vxpose.xlu0.b32.cont [3/16] 0.0, 128
          %3032 = vxpose.xlu0.b32.cont [4/16] 0.0, 128
          %3033 = vxpose.xlu0.b32.cont [5/16] 0.0, 128
          %3034 = vxpose.xlu0.b32.cont [6/16] 0.0, 128
          %3035 = vxpose.xlu0.b32.cont [7/16] 0.0, 128
          %3036 = vxpose.xlu0.b32.cont [8/16] 0.0, 128
          %3037 = vxpose.xlu0.b32.cont [9/16] 0.0, 128
          %3038 = vxpose.xlu0.b32.cont [10/16] 0.0, 128
          %3039 = vxpose.xlu0.b32.cont [11/16] 0.0, 128
          %3040 = vxpose.xlu0.b32.cont [12/16] 0.0, 128
          %3041 = vxpose.xlu0.b32.cont [13/16] 0.0, 128
          %3042 = vxpose.xlu0.b32.cont [14/16] 0.0, 128
          %3043 = vxpose.xlu0.b32.cont [15/16] 0.0, 128
          %3044 = vxpose.xlu0.b32.end [16/16] 0.0, 128
          %v3045 = vpop.trf.xlu0
          %v3046 = vpop.trf.xlu0
          %v3047 = vpop.trf.xlu0
          %v3048 = vpop.trf.xlu0
          %v3049 = vpop.trf.xlu0
          %v3050 = vpop.trf.xlu0
          %v3051 = vpop.trf.xlu0
          %v3052 = vpop.trf.xlu0
          %v3053 = vpop.trf.xlu0
          %v3054 = vpop.trf.xlu0
          %v3055 = vpop.trf.xlu0
          %v3056 = vpop.trf.xlu0
          %v3057 = vpop.trf.xlu0
          %v3058 = vpop.trf.xlu0
          %v3059 = vpop.trf.xlu0
          %v3060 = vpop.trf.xlu0
          %3061 = vxpose.xlu0.b32.start [1/16] %v3003, 128
          %3062 = vxpose.xlu0.b32.cont [2/16] 0.0, 128
          %3063 = vxpose.xlu0.b32.cont [3/16] 0.0, 128
          %3064 = vxpose.xlu0.b32.cont [4/16] 0.0, 128
          %3065 = vxpose.xlu0.b32.cont [5/16] 0.0, 128
          %3066 = vxpose.xlu0.b32.cont [6/16] 0.0, 128
          %3067 = vxpose.xlu0.b32.cont [7/16] 0.0, 128
          %3068 = vxpose.xlu0.b32.cont [8/16] 0.0, 128
          %3069 = vxpose.xlu0.b32.cont [9/16] 0.0, 128
          %3070 = vxpose.xlu0.b32.cont [10/16] 0.0, 128
          %3071 = vxpose.xlu0.b32.cont [11/16] 0.0, 128
          %3072 = vxpose.xlu0.b32.cont [12/16] 0.0, 128
          %3073 = vxpose.xlu0.b32.cont [13/16] 0.0, 128
          %3074 = vxpose.xlu0.b32.cont [14/16] 0.0, 128
          %3075 = vxpose.xlu0.b32.cont [15/16] 0.0, 128
          %3076 = vxpose.xlu0.b32.end [16/16] 0.0, 128
          %v3077 = vpop.trf.xlu0
          %v3078 = vpop.trf.xlu0
          %v3079 = vpop.trf.xlu0
          %v3080 = vpop.trf.xlu0
          %v3081 = vpop.trf.xlu0
          %v3082 = vpop.trf.xlu0
          %v3083 = vpop.trf.xlu0
          %v3084 = vpop.trf.xlu0
          %v3085 = vpop.trf.xlu0
          %v3086 = vpop.trf.xlu0
          %v3087 = vpop.trf.xlu0
          %v3088 = vpop.trf.xlu0
          %v3089 = vpop.trf.xlu0
          %v3090 = vpop.trf.xlu0
          %v3091 = vpop.trf.xlu0
          %v3092 = vpop.trf.xlu0
          %3093 = vxpose.xlu0.b32.start [1/16] %v3004, 128
          %3094 = vxpose.xlu0.b32.cont [2/16] 0.0, 128
          %3095 = vxpose.xlu0.b32.cont [3/16] 0.0, 128
          %3096 = vxpose.xlu0.b32.cont [4/16] 0.0, 128
          %3097 = vxpose.xlu0.b32.cont [5/16] 0.0, 128
          %3098 = vxpose.xlu0.b32.cont [6/16] 0.0, 128
          %3099 = vxpose.xlu0.b32.cont [7/16] 0.0, 128
          %3100 = vxpose.xlu0.b32.cont [8/16] 0.0, 128
          %3101 = vxpose.xlu0.b32.cont [9/16] 0.0, 128
          %3102 = vxpose.xlu0.b32.cont [10/16] 0.0, 128
          %3103 = vxpose.xlu0.b32.cont [11/16] 0.0, 128
          %3104 = vxpose.xlu0.b32.cont [12/16] 0.0, 128
          %3105 = vxpose.xlu0.b32.cont [13/16] 0.0, 128
          %3106 = vxpose.xlu0.b32.cont [14/16] 0.0, 128
          %3107 = vxpose.xlu0.b32.cont [15/16] 0.0, 128
          %3108 = vxpose.xlu0.b32.end [16/16] 0.0, 128
          %v3109 = vpop.trf.xlu0
          %v3110 = vpop.trf.xlu0
          %v3111 = vpop.trf.xlu0
          %v3112 = vpop.trf.xlu0
          %v3113 = vpop.trf.xlu0
          %v3114 = vpop.trf.xlu0
          %v3115 = vpop.trf.xlu0
          %v3116 = vpop.trf.xlu0
          %v3117 = vpop.trf.xlu0
          %v3118 = vpop.trf.xlu0
          %v3119 = vpop.trf.xlu0
          %v3120 = vpop.trf.xlu0
          %v3121 = vpop.trf.xlu0
          %v3122 = vpop.trf.xlu0
          %v3123 = vpop.trf.xlu0
          %v3124 = vpop.trf.xlu0
          %3125 = vxpose.xlu0.b32.start [1/16] %v3005, 128
          %3126 = vxpose.xlu0.b32.cont [2/16] 0.0, 128
          %3127 = vxpose.xlu0.b32.cont [3/16] 0.0, 128
          %3128 = vxpose.xlu0.b32.cont [4/16] 0.0, 128
          %3129 = vxpose.xlu0.b32.cont [5/16] 0.0, 128
          %3130 = vxpose.xlu0.b32.cont [6/16] 0.0, 128
          %3131 = vxpose.xlu0.b32.cont [7/16] 0.0, 128
          %3132 = vxpose.xlu0.b32.cont [8/16] 0.0, 128
          %3133 = vxpose.xlu0.b32.cont [9/16] 0.0, 128
          %3134 = vxpose.xlu0.b32.cont [10/16] 0.0, 128
          %3135 = vxpose.xlu0.b32.cont [11/16] 0.0, 128
          %3136 = vxpose.xlu0.b32.cont [12/16] 0.0, 128
          %3137 = vxpose.xlu0.b32.cont [13/16] 0.0, 128
          %3138 = vxpose.xlu0.b32.cont [14/16] 0.0, 128
          %3139 = vxpose.xlu0.b32.cont [15/16] 0.0, 128
          %3140 = vxpose.xlu0.b32.end [16/16] 0.0, 128
          %v3141 = vpop.trf.xlu0
          %v3142 = vpop.trf.xlu0
          %v3143 = vpop.trf.xlu0
          %v3144 = vpop.trf.xlu0
          %v3145 = vpop.trf.xlu0
          %v3146 = vpop.trf.xlu0
          %v3147 = vpop.trf.xlu0
          %v3148 = vpop.trf.xlu0
          %v3149 = vpop.trf.xlu0
          %v3150 = vpop.trf.xlu0
          %v3151 = vpop.trf.xlu0
          %v3152 = vpop.trf.xlu0
          %v3153 = vpop.trf.xlu0
          %v3154 = vpop.trf.xlu0
          %v3155 = vpop.trf.xlu0
          %v3156 = vpop.trf.xlu0
          %3157 = vxpose.xlu0.b32.start [1/16] %v3006, 128
          %3158 = vxpose.xlu0.b32.cont [2/16] 0.0, 128
          %3159 = vxpose.xlu0.b32.cont [3/16] 0.0, 128
          %3160 = vxpose.xlu0.b32.cont [4/16] 0.0, 128
          %3161 = vxpose.xlu0.b32.cont [5/16] 0.0, 128
          %3162 = vxpose.xlu0.b32.cont [6/16] 0.0, 128
          %3163 = vxpose.xlu0.b32.cont [7/16] 0.0, 128
          %3164 = vxpose.xlu0.b32.cont [8/16] 0.0, 128
          %3165 = vxpose.xlu0.b32.cont [9/16] 0.0, 128
          %3166 = vxpose.xlu0.b32.cont [10/16] 0.0, 128
          %3167 = vxpose.xlu0.b32.cont [11/16] 0.0, 128
          %3168 = vxpose.xlu0.b32.cont [12/16] 0.0, 128
          %3169 = vxpose.xlu0.b32.cont [13/16] 0.0, 128
          %3170 = vxpose.xlu0.b32.cont [14/16] 0.0, 128
          %3171 = vxpose.xlu0.b32.cont [15/16] 0.0, 128
          %3172 = vxpose.xlu0.b32.end [16/16] 0.0, 128
          %v3173 = vpop.trf.xlu0
          %v3174 = vpop.trf.xlu0
          %v3175 = vpop.trf.xlu0
          %v3176 = vpop.trf.xlu0
          %v3177 = vpop.trf.xlu0
          %v3178 = vpop.trf.xlu0
          %v3179 = vpop.trf.xlu0
          %v3180 = vpop.trf.xlu0
          %v3181 = vpop.trf.xlu0
          %v3182 = vpop.trf.xlu0
          %v3183 = vpop.trf.xlu0
          %v3184 = vpop.trf.xlu0
          %v3185 = vpop.trf.xlu0
          %v3186 = vpop.trf.xlu0
          %v3187 = vpop.trf.xlu0
          %v3188 = vpop.trf.xlu0
          %3189 = vxpose.xlu0.b32.start [1/16] %v3007, 128
          %3190 = vxpose.xlu0.b32.cont [2/16] 0.0, 128
          %3191 = vxpose.xlu0.b32.cont [3/16] 0.0, 128
          %3192 = vxpose.xlu0.b32.cont [4/16] 0.0, 128
          %3193 = vxpose.xlu0.b32.cont [5/16] 0.0, 128
          %3194 = vxpose.xlu0.b32.cont [6/16] 0.0, 128
          %3195 = vxpose.xlu0.b32.cont [7/16] 0.0, 128
          %3196 = vxpose.xlu0.b32.cont [8/16] 0.0, 128
          %3197 = vxpose.xlu0.b32.cont [9/16] 0.0, 128
          %3198 = vxpose.xlu0.b32.cont [10/16] 0.0, 128
          %3199 = vxpose.xlu0.b32.cont [11/16] 0.0, 128
          %3200 = vxpose.xlu0.b32.cont [12/16] 0.0, 128
          %3201 = vxpose.xlu0.b32.cont [13/16] 0.0, 128
          %3202 = vxpose.xlu0.b32.cont [14/16] 0.0, 128
          %3203 = vxpose.xlu0.b32.cont [15/16] 0.0, 128
          %3204 = vxpose.xlu0.b32.end [16/16] 0.0, 128
          %v3205 = vpop.trf.xlu0
          %v3206 = vpop.trf.xlu0
          %v3207 = vpop.trf.xlu0
          %v3208 = vpop.trf.xlu0
          %v3209 = vpop.trf.xlu0
          %v3210 = vpop.trf.xlu0
          %v3211 = vpop.trf.xlu0
          %v3212 = vpop.trf.xlu0
          %v3213 = vpop.trf.xlu0
          %v3214 = vpop.trf.xlu0
          %v3215 = vpop.trf.xlu0
          %v3216 = vpop.trf.xlu0
          %v3217 = vpop.trf.xlu0
          %v3218 = vpop.trf.xlu0
          %v3219 = vpop.trf.xlu0
          %v3220 = vpop.trf.xlu0
          %3221 = vst.msk [vmem:[#allocation3] sm:$0xff] %vm2866, %v3045
          %3222 = vst.msk [vmem:[#allocation3 + $0x8] sm:$0xff] %vm2866, %v3046
          %3223 = vst.msk [vmem:[#allocation3 + $0x10] sm:$0xff] %vm2866, %v3047
          %3224 = vst.msk [vmem:[#allocation3 + $0x18] sm:$0xff] %vm2866, %v3048
          %3225 = vst.msk [vmem:[#allocation3 + $0x20] sm:$0xff] %vm2866, %v3049
          %3226 = vst.msk [vmem:[#allocation3 + $0x28] sm:$0xff] %vm2866, %v3050
          %3227 = vst.msk [vmem:[#allocation3 + $0x30] sm:$0xff] %vm2866, %v3051
          %3228 = vst.msk [vmem:[#allocation3 + $0x38] sm:$0xff] %vm2866, %v3052
          %3229 = vst.msk [vmem:[#allocation3 + $0x40] sm:$0xff] %vm2866, %v3053
          %3230 = vst.msk [vmem:[#allocation3 + $0x48] sm:$0xff] %vm2866, %v3054
          %3231 = vst.msk [vmem:[#allocation3 + $0x50] sm:$0xff] %vm2866, %v3055
          %3232 = vst.msk [vmem:[#allocation3 + $0x58] sm:$0xff] %vm2866, %v3056
          %3233 = vst.msk [vmem:[#allocation3 + $0x60] sm:$0xff] %vm2866, %v3057
          %3234 = vst.msk [vmem:[#allocation3 + $0x68] sm:$0xff] %vm2866, %v3058
          %3235 = vst.msk [vmem:[#allocation3 + $0x70] sm:$0xff] %vm2866, %v3059
          %3236 = vst.msk [vmem:[#allocation3 + $0x78] sm:$0xff] %vm2866, %v3060
          %3237 = vst.msk [vmem:[#allocation3 + $0x80] sm:$0xff] %vm2866, %v3077
          %3238 = vst.msk [vmem:[#allocation3 + $0x88] sm:$0xff] %vm2866, %v3078
          %3239 = vst.msk [vmem:[#allocation3 + $0x90] sm:$0xff] %vm2866, %v3079
          %3240 = vst.msk [vmem:[#allocation3 + $0x98] sm:$0xff] %vm2866, %v3080
          %3241 = vst.msk [vmem:[#allocation3 + $0xa0] sm:$0xff] %vm2866, %v3081
          %3242 = vst.msk [vmem:[#allocation3 + $0xa8] sm:$0xff] %vm2866, %v3082
          %3243 = vst.msk [vmem:[#allocation3 + $0xb0] sm:$0xff] %vm2866, %v3083
          %3244 = vst.msk [vmem:[#allocation3 + $0xb8] sm:$0xff] %vm2866, %v3084
          %3245 = vst.msk [vmem:[#allocation3 + $0xc0] sm:$0xff] %vm2866, %v3085
          %3246 = vst.msk [vmem:[#allocation3 + $0xc8] sm:$0xff] %vm2866, %v3086
          %3247 = vst.msk [vmem:[#allocation3 + $0xd0] sm:$0xff] %vm2866, %v3087
          %3248 = vst.msk [vmem:[#allocation3 + $0xd8] sm:$0xff] %vm2866, %v3088
          %3249 = vst.msk [vmem:[#allocation3 + $0xe0] sm:$0xff] %vm2866, %v3089
          %3250 = vst.msk [vmem:[#allocation3 + $0xe8] sm:$0xff] %vm2866, %v3090
          %3251 = vst.msk [vmem:[#allocation3 + $0xf0] sm:$0xff] %vm2866, %v3091
          %3252 = vst.msk [vmem:[#allocation3 + $0xf8] sm:$0xff] %vm2866, %v3092
          %3253 = vst.msk [vmem:[#allocation3 + $0x100] sm:$0xff] %vm2866, %v3109
          %3254 = vst.msk [vmem:[#allocation3 + $0x108] sm:$0xff] %vm2866, %v3110
          %3255 = vst.msk [vmem:[#allocation3 + $0x110] sm:$0xff] %vm2866, %v3111
          %3256 = vst.msk [vmem:[#allocation3 + $0x118] sm:$0xff] %vm2866, %v3112
          %3257 = vst.msk [vmem:[#allocation3 + $0x120] sm:$0xff] %vm2866, %v3113
          %3258 = vst.msk [vmem:[#allocation3 + $0x128] sm:$0xff] %vm2866, %v3114
          %3259 = vst.msk [vmem:[#allocation3 + $0x130] sm:$0xff] %vm2866, %v3115
          %3260 = vst.msk [vmem:[#allocation3 + $0x138] sm:$0xff] %vm2866, %v3116
          %3261 = vst.msk [vmem:[#allocation3 + $0x140] sm:$0xff] %vm2866, %v3117
          %3262 = vst.msk [vmem:[#allocation3 + $0x148] sm:$0xff] %vm2866, %v3118
          %3263 = vst.msk [vmem:[#allocation3 + $0x150] sm:$0xff] %vm2866, %v3119
          %3264 = vst.msk [vmem:[#allocation3 + $0x158] sm:$0xff] %vm2866, %v3120
          %3265 = vst.msk [vmem:[#allocation3 + $0x160] sm:$0xff] %vm2866, %v3121
          %3266 = vst.msk [vmem:[#allocation3 + $0x168] sm:$0xff] %vm2866, %v3122
          %3267 = vst.msk [vmem:[#allocation3 + $0x170] sm:$0xff] %vm2866, %v3123
          %3268 = vst.msk [vmem:[#allocation3 + $0x178] sm:$0xff] %vm2866, %v3124
          %3269 = vst.msk [vmem:[#allocation3 + $0x180] sm:$0xff] %vm2866, %v3141
          %3270 = vst.msk [vmem:[#allocation3 + $0x188] sm:$0xff] %vm2866, %v3142
          %3271 = vst.msk [vmem:[#allocation3 + $0x190] sm:$0xff] %vm2866, %v3143
          %3272 = vst.msk [vmem:[#allocation3 + $0x198] sm:$0xff] %vm2866, %v3144
          %3273 = vst.msk [vmem:[#allocation3 + $0x1a0] sm:$0xff] %vm2866, %v3145
          %3274 = vst.msk [vmem:[#allocation3 + $0x1a8] sm:$0xff] %vm2866, %v3146
          %3275 = vst.msk [vmem:[#allocation3 + $0x1b0] sm:$0xff] %vm2866, %v3147
          %3276 = vst.msk [vmem:[#allocation3 + $0x1b8] sm:$0xff] %vm2866, %v3148
          %3277 = vst.msk [vmem:[#allocation3 + $0x1c0] sm:$0xff] %vm2866, %v3149
          %3278 = vst.msk [vmem:[#allocation3 + $0x1c8] sm:$0xff] %vm2866, %v3150
          %3279 = vst.msk [vmem:[#allocation3 + $0x1d0] sm:$0xff] %vm2866, %v3151
          %3280 = vst.msk [vmem:[#allocation3 + $0x1d8] sm:$0xff] %vm2866, %v3152
          %3281 = vst.msk [vmem:[#allocation3 + $0x1e0] sm:$0xff] %vm2866, %v3153
          %3282 = vst.msk [vmem:[#allocation3 + $0x1e8] sm:$0xff] %vm2866, %v3154
          %3283 = vst.msk [vmem:[#allocation3 + $0x1f0] sm:$0xff] %vm2866, %v3155
          %3284 = vst.msk [vmem:[#allocation3 + $0x1f8] sm:$0xff] %vm2866, %v3156
          %3285 = vst.msk [vmem:[#allocation3 + $0x200] sm:$0xff] %vm2866, %v3173
          %3286 = vst.msk [vmem:[#allocation3 + $0x208] sm:$0xff] %vm2866, %v3174
          %3287 = vst.msk [vmem:[#allocation3 + $0x210] sm:$0xff] %vm2866, %v3175
          %3288 = vst.msk [vmem:[#allocation3 + $0x218] sm:$0xff] %vm2866, %v3176
          %3289 = vst.msk [vmem:[#allocation3 + $0x220] sm:$0xff] %vm2866, %v3177
          %3290 = vst.msk [vmem:[#allocation3 + $0x228] sm:$0xff] %vm2866, %v3178
          %3291 = vst.msk [vmem:[#allocation3 + $0x230] sm:$0xff] %vm2866, %v3179
          %3292 = vst.msk [vmem:[#allocation3 + $0x238] sm:$0xff] %vm2866, %v3180
          %3293 = vst.msk [vmem:[#allocation3 + $0x240] sm:$0xff] %vm2866, %v3181
          %3294 = vst.msk [vmem:[#allocation3 + $0x248] sm:$0xff] %vm2866, %v3182
          %3295 = vst.msk [vmem:[#allocation3 + $0x250] sm:$0xff] %vm2866, %v3183
          %3296 = vst.msk [vmem:[#allocation3 + $0x258] sm:$0xff] %vm2866, %v3184
          %3297 = vst.msk [vmem:[#allocation3 + $0x260] sm:$0xff] %vm2866, %v3185
          %3298 = vst.msk [vmem:[#allocation3 + $0x268] sm:$0xff] %vm2866, %v3186
          %3299 = vst.msk [vmem:[#allocation3 + $0x270] sm:$0xff] %vm2866, %v3187
          %3300 = vst.msk [vmem:[#allocation3 + $0x278] sm:$0xff] %vm2866, %v3188
          %3301 = vst.msk [vmem:[#allocation3 + $0x280] sm:$0xff] %vm2866, %v3205
          %3302 = vst.msk [vmem:[#allocation3 + $0x288] sm:$0xff] %vm2866, %v3206
          %3303 = vst.msk [vmem:[#allocation3 + $0x290] sm:$0xff] %vm2866, %v3207
          %3304 = vst.msk [vmem:[#allocation3 + $0x298] sm:$0xff] %vm2866, %v3208
          %3305 = vst.msk [vmem:[#allocation3 + $0x2a0] sm:$0xff] %vm2866, %v3209
          %3306 = vst.msk [vmem:[#allocation3 + $0x2a8] sm:$0xff] %vm2866, %v3210
          %3307 = vst.msk [vmem:[#allocation3 + $0x2b0] sm:$0xff] %vm2866, %v3211
          %3308 = vst.msk [vmem:[#allocation3 + $0x2b8] sm:$0xff] %vm2866, %v3212
          %3309 = vst.msk [vmem:[#allocation3 + $0x2c0] sm:$0xff] %vm2866, %v3213
          %3310 = vst.msk [vmem:[#allocation3 + $0x2c8] sm:$0xff] %vm2866, %v3214
          %3311 = vst.msk [vmem:[#allocation3 + $0x2d0] sm:$0xff] %vm2866, %v3215
          %3312 = vst.msk [vmem:[#allocation3 + $0x2d8] sm:$0xff] %vm2866, %v3216
          %3313 = vst.msk [vmem:[#allocation3 + $0x2e0] sm:$0xff] %vm2866, %v3217
          %3314 = vst.msk [vmem:[#allocation3 + $0x2e8] sm:$0xff] %vm2866, %v3218
          %3315 = vst.msk [vmem:[#allocation3 + $0x2f0] sm:$0xff] %vm2866, %v3219
          %3316 = vst.msk [vmem:[#allocation3 + $0x2f8] sm:$0xff] %vm2866, %v3220
        $region72: #{tpu_custom_call.1} parent=43 // pred_fallthru
          _
        %p3317 = scmp.eq.s32.totalorder %s24, 1
        // Predicated region
        $region73: #{tpu_custom_call.1} parent=43 // pred_check
          %p3318 = pneg %p3317
        $region74: #{tpu_custom_call.1} parent=43 // pred_check_branch
          %3320 = sbr.rel (%p3318) target = $region76
        $region75: #{tpu_custom_call.1} parent=43 // pred_region
          %v3321 = vld [vmem:[#allocation2] sm:$0xff]
          %v3322 = vld [vmem:[#allocation2 + $0x8] sm:$0xf]
          %3325 = vst [vmem:[#allocation1] ss:$4 sm:$0xff] %v3321
          %s3326 = scalar_lea.vmem [#allocation1], 32
          %3327 = vst [vmem:[%s3326] ss:$4 sm:$0xff] %v3322
          %v3328 = vld.sshfl [vmem:[#allocation1] sm:$0xff pattern:$0x73625140]
          %v3329 = vld.sshfl [vmem:[#allocation1 + $0x8] sm:$0xff pattern:$0x73625140]
          %v3330 = vld.sshfl [vmem:[#allocation1 + $0x10] sm:$0xff pattern:$0x73625140]
          %v3331 = vld.sshfl [vmem:[#allocation1 + $0x18] sm:$0xff pattern:$0x73625140]
          %v3332 = vld.sshfl [vmem:[#allocation1 + $0x20] sm:$0xff pattern:$0x73625140]
          %v3333 = vld.sshfl [vmem:[#allocation1 + $0x28] sm:$0xff pattern:$0x73625140]
          %v3340 = vpack.c.bf16 %v3328, %v3328
          %v3341 = vpack.c.bf16 %v3329, %v3329
          %v3342 = vpack.c.bf16 %v3330, %v3330
          %v3343 = vpack.c.bf16 %v3331, %v3331
          %v3344 = vpack.c.bf16 %v3332, %v3332
          %v3345 = vpack.c.bf16 %v3333, %v3333
          %v3346 = vld [vmem:[%s312] sm:$0xff]
          %v3347 = vld [vmem:[%s312 + $0x8] sm:$0xff]
          %v3348 = vld [vmem:[%s312 + $0x10] sm:$0xff]
          %v3349 = vld [vmem:[%s312 + $0x18] sm:$0xff]
          %v3350 = vld [vmem:[%s312 + $0x20] sm:$0xff]
          %v3351 = vld [vmem:[%s312 + $0x28] sm:$0xff]
          %v3352 = vld [vmem:[%s312 + $0x30] sm:$0xff]
          %v3353 = vld [vmem:[%s312 + $0x38] sm:$0xff]
          %v3354 = vld [vmem:[%s312 + $0x40] sm:$0xff]
          %v3355 = vld [vmem:[%s312 + $0x48] sm:$0xff]
          %v3356 = vld [vmem:[%s312 + $0x50] sm:$0xff]
          %v3357 = vld [vmem:[%s312 + $0x58] sm:$0xff]
          %v3358 = vld [vmem:[%s312 + $0x60] sm:$0xff]
          %v3359 = vld [vmem:[%s312 + $0x68] sm:$0xff]
          %v3360 = vld [vmem:[%s312 + $0x70] sm:$0xff]
          %v3361 = vld [vmem:[%s312 + $0x78] sm:$0xff]
          %v3362 = vld [vmem:[%s312 + $0x80] sm:$0xff]
          %v3363 = vld [vmem:[%s312 + $0x88] sm:$0xff]
          %v3364 = vld [vmem:[%s312 + $0x90] sm:$0xff]
          %v3365 = vld [vmem:[%s312 + $0x98] sm:$0xff]
          %v3366 = vld [vmem:[%s312 + $0xa0] sm:$0xff]
          %v3367 = vld [vmem:[%s312 + $0xa8] sm:$0xff]
          %v3368 = vld [vmem:[%s312 + $0xb0] sm:$0xff]
          %v3369 = vld [vmem:[%s312 + $0xb8] sm:$0xff]
          %v3370 = vld [vmem:[%s312 + $0xc0] sm:$0xff]
          %v3371 = vld [vmem:[%s312 + $0xc8] sm:$0xff]
          %v3372 = vld [vmem:[%s312 + $0xd0] sm:$0xff]
          %v3373 = vld [vmem:[%s312 + $0xd8] sm:$0xff]
          %v3374 = vld [vmem:[%s312 + $0xe0] sm:$0xff]
          %v3375 = vld [vmem:[%s312 + $0xe8] sm:$0xff]
          %v3376 = vld [vmem:[%s312 + $0xf0] sm:$0xff]
          %v3377 = vld [vmem:[%s312 + $0xf8] sm:$0xff]
          %v3378 = vld [vmem:[%s312 + $0x100] sm:$0xff]
          %v3379 = vld [vmem:[%s312 + $0x108] sm:$0xff]
          %v3380 = vld [vmem:[%s312 + $0x110] sm:$0xff]
          %v3381 = vld [vmem:[%s312 + $0x118] sm:$0xff]
          %v3382 = vld [vmem:[%s312 + $0x120] sm:$0xff]
          %v3383 = vld [vmem:[%s312 + $0x128] sm:$0xff]
          %v3384 = vld [vmem:[%s312 + $0x130] sm:$0xff]
          %v3385 = vld [vmem:[%s312 + $0x138] sm:$0xff]
          %v3386 = vld [vmem:[%s312 + $0x140] sm:$0xff]
          %v3387 = vld [vmem:[%s312 + $0x148] sm:$0xff]
          %v3388 = vld [vmem:[%s312 + $0x150] sm:$0xff]
          %v3389 = vld [vmem:[%s312 + $0x158] sm:$0xff]
          %v3390 = vld [vmem:[%s312 + $0x160] sm:$0xff]
          %v3391 = vld [vmem:[%s312 + $0x168] sm:$0xff]
          %v3392 = vld [vmem:[%s312 + $0x170] sm:$0xff]
          %v3393 = vld [vmem:[%s312 + $0x178] sm:$0xff]
          %v3394 = vld [vmem:[%s312 + $0x180] sm:$0xff]
          %v3395 = vld [vmem:[%s312 + $0x188] sm:$0xff]
          %v3396 = vld [vmem:[%s312 + $0x190] sm:$0xff]
          %v3397 = vld [vmem:[%s312 + $0x198] sm:$0xff]
          %v3398 = vld [vmem:[%s312 + $0x1a0] sm:$0xff]
          %v3399 = vld [vmem:[%s312 + $0x1a8] sm:$0xff]
          %v3400 = vld [vmem:[%s312 + $0x1b0] sm:$0xff]
          %v3401 = vld [vmem:[%s312 + $0x1b8] sm:$0xff]
          %v3402 = vld [vmem:[%s312 + $0x1c0] sm:$0xff]
          %v3403 = vld [vmem:[%s312 + $0x1c8] sm:$0xff]
          %v3404 = vld [vmem:[%s312 + $0x1d0] sm:$0xff]
          %v3405 = vld [vmem:[%s312 + $0x1d8] sm:$0xff]
          %v3406 = vld [vmem:[%s312 + $0x1e0] sm:$0xff]
          %v3407 = vld [vmem:[%s312 + $0x1e8] sm:$0xff]
          %v3408 = vld [vmem:[%s312 + $0x1f0] sm:$0xff]
          %v3409 = vld [vmem:[%s312 + $0x1f8] sm:$0xff]
          %v3410 = vld [vmem:[%s312 + $0x200] sm:$0xff]
          %v3411 = vld [vmem:[%s312 + $0x208] sm:$0xff]
          %v3412 = vld [vmem:[%s312 + $0x210] sm:$0xff]
          %v3413 = vld [vmem:[%s312 + $0x218] sm:$0xff]
          %v3414 = vld [vmem:[%s312 + $0x220] sm:$0xff]
          %v3415 = vld [vmem:[%s312 + $0x228] sm:$0xff]
          %v3416 = vld [vmem:[%s312 + $0x230] sm:$0xff]
          %v3417 = vld [vmem:[%s312 + $0x238] sm:$0xff]
          %v3418 = vld [vmem:[%s312 + $0x240] sm:$0xff]
          %v3419 = vld [vmem:[%s312 + $0x248] sm:$0xff]
          %v3420 = vld [vmem:[%s312 + $0x250] sm:$0xff]
          %v3421 = vld [vmem:[%s312 + $0x258] sm:$0xff]
          %v3422 = vld [vmem:[%s312 + $0x260] sm:$0xff]
          %v3423 = vld [vmem:[%s312 + $0x268] sm:$0xff]
          %v3424 = vld [vmem:[%s312 + $0x270] sm:$0xff]
          %v3425 = vld [vmem:[%s312 + $0x278] sm:$0xff]
          %v3426 = vld [vmem:[%s312 + $0x280] sm:$0xff]
          %v3427 = vld [vmem:[%s312 + $0x288] sm:$0xff]
          %v3428 = vld [vmem:[%s312 + $0x290] sm:$0xff]
          %v3429 = vld [vmem:[%s312 + $0x298] sm:$0xff]
          %v3430 = vld [vmem:[%s312 + $0x2a0] sm:$0xff]
          %v3431 = vld [vmem:[%s312 + $0x2a8] sm:$0xff]
          %v3432 = vld [vmem:[%s312 + $0x2b0] sm:$0xff]
          %v3433 = vld [vmem:[%s312 + $0x2b8] sm:$0xff]
          %v3434 = vld [vmem:[%s312 + $0x2c0] sm:$0xff]
          %v3435 = vld [vmem:[%s312 + $0x2c8] sm:$0xff]
          %v3436 = vld [vmem:[%s312 + $0x2d0] sm:$0xff]
          %v3437 = vld [vmem:[%s312 + $0x2d8] sm:$0xff]
          %v3438 = vld [vmem:[%s312 + $0x2e0] sm:$0xff]
          %v3439 = vld [vmem:[%s312 + $0x2e8] sm:$0xff]
          %v3440 = vld [vmem:[%s312 + $0x2f0] sm:$0xff]
          %v3441 = vld [vmem:[%s312 + $0x2f8] sm:$0xff]
          %v3442 = vld [vmem:[%s312 + $0x300] sm:$0xff]
          %v3443 = vld [vmem:[%s312 + $0x308] sm:$0xff]
          %v3444 = vld [vmem:[%s312 + $0x310] sm:$0xff]
          %v3445 = vld [vmem:[%s312 + $0x318] sm:$0xff]
          %v3446 = vld [vmem:[%s312 + $0x320] sm:$0xff]
          %v3447 = vld [vmem:[%s312 + $0x328] sm:$0xff]
          %v3448 = vld [vmem:[%s312 + $0x330] sm:$0xff]
          %v3449 = vld [vmem:[%s312 + $0x338] sm:$0xff]
          %v3450 = vld [vmem:[%s312 + $0x340] sm:$0xff]
          %v3451 = vld [vmem:[%s312 + $0x348] sm:$0xff]
          %v3452 = vld [vmem:[%s312 + $0x350] sm:$0xff]
          %v3453 = vld [vmem:[%s312 + $0x358] sm:$0xff]
          %v3454 = vld [vmem:[%s312 + $0x360] sm:$0xff]
          %v3455 = vld [vmem:[%s312 + $0x368] sm:$0xff]
          %v3456 = vld [vmem:[%s312 + $0x370] sm:$0xff]
          %v3457 = vld [vmem:[%s312 + $0x378] sm:$0xff]
          %v3458 = vld [vmem:[%s312 + $0x380] sm:$0xff]
          %v3459 = vld [vmem:[%s312 + $0x388] sm:$0xff]
          %v3460 = vld [vmem:[%s312 + $0x390] sm:$0xff]
          %v3461 = vld [vmem:[%s312 + $0x398] sm:$0xff]
          %v3462 = vld [vmem:[%s312 + $0x3a0] sm:$0xff]
          %v3463 = vld [vmem:[%s312 + $0x3a8] sm:$0xff]
          %v3464 = vld [vmem:[%s312 + $0x3b0] sm:$0xff]
          %v3465 = vld [vmem:[%s312 + $0x3b8] sm:$0xff]
          %v3466 = vld [vmem:[%s312 + $0x3c0] sm:$0xff]
          %v3467 = vld [vmem:[%s312 + $0x3c8] sm:$0xff]
          %v3468 = vld [vmem:[%s312 + $0x3d0] sm:$0xff]
          %v3469 = vld [vmem:[%s312 + $0x3d8] sm:$0xff]
          %v3470 = vld [vmem:[%s312 + $0x3e0] sm:$0xff]
          %v3471 = vld [vmem:[%s312 + $0x3e8] sm:$0xff]
          %v3472 = vld [vmem:[%s312 + $0x3f0] sm:$0xff]
          %v3473 = vld [vmem:[%s312 + $0x3f8] sm:$0xff]
          %v3474 = vld [vmem:[%s312 + $0x400] sm:$0xff]
          %v3475 = vld [vmem:[%s312 + $0x408] sm:$0xff]
          %v3476 = vld [vmem:[%s312 + $0x410] sm:$0xff]
          %v3477 = vld [vmem:[%s312 + $0x418] sm:$0xff]
          %v3478 = vld [vmem:[%s312 + $0x420] sm:$0xff]
          %v3479 = vld [vmem:[%s312 + $0x428] sm:$0xff]
          %v3480 = vld [vmem:[%s312 + $0x430] sm:$0xff]
          %v3481 = vld [vmem:[%s312 + $0x438] sm:$0xff]
          %v3482 = vld [vmem:[%s312 + $0x440] sm:$0xff]
          %v3483 = vld [vmem:[%s312 + $0x448] sm:$0xff]
          %v3484 = vld [vmem:[%s312 + $0x450] sm:$0xff]
          %v3485 = vld [vmem:[%s312 + $0x458] sm:$0xff]
          %v3486 = vld [vmem:[%s312 + $0x460] sm:$0xff]
          %v3487 = vld [vmem:[%s312 + $0x468] sm:$0xff]
          %v3488 = vld [vmem:[%s312 + $0x470] sm:$0xff]
          %v3489 = vld [vmem:[%s312 + $0x478] sm:$0xff]
          %v3490 = vld [vmem:[%s312 + $0x480] sm:$0xff]
          %v3491 = vld [vmem:[%s312 + $0x488] sm:$0xff]
          %v3492 = vld [vmem:[%s312 + $0x490] sm:$0xff]
          %v3493 = vld [vmem:[%s312 + $0x498] sm:$0xff]
          %v3494 = vld [vmem:[%s312 + $0x4a0] sm:$0xff]
          %v3495 = vld [vmem:[%s312 + $0x4a8] sm:$0xff]
          %v3496 = vld [vmem:[%s312 + $0x4b0] sm:$0xff]
          %v3497 = vld [vmem:[%s312 + $0x4b8] sm:$0xff]
          %v3498 = vld [vmem:[%s312 + $0x4c0] sm:$0xff]
          %v3499 = vld [vmem:[%s312 + $0x4c8] sm:$0xff]
          %v3500 = vld [vmem:[%s312 + $0x4d0] sm:$0xff]
          %v3501 = vld [vmem:[%s312 + $0x4d8] sm:$0xff]
          %v3502 = vld [vmem:[%s312 + $0x4e0] sm:$0xff]
          %v3503 = vld [vmem:[%s312 + $0x4e8] sm:$0xff]
          %v3504 = vld [vmem:[%s312 + $0x4f0] sm:$0xff]
          %v3505 = vld [vmem:[%s312 + $0x4f8] sm:$0xff]
          %v3506 = vld [vmem:[%s312 + $0x500] sm:$0xff]
          %v3507 = vld [vmem:[%s312 + $0x508] sm:$0xff]
          %v3508 = vld [vmem:[%s312 + $0x510] sm:$0xff]
          %v3509 = vld [vmem:[%s312 + $0x518] sm:$0xff]
          %v3510 = vld [vmem:[%s312 + $0x520] sm:$0xff]
          %v3511 = vld [vmem:[%s312 + $0x528] sm:$0xff]
          %v3512 = vld [vmem:[%s312 + $0x530] sm:$0xff]
          %v3513 = vld [vmem:[%s312 + $0x538] sm:$0xff]
          %v3514 = vld [vmem:[%s312 + $0x540] sm:$0xff]
          %v3515 = vld [vmem:[%s312 + $0x548] sm:$0xff]
          %v3516 = vld [vmem:[%s312 + $0x550] sm:$0xff]
          %v3517 = vld [vmem:[%s312 + $0x558] sm:$0xff]
          %v3518 = vld [vmem:[%s312 + $0x560] sm:$0xff]
          %v3519 = vld [vmem:[%s312 + $0x568] sm:$0xff]
          %v3520 = vld [vmem:[%s312 + $0x570] sm:$0xff]
          %v3521 = vld [vmem:[%s312 + $0x578] sm:$0xff]
          %v3522 = vld [vmem:[%s312 + $0x580] sm:$0xff]
          %v3523 = vld [vmem:[%s312 + $0x588] sm:$0xff]
          %v3524 = vld [vmem:[%s312 + $0x590] sm:$0xff]
          %v3525 = vld [vmem:[%s312 + $0x598] sm:$0xff]
          %v3526 = vld [vmem:[%s312 + $0x5a0] sm:$0xff]
          %v3527 = vld [vmem:[%s312 + $0x5a8] sm:$0xff]
          %v3528 = vld [vmem:[%s312 + $0x5b0] sm:$0xff]
          %v3529 = vld [vmem:[%s312 + $0x5b8] sm:$0xff]
          %v3530 = vld [vmem:[%s312 + $0x5c0] sm:$0xff]
          %v3531 = vld [vmem:[%s312 + $0x5c8] sm:$0xff]
          %v3532 = vld [vmem:[%s312 + $0x5d0] sm:$0xff]
          %v3533 = vld [vmem:[%s312 + $0x5d8] sm:$0xff]
          %v3534 = vld [vmem:[%s312 + $0x5e0] sm:$0xff]
          %v3535 = vld [vmem:[%s312 + $0x5e8] sm:$0xff]
          %v3536 = vld [vmem:[%s312 + $0x5f0] sm:$0xff]
          %v3537 = vld [vmem:[%s312 + $0x5f8] sm:$0xff]
          %v3538 = vld [vmem:[%s312 + $0x600] sm:$0xff]
          %v3539 = vld [vmem:[%s312 + $0x608] sm:$0xff]
          %v3540 = vld [vmem:[%s312 + $0x610] sm:$0xff]
          %v3541 = vld [vmem:[%s312 + $0x618] sm:$0xff]
          %v3542 = vld [vmem:[%s312 + $0x620] sm:$0xff]
          %v3543 = vld [vmem:[%s312 + $0x628] sm:$0xff]
          %v3544 = vld [vmem:[%s312 + $0x630] sm:$0xff]
          %v3545 = vld [vmem:[%s312 + $0x638] sm:$0xff]
          %v3546 = vld [vmem:[%s312 + $0x640] sm:$0xff]
          %v3547 = vld [vmem:[%s312 + $0x648] sm:$0xff]
          %v3548 = vld [vmem:[%s312 + $0x650] sm:$0xff]
          %v3549 = vld [vmem:[%s312 + $0x658] sm:$0xff]
          %v3550 = vld [vmem:[%s312 + $0x660] sm:$0xff]
          %v3551 = vld [vmem:[%s312 + $0x668] sm:$0xff]
          %v3552 = vld [vmem:[%s312 + $0x670] sm:$0xff]
          %v3553 = vld [vmem:[%s312 + $0x678] sm:$0xff]
          %v3554 = vld [vmem:[%s312 + $0x680] sm:$0xff]
          %v3555 = vld [vmem:[%s312 + $0x688] sm:$0xff]
          %v3556 = vld [vmem:[%s312 + $0x690] sm:$0xff]
          %v3557 = vld [vmem:[%s312 + $0x698] sm:$0xff]
          %v3558 = vld [vmem:[%s312 + $0x6a0] sm:$0xff]
          %v3559 = vld [vmem:[%s312 + $0x6a8] sm:$0xff]
          %v3560 = vld [vmem:[%s312 + $0x6b0] sm:$0xff]
          %v3561 = vld [vmem:[%s312 + $0x6b8] sm:$0xff]
          %v3562 = vld [vmem:[%s312 + $0x6c0] sm:$0xff]
          %v3563 = vld [vmem:[%s312 + $0x6c8] sm:$0xff]
          %v3564 = vld [vmem:[%s312 + $0x6d0] sm:$0xff]
          %v3565 = vld [vmem:[%s312 + $0x6d8] sm:$0xff]
          %v3566 = vld [vmem:[%s312 + $0x6e0] sm:$0xff]
          %v3567 = vld [vmem:[%s312 + $0x6e8] sm:$0xff]
          %v3568 = vld [vmem:[%s312 + $0x6f0] sm:$0xff]
          %v3569 = vld [vmem:[%s312 + $0x6f8] sm:$0xff]
          %v3570 = vld [vmem:[%s312 + $0x700] sm:$0xff]
          %v3571 = vld [vmem:[%s312 + $0x708] sm:$0xff]
          %v3572 = vld [vmem:[%s312 + $0x710] sm:$0xff]
          %v3573 = vld [vmem:[%s312 + $0x718] sm:$0xff]
          %v3574 = vld [vmem:[%s312 + $0x720] sm:$0xff]
          %v3575 = vld [vmem:[%s312 + $0x728] sm:$0xff]
          %v3576 = vld [vmem:[%s312 + $0x730] sm:$0xff]
          %v3577 = vld [vmem:[%s312 + $0x738] sm:$0xff]
          %v3578 = vld [vmem:[%s312 + $0x740] sm:$0xff]
          %v3579 = vld [vmem:[%s312 + $0x748] sm:$0xff]
          %v3580 = vld [vmem:[%s312 + $0x750] sm:$0xff]
          %v3581 = vld [vmem:[%s312 + $0x758] sm:$0xff]
          %v3582 = vld [vmem:[%s312 + $0x760] sm:$0xff]
          %v3583 = vld [vmem:[%s312 + $0x768] sm:$0xff]
          %v3584 = vld [vmem:[%s312 + $0x770] sm:$0xff]
          %v3585 = vld [vmem:[%s312 + $0x778] sm:$0xff]
          %v3586 = vld [vmem:[%s312 + $0x780] sm:$0xff]
          %v3587 = vld [vmem:[%s312 + $0x788] sm:$0xff]
          %v3588 = vld [vmem:[%s312 + $0x790] sm:$0xff]
          %v3589 = vld [vmem:[%s312 + $0x798] sm:$0xff]
          %v3590 = vld [vmem:[%s312 + $0x7a0] sm:$0xff]
          %v3591 = vld [vmem:[%s312 + $0x7a8] sm:$0xff]
          %v3592 = vld [vmem:[%s312 + $0x7b0] sm:$0xff]
          %v3593 = vld [vmem:[%s312 + $0x7b8] sm:$0xff]
          %v3594 = vld [vmem:[%s312 + $0x7c0] sm:$0xff]
          %v3595 = vld [vmem:[%s312 + $0x7c8] sm:$0xff]
          %v3596 = vld [vmem:[%s312 + $0x7d0] sm:$0xff]
          %v3597 = vld [vmem:[%s312 + $0x7d8] sm:$0xff]
          %v3598 = vld [vmem:[%s312 + $0x7e0] sm:$0xff]
          %v3599 = vld [vmem:[%s312 + $0x7e8] sm:$0xff]
          %v3600 = vld [vmem:[%s312 + $0x7f0] sm:$0xff]
          %v3601 = vld [vmem:[%s312 + $0x7f8] sm:$0xff]
          %v3602 = vld [vmem:[%s312 + $0x800] sm:$0xff]
          %v3603 = vld [vmem:[%s312 + $0x808] sm:$0xff]
          %v3604 = vld [vmem:[%s312 + $0x810] sm:$0xff]
          %v3605 = vld [vmem:[%s312 + $0x818] sm:$0xff]
          %v3606 = vld [vmem:[%s312 + $0x820] sm:$0xff]
          %v3607 = vld [vmem:[%s312 + $0x828] sm:$0xff]
          %v3608 = vld [vmem:[%s312 + $0x830] sm:$0xff]
          %v3609 = vld [vmem:[%s312 + $0x838] sm:$0xff]
          %v3610 = vld [vmem:[%s312 + $0x840] sm:$0xff]
          %v3611 = vld [vmem:[%s312 + $0x848] sm:$0xff]
          %v3612 = vld [vmem:[%s312 + $0x850] sm:$0xff]
          %v3613 = vld [vmem:[%s312 + $0x858] sm:$0xff]
          %v3614 = vld [vmem:[%s312 + $0x860] sm:$0xff]
          %v3615 = vld [vmem:[%s312 + $0x868] sm:$0xff]
          %v3616 = vld [vmem:[%s312 + $0x870] sm:$0xff]
          %v3617 = vld [vmem:[%s312 + $0x878] sm:$0xff]
          %v3618 = vld [vmem:[%s312 + $0x880] sm:$0xff]
          %v3619 = vld [vmem:[%s312 + $0x888] sm:$0xff]
          %v3620 = vld [vmem:[%s312 + $0x890] sm:$0xff]
          %v3621 = vld [vmem:[%s312 + $0x898] sm:$0xff]
          %v3622 = vld [vmem:[%s312 + $0x8a0] sm:$0xff]
          %v3623 = vld [vmem:[%s312 + $0x8a8] sm:$0xff]
          %v3624 = vld [vmem:[%s312 + $0x8b0] sm:$0xff]
          %v3625 = vld [vmem:[%s312 + $0x8b8] sm:$0xff]
          %v3626 = vld [vmem:[%s312 + $0x8c0] sm:$0xff]
          %v3627 = vld [vmem:[%s312 + $0x8c8] sm:$0xff]
          %v3628 = vld [vmem:[%s312 + $0x8d0] sm:$0xff]
          %v3629 = vld [vmem:[%s312 + $0x8d8] sm:$0xff]
          %v3630 = vld [vmem:[%s312 + $0x8e0] sm:$0xff]
          %v3631 = vld [vmem:[%s312 + $0x8e8] sm:$0xff]
          %v3632 = vld [vmem:[%s312 + $0x8f0] sm:$0xff]
          %v3633 = vld [vmem:[%s312 + $0x8f8] sm:$0xff]
          %v3922 = vunpack.c.l.b16 %v3346
          %v3923 = vunpack.c.h.b16 %v3346
          %v3924 = vunpack.c.l.b16 %v3347
          %v3925 = vunpack.c.h.b16 %v3347
          %v3926 = vunpack.c.l.b16 %v3348
          %v3927 = vunpack.c.h.b16 %v3348
          %v3928 = vunpack.c.l.b16 %v3349
          %v3929 = vunpack.c.h.b16 %v3349
          %v3930 = vunpack.c.l.b16 %v3350
          %v3931 = vunpack.c.h.b16 %v3350
          %v3932 = vunpack.c.l.b16 %v3351
          %v3933 = vunpack.c.h.b16 %v3351
          %v3934 = vunpack.c.l.b16 %v3352
          %v3935 = vunpack.c.h.b16 %v3352
          %v3936 = vunpack.c.l.b16 %v3353
          %v3937 = vunpack.c.h.b16 %v3353
          %v3938 = vunpack.c.l.b16 %v3354
          %v3939 = vunpack.c.h.b16 %v3354
          %v3940 = vunpack.c.l.b16 %v3355
          %v3941 = vunpack.c.h.b16 %v3355
          %v3942 = vunpack.c.l.b16 %v3356
          %v3943 = vunpack.c.h.b16 %v3356
          %v3944 = vunpack.c.l.b16 %v3357
          %v3945 = vunpack.c.h.b16 %v3357
          %v3946 = vunpack.c.l.b16 %v3358
          %v3947 = vunpack.c.h.b16 %v3358
          %v3948 = vunpack.c.l.b16 %v3359
          %v3949 = vunpack.c.h.b16 %v3359
          %v3950 = vunpack.c.l.b16 %v3360
          %v3951 = vunpack.c.h.b16 %v3360
          %v3952 = vunpack.c.l.b16 %v3361
          %v3953 = vunpack.c.h.b16 %v3361
          %v3954 = vunpack.c.l.b16 %v3362
          %v3955 = vunpack.c.h.b16 %v3362
          %v3956 = vunpack.c.l.b16 %v3363
          %v3957 = vunpack.c.h.b16 %v3363
          %v3958 = vunpack.c.l.b16 %v3364
          %v3959 = vunpack.c.h.b16 %v3364
          %v3960 = vunpack.c.l.b16 %v3365
          %v3961 = vunpack.c.h.b16 %v3365
          %v3962 = vunpack.c.l.b16 %v3366
          %v3963 = vunpack.c.h.b16 %v3366
          %v3964 = vunpack.c.l.b16 %v3367
          %v3965 = vunpack.c.h.b16 %v3367
          %v3966 = vunpack.c.l.b16 %v3368
          %v3967 = vunpack.c.h.b16 %v3368
          %v3968 = vunpack.c.l.b16 %v3369
          %v3969 = vunpack.c.h.b16 %v3369
          %v3970 = vunpack.c.l.b16 %v3370
          %v3971 = vunpack.c.h.b16 %v3370
          %v3972 = vunpack.c.l.b16 %v3371
          %v3973 = vunpack.c.h.b16 %v3371
          %v3974 = vunpack.c.l.b16 %v3372
          %v3975 = vunpack.c.h.b16 %v3372
          %v3976 = vunpack.c.l.b16 %v3373
          %v3977 = vunpack.c.h.b16 %v3373
          %v3978 = vunpack.c.l.b16 %v3374
          %v3979 = vunpack.c.h.b16 %v3374
          %v3980 = vunpack.c.l.b16 %v3375
          %v3981 = vunpack.c.h.b16 %v3375
          %v3982 = vunpack.c.l.b16 %v3376
          %v3983 = vunpack.c.h.b16 %v3376
          %v3984 = vunpack.c.l.b16 %v3377
          %v3985 = vunpack.c.h.b16 %v3377
          %v3986 = vunpack.c.l.b16 %v3378
          %v3987 = vunpack.c.h.b16 %v3378
          %v3988 = vunpack.c.l.b16 %v3379
          %v3989 = vunpack.c.h.b16 %v3379
          %v3990 = vunpack.c.l.b16 %v3380
          %v3991 = vunpack.c.h.b16 %v3380
          %v3992 = vunpack.c.l.b16 %v3381
          %v3993 = vunpack.c.h.b16 %v3381
          %v3994 = vunpack.c.l.b16 %v3382
          %v3995 = vunpack.c.h.b16 %v3382
          %v3996 = vunpack.c.l.b16 %v3383
          %v3997 = vunpack.c.h.b16 %v3383
          %v3998 = vunpack.c.l.b16 %v3384
          %v3999 = vunpack.c.h.b16 %v3384
          %v4000 = vunpack.c.l.b16 %v3385
          %v4001 = vunpack.c.h.b16 %v3385
          %v4002 = vunpack.c.l.b16 %v3386
          %v4003 = vunpack.c.h.b16 %v3386
          %v4004 = vunpack.c.l.b16 %v3387
          %v4005 = vunpack.c.h.b16 %v3387
          %v4006 = vunpack.c.l.b16 %v3388
          %v4007 = vunpack.c.h.b16 %v3388
          %v4008 = vunpack.c.l.b16 %v3389
          %v4009 = vunpack.c.h.b16 %v3389
          %v4010 = vunpack.c.l.b16 %v3390
          %v4011 = vunpack.c.h.b16 %v3390
          %v4012 = vunpack.c.l.b16 %v3391
          %v4013 = vunpack.c.h.b16 %v3391
          %v4014 = vunpack.c.l.b16 %v3392
          %v4015 = vunpack.c.h.b16 %v3392
          %v4016 = vunpack.c.l.b16 %v3393
          %v4017 = vunpack.c.h.b16 %v3393
          %v4018 = vunpack.c.l.b16 %v3394
          %v4019 = vunpack.c.h.b16 %v3394
          %v4020 = vunpack.c.l.b16 %v3395
          %v4021 = vunpack.c.h.b16 %v3395
          %v4022 = vunpack.c.l.b16 %v3396
          %v4023 = vunpack.c.h.b16 %v3396
          %v4024 = vunpack.c.l.b16 %v3397
          %v4025 = vunpack.c.h.b16 %v3397
          %v4026 = vunpack.c.l.b16 %v3398
          %v4027 = vunpack.c.h.b16 %v3398
          %v4028 = vunpack.c.l.b16 %v3399
          %v4029 = vunpack.c.h.b16 %v3399
          %v4030 = vunpack.c.l.b16 %v3400
          %v4031 = vunpack.c.h.b16 %v3400
          %v4032 = vunpack.c.l.b16 %v3401
          %v4033 = vunpack.c.h.b16 %v3401
          %v4034 = vunpack.c.l.b16 %v3402
          %v4035 = vunpack.c.h.b16 %v3402
          %v4036 = vunpack.c.l.b16 %v3403
          %v4037 = vunpack.c.h.b16 %v3403
          %v4038 = vunpack.c.l.b16 %v3404
          %v4039 = vunpack.c.h.b16 %v3404
          %v4040 = vunpack.c.l.b16 %v3405
          %v4041 = vunpack.c.h.b16 %v3405
          %v4042 = vunpack.c.l.b16 %v3406
          %v4043 = vunpack.c.h.b16 %v3406
          %v4044 = vunpack.c.l.b16 %v3407
          %v4045 = vunpack.c.h.b16 %v3407
          %v4046 = vunpack.c.l.b16 %v3408
          %v4047 = vunpack.c.h.b16 %v3408
          %v4048 = vunpack.c.l.b16 %v3409
          %v4049 = vunpack.c.h.b16 %v3409
          %v4050 = vunpack.c.l.b16 %v3410
          %v4051 = vunpack.c.h.b16 %v3410
          %v4052 = vunpack.c.l.b16 %v3411
          %v4053 = vunpack.c.h.b16 %v3411
          %v4054 = vunpack.c.l.b16 %v3412
          %v4055 = vunpack.c.h.b16 %v3412
          %v4056 = vunpack.c.l.b16 %v3413
          %v4057 = vunpack.c.h.b16 %v3413
          %v4058 = vunpack.c.l.b16 %v3414
          %v4059 = vunpack.c.h.b16 %v3414
          %v4060 = vunpack.c.l.b16 %v3415
          %v4061 = vunpack.c.h.b16 %v3415
          %v4062 = vunpack.c.l.b16 %v3416
          %v4063 = vunpack.c.h.b16 %v3416
          %v4064 = vunpack.c.l.b16 %v3417
          %v4065 = vunpack.c.h.b16 %v3417
          %v4066 = vunpack.c.l.b16 %v3418
          %v4067 = vunpack.c.h.b16 %v3418
          %v4068 = vunpack.c.l.b16 %v3419
          %v4069 = vunpack.c.h.b16 %v3419
          %v4070 = vunpack.c.l.b16 %v3420
          %v4071 = vunpack.c.h.b16 %v3420
          %v4072 = vunpack.c.l.b16 %v3421
          %v4073 = vunpack.c.h.b16 %v3421
          %v4074 = vunpack.c.l.b16 %v3422
          %v4075 = vunpack.c.h.b16 %v3422
          %v4076 = vunpack.c.l.b16 %v3423
          %v4077 = vunpack.c.h.b16 %v3423
          %v4078 = vunpack.c.l.b16 %v3424
          %v4079 = vunpack.c.h.b16 %v3424
          %v4080 = vunpack.c.l.b16 %v3425
          %v4081 = vunpack.c.h.b16 %v3425
          %v4082 = vunpack.c.l.b16 %v3426
          %v4083 = vunpack.c.h.b16 %v3426
          %v4084 = vunpack.c.l.b16 %v3427
          %v4085 = vunpack.c.h.b16 %v3427
          %v4086 = vunpack.c.l.b16 %v3428
          %v4087 = vunpack.c.h.b16 %v3428
          %v4088 = vunpack.c.l.b16 %v3429
          %v4089 = vunpack.c.h.b16 %v3429
          %v4090 = vunpack.c.l.b16 %v3430
          %v4091 = vunpack.c.h.b16 %v3430
          %v4092 = vunpack.c.l.b16 %v3431
          %v4093 = vunpack.c.h.b16 %v3431
          %v4094 = vunpack.c.l.b16 %v3432
          %v4095 = vunpack.c.h.b16 %v3432
          %v4096 = vunpack.c.l.b16 %v3433
          %v4097 = vunpack.c.h.b16 %v3433
          %v4098 = vunpack.c.l.b16 %v3434
          %v4099 = vunpack.c.h.b16 %v3434
          %v4100 = vunpack.c.l.b16 %v3435
          %v4101 = vunpack.c.h.b16 %v3435
          %v4102 = vunpack.c.l.b16 %v3436
          %v4103 = vunpack.c.h.b16 %v3436
          %v4104 = vunpack.c.l.b16 %v3437
          %v4105 = vunpack.c.h.b16 %v3437
          %v4106 = vunpack.c.l.b16 %v3438
          %v4107 = vunpack.c.h.b16 %v3438
          %v4108 = vunpack.c.l.b16 %v3439
          %v4109 = vunpack.c.h.b16 %v3439
          %v4110 = vunpack.c.l.b16 %v3440
          %v4111 = vunpack.c.h.b16 %v3440
          %v4112 = vunpack.c.l.b16 %v3441
          %v4113 = vunpack.c.h.b16 %v3441
          %v4114 = vunpack.c.l.b16 %v3442
          %v4115 = vunpack.c.h.b16 %v3442
          %v4116 = vunpack.c.l.b16 %v3443
          %v4117 = vunpack.c.h.b16 %v3443
          %v4118 = vunpack.c.l.b16 %v3444
          %v4119 = vunpack.c.h.b16 %v3444
          %v4120 = vunpack.c.l.b16 %v3445
          %v4121 = vunpack.c.h.b16 %v3445
          %v4122 = vunpack.c.l.b16 %v3446
          %v4123 = vunpack.c.h.b16 %v3446
          %v4124 = vunpack.c.l.b16 %v3447
          %v4125 = vunpack.c.h.b16 %v3447
          %v4126 = vunpack.c.l.b16 %v3448
          %v4127 = vunpack.c.h.b16 %v3448
          %v4128 = vunpack.c.l.b16 %v3449
          %v4129 = vunpack.c.h.b16 %v3449
          %v4130 = vunpack.c.l.b16 %v3450
          %v4131 = vunpack.c.h.b16 %v3450
          %v4132 = vunpack.c.l.b16 %v3451
          %v4133 = vunpack.c.h.b16 %v3451
          %v4134 = vunpack.c.l.b16 %v3452
          %v4135 = vunpack.c.h.b16 %v3452
          %v4136 = vunpack.c.l.b16 %v3453
          %v4137 = vunpack.c.h.b16 %v3453
          %v4138 = vunpack.c.l.b16 %v3454
          %v4139 = vunpack.c.h.b16 %v3454
          %v4140 = vunpack.c.l.b16 %v3455
          %v4141 = vunpack.c.h.b16 %v3455
          %v4142 = vunpack.c.l.b16 %v3456
          %v4143 = vunpack.c.h.b16 %v3456
          %v4144 = vunpack.c.l.b16 %v3457
          %v4145 = vunpack.c.h.b16 %v3457
          %v4146 = vunpack.c.l.b16 %v3458
          %v4147 = vunpack.c.h.b16 %v3458
          %v4148 = vunpack.c.l.b16 %v3459
          %v4149 = vunpack.c.h.b16 %v3459
          %v4150 = vunpack.c.l.b16 %v3460
          %v4151 = vunpack.c.h.b16 %v3460
          %v4152 = vunpack.c.l.b16 %v3461
          %v4153 = vunpack.c.h.b16 %v3461
          %v4154 = vunpack.c.l.b16 %v3462
          %v4155 = vunpack.c.h.b16 %v3462
          %v4156 = vunpack.c.l.b16 %v3463
          %v4157 = vunpack.c.h.b16 %v3463
          %v4158 = vunpack.c.l.b16 %v3464
          %v4159 = vunpack.c.h.b16 %v3464
          %v4160 = vunpack.c.l.b16 %v3465
          %v4161 = vunpack.c.h.b16 %v3465
          %v4162 = vunpack.c.l.b16 %v3466
          %v4163 = vunpack.c.h.b16 %v3466
          %v4164 = vunpack.c.l.b16 %v3467
          %v4165 = vunpack.c.h.b16 %v3467
          %v4166 = vunpack.c.l.b16 %v3468
          %v4167 = vunpack.c.h.b16 %v3468
          %v4168 = vunpack.c.l.b16 %v3469
          %v4169 = vunpack.c.h.b16 %v3469
          %v4170 = vunpack.c.l.b16 %v3470
          %v4171 = vunpack.c.h.b16 %v3470
          %v4172 = vunpack.c.l.b16 %v3471
          %v4173 = vunpack.c.h.b16 %v3471
          %v4174 = vunpack.c.l.b16 %v3472
          %v4175 = vunpack.c.h.b16 %v3472
          %v4176 = vunpack.c.l.b16 %v3473
          %v4177 = vunpack.c.h.b16 %v3473
          %v4178 = vunpack.c.l.b16 %v3474
          %v4179 = vunpack.c.h.b16 %v3474
          %v4180 = vunpack.c.l.b16 %v3475
          %v4181 = vunpack.c.h.b16 %v3475
          %v4182 = vunpack.c.l.b16 %v3476
          %v4183 = vunpack.c.h.b16 %v3476
          %v4184 = vunpack.c.l.b16 %v3477
          %v4185 = vunpack.c.h.b16 %v3477
          %v4186 = vunpack.c.l.b16 %v3478
          %v4187 = vunpack.c.h.b16 %v3478
          %v4188 = vunpack.c.l.b16 %v3479
          %v4189 = vunpack.c.h.b16 %v3479
          %v4190 = vunpack.c.l.b16 %v3480
          %v4191 = vunpack.c.h.b16 %v3480
          %v4192 = vunpack.c.l.b16 %v3481
          %v4193 = vunpack.c.h.b16 %v3481
          %v4194 = vunpack.c.l.b16 %v3482
          %v4195 = vunpack.c.h.b16 %v3482
          %v4196 = vunpack.c.l.b16 %v3483
          %v4197 = vunpack.c.h.b16 %v3483
          %v4198 = vunpack.c.l.b16 %v3484
          %v4199 = vunpack.c.h.b16 %v3484
          %v4200 = vunpack.c.l.b16 %v3485
          %v4201 = vunpack.c.h.b16 %v3485
          %v4202 = vunpack.c.l.b16 %v3486
          %v4203 = vunpack.c.h.b16 %v3486
          %v4204 = vunpack.c.l.b16 %v3487
          %v4205 = vunpack.c.h.b16 %v3487
          %v4206 = vunpack.c.l.b16 %v3488
          %v4207 = vunpack.c.h.b16 %v3488
          %v4208 = vunpack.c.l.b16 %v3489
          %v4209 = vunpack.c.h.b16 %v3489
          %v4210 = vunpack.c.l.b16 %v3490
          %v4211 = vunpack.c.h.b16 %v3490
          %v4212 = vunpack.c.l.b16 %v3491
          %v4213 = vunpack.c.h.b16 %v3491
          %v4214 = vunpack.c.l.b16 %v3492
          %v4215 = vunpack.c.h.b16 %v3492
          %v4216 = vunpack.c.l.b16 %v3493
          %v4217 = vunpack.c.h.b16 %v3493
          %v4218 = vunpack.c.l.b16 %v3494
          %v4219 = vunpack.c.h.b16 %v3494
          %v4220 = vunpack.c.l.b16 %v3495
          %v4221 = vunpack.c.h.b16 %v3495
          %v4222 = vunpack.c.l.b16 %v3496
          %v4223 = vunpack.c.h.b16 %v3496
          %v4224 = vunpack.c.l.b16 %v3497
          %v4225 = vunpack.c.h.b16 %v3497
          %v4226 = vunpack.c.l.b16 %v3498
          %v4227 = vunpack.c.h.b16 %v3498
          %v4228 = vunpack.c.l.b16 %v3499
          %v4229 = vunpack.c.h.b16 %v3499
          %v4230 = vunpack.c.l.b16 %v3500
          %v4231 = vunpack.c.h.b16 %v3500
          %v4232 = vunpack.c.l.b16 %v3501
          %v4233 = vunpack.c.h.b16 %v3501
          %v4234 = vunpack.c.l.b16 %v3502
          %v4235 = vunpack.c.h.b16 %v3502
          %v4236 = vunpack.c.l.b16 %v3503
          %v4237 = vunpack.c.h.b16 %v3503
          %v4238 = vunpack.c.l.b16 %v3504
          %v4239 = vunpack.c.h.b16 %v3504
          %v4240 = vunpack.c.l.b16 %v3505
          %v4241 = vunpack.c.h.b16 %v3505
          %v4242 = vunpack.c.l.b16 %v3506
          %v4243 = vunpack.c.h.b16 %v3506
          %v4244 = vunpack.c.l.b16 %v3507
          %v4245 = vunpack.c.h.b16 %v3507
          %v4246 = vunpack.c.l.b16 %v3508
          %v4247 = vunpack.c.h.b16 %v3508
          %v4248 = vunpack.c.l.b16 %v3509
          %v4249 = vunpack.c.h.b16 %v3509
          %v4250 = vunpack.c.l.b16 %v3510
          %v4251 = vunpack.c.h.b16 %v3510
          %v4252 = vunpack.c.l.b16 %v3511
          %v4253 = vunpack.c.h.b16 %v3511
          %v4254 = vunpack.c.l.b16 %v3512
          %v4255 = vunpack.c.h.b16 %v3512
          %v4256 = vunpack.c.l.b16 %v3513
          %v4257 = vunpack.c.h.b16 %v3513
          %v4258 = vunpack.c.l.b16 %v3514
          %v4259 = vunpack.c.h.b16 %v3514
          %v4260 = vunpack.c.l.b16 %v3515
          %v4261 = vunpack.c.h.b16 %v3515
          %v4262 = vunpack.c.l.b16 %v3516
          %v4263 = vunpack.c.h.b16 %v3516
          %v4264 = vunpack.c.l.b16 %v3517
          %v4265 = vunpack.c.h.b16 %v3517
          %v4266 = vunpack.c.l.b16 %v3518
          %v4267 = vunpack.c.h.b16 %v3518
          %v4268 = vunpack.c.l.b16 %v3519
          %v4269 = vunpack.c.h.b16 %v3519
          %v4270 = vunpack.c.l.b16 %v3520
          %v4271 = vunpack.c.h.b16 %v3520
          %v4272 = vunpack.c.l.b16 %v3521
          %v4273 = vunpack.c.h.b16 %v3521
          %v4274 = vunpack.c.l.b16 %v3522
          %v4275 = vunpack.c.h.b16 %v3522
          %v4276 = vunpack.c.l.b16 %v3523
          %v4277 = vunpack.c.h.b16 %v3523
          %v4278 = vunpack.c.l.b16 %v3524
          %v4279 = vunpack.c.h.b16 %v3524
          %v4280 = vunpack.c.l.b16 %v3525
          %v4281 = vunpack.c.h.b16 %v3525
          %v4282 = vunpack.c.l.b16 %v3526
          %v4283 = vunpack.c.h.b16 %v3526
          %v4284 = vunpack.c.l.b16 %v3527
          %v4285 = vunpack.c.h.b16 %v3527
          %v4286 = vunpack.c.l.b16 %v3528
          %v4287 = vunpack.c.h.b16 %v3528
          %v4288 = vunpack.c.l.b16 %v3529
          %v4289 = vunpack.c.h.b16 %v3529
          %v4290 = vunpack.c.l.b16 %v3530
          %v4291 = vunpack.c.h.b16 %v3530
          %v4292 = vunpack.c.l.b16 %v3531
          %v4293 = vunpack.c.h.b16 %v3531
          %v4294 = vunpack.c.l.b16 %v3532
          %v4295 = vunpack.c.h.b16 %v3532
          %v4296 = vunpack.c.l.b16 %v3533
          %v4297 = vunpack.c.h.b16 %v3533
          %v4298 = vunpack.c.l.b16 %v3534
          %v4299 = vunpack.c.h.b16 %v3534
          %v4300 = vunpack.c.l.b16 %v3535
          %v4301 = vunpack.c.h.b16 %v3535
          %v4302 = vunpack.c.l.b16 %v3536
          %v4303 = vunpack.c.h.b16 %v3536
          %v4304 = vunpack.c.l.b16 %v3537
          %v4305 = vunpack.c.h.b16 %v3537
          %v4306 = vunpack.c.l.b16 %v3538
          %v4307 = vunpack.c.h.b16 %v3538
          %v4308 = vunpack.c.l.b16 %v3539
          %v4309 = vunpack.c.h.b16 %v3539
          %v4310 = vunpack.c.l.b16 %v3540
          %v4311 = vunpack.c.h.b16 %v3540
          %v4312 = vunpack.c.l.b16 %v3541
          %v4313 = vunpack.c.h.b16 %v3541
          %v4314 = vunpack.c.l.b16 %v3542
          %v4315 = vunpack.c.h.b16 %v3542
          %v4316 = vunpack.c.l.b16 %v3543
          %v4317 = vunpack.c.h.b16 %v3543
          %v4318 = vunpack.c.l.b16 %v3544
          %v4319 = vunpack.c.h.b16 %v3544
          %v4320 = vunpack.c.l.b16 %v3545
          %v4321 = vunpack.c.h.b16 %v3545
          %v4322 = vunpack.c.l.b16 %v3546
          %v4323 = vunpack.c.h.b16 %v3546
          %v4324 = vunpack.c.l.b16 %v3547
          %v4325 = vunpack.c.h.b16 %v3547
          %v4326 = vunpack.c.l.b16 %v3548
          %v4327 = vunpack.c.h.b16 %v3548
          %v4328 = vunpack.c.l.b16 %v3549
          %v4329 = vunpack.c.h.b16 %v3549
          %v4330 = vunpack.c.l.b16 %v3550
          %v4331 = vunpack.c.h.b16 %v3550
          %v4332 = vunpack.c.l.b16 %v3551
          %v4333 = vunpack.c.h.b16 %v3551
          %v4334 = vunpack.c.l.b16 %v3552
          %v4335 = vunpack.c.h.b16 %v3552
          %v4336 = vunpack.c.l.b16 %v3553
          %v4337 = vunpack.c.h.b16 %v3553
          %v4338 = vunpack.c.l.b16 %v3554
          %v4339 = vunpack.c.h.b16 %v3554
          %v4340 = vunpack.c.l.b16 %v3555
          %v4341 = vunpack.c.h.b16 %v3555
          %v4342 = vunpack.c.l.b16 %v3556
          %v4343 = vunpack.c.h.b16 %v3556
          %v4344 = vunpack.c.l.b16 %v3557
          %v4345 = vunpack.c.h.b16 %v3557
          %v4346 = vunpack.c.l.b16 %v3558
          %v4347 = vunpack.c.h.b16 %v3558
          %v4348 = vunpack.c.l.b16 %v3559
          %v4349 = vunpack.c.h.b16 %v3559
          %v4350 = vunpack.c.l.b16 %v3560
          %v4351 = vunpack.c.h.b16 %v3560
          %v4352 = vunpack.c.l.b16 %v3561
          %v4353 = vunpack.c.h.b16 %v3561
          %v4354 = vunpack.c.l.b16 %v3562
          %v4355 = vunpack.c.h.b16 %v3562
          %v4356 = vunpack.c.l.b16 %v3563
          %v4357 = vunpack.c.h.b16 %v3563
          %v4358 = vunpack.c.l.b16 %v3564
          %v4359 = vunpack.c.h.b16 %v3564
          %v4360 = vunpack.c.l.b16 %v3565
          %v4361 = vunpack.c.h.b16 %v3565
          %v4362 = vunpack.c.l.b16 %v3566
          %v4363 = vunpack.c.h.b16 %v3566
          %v4364 = vunpack.c.l.b16 %v3567
          %v4365 = vunpack.c.h.b16 %v3567
          %v4366 = vunpack.c.l.b16 %v3568
          %v4367 = vunpack.c.h.b16 %v3568
          %v4368 = vunpack.c.l.b16 %v3569
          %v4369 = vunpack.c.h.b16 %v3569
          %v4370 = vunpack.c.l.b16 %v3570
          %v4371 = vunpack.c.h.b16 %v3570
          %v4372 = vunpack.c.l.b16 %v3571
          %v4373 = vunpack.c.h.b16 %v3571
          %v4374 = vunpack.c.l.b16 %v3572
          %v4375 = vunpack.c.h.b16 %v3572
          %v4376 = vunpack.c.l.b16 %v3573
          %v4377 = vunpack.c.h.b16 %v3573
          %v4378 = vunpack.c.l.b16 %v3574
          %v4379 = vunpack.c.h.b16 %v3574
          %v4380 = vunpack.c.l.b16 %v3575
          %v4381 = vunpack.c.h.b16 %v3575
          %v4382 = vunpack.c.l.b16 %v3576
          %v4383 = vunpack.c.h.b16 %v3576
          %v4384 = vunpack.c.l.b16 %v3577
          %v4385 = vunpack.c.h.b16 %v3577
          %v4386 = vunpack.c.l.b16 %v3578
          %v4387 = vunpack.c.h.b16 %v3578
          %v4388 = vunpack.c.l.b16 %v3579
          %v4389 = vunpack.c.h.b16 %v3579
          %v4390 = vunpack.c.l.b16 %v3580
          %v4391 = vunpack.c.h.b16 %v3580
          %v4392 = vunpack.c.l.b16 %v3581
          %v4393 = vunpack.c.h.b16 %v3581
          %v4394 = vunpack.c.l.b16 %v3582
          %v4395 = vunpack.c.h.b16 %v3582
          %v4396 = vunpack.c.l.b16 %v3583
          %v4397 = vunpack.c.h.b16 %v3583
          %v4398 = vunpack.c.l.b16 %v3584
          %v4399 = vunpack.c.h.b16 %v3584
          %v4400 = vunpack.c.l.b16 %v3585
          %v4401 = vunpack.c.h.b16 %v3585
          %v4402 = vunpack.c.l.b16 %v3586
          %v4403 = vunpack.c.h.b16 %v3586
          %v4404 = vunpack.c.l.b16 %v3587
          %v4405 = vunpack.c.h.b16 %v3587
          %v4406 = vunpack.c.l.b16 %v3588
          %v4407 = vunpack.c.h.b16 %v3588
          %v4408 = vunpack.c.l.b16 %v3589
          %v4409 = vunpack.c.h.b16 %v3589
          %v4410 = vunpack.c.l.b16 %v3590
          %v4411 = vunpack.c.h.b16 %v3590
          %v4412 = vunpack.c.l.b16 %v3591
          %v4413 = vunpack.c.h.b16 %v3591
          %v4414 = vunpack.c.l.b16 %v3592
          %v4415 = vunpack.c.h.b16 %v3592
          %v4416 = vunpack.c.l.b16 %v3593
          %v4417 = vunpack.c.h.b16 %v3593
          %v4418 = vunpack.c.l.b16 %v3594
          %v4419 = vunpack.c.h.b16 %v3594
          %v4420 = vunpack.c.l.b16 %v3595
          %v4421 = vunpack.c.h.b16 %v3595
          %v4422 = vunpack.c.l.b16 %v3596
          %v4423 = vunpack.c.h.b16 %v3596
          %v4424 = vunpack.c.l.b16 %v3597
          %v4425 = vunpack.c.h.b16 %v3597
          %v4426 = vunpack.c.l.b16 %v3598
          %v4427 = vunpack.c.h.b16 %v3598
          %v4428 = vunpack.c.l.b16 %v3599
          %v4429 = vunpack.c.h.b16 %v3599
          %v4430 = vunpack.c.l.b16 %v3600
          %v4431 = vunpack.c.h.b16 %v3600
          %v4432 = vunpack.c.l.b16 %v3601
          %v4433 = vunpack.c.h.b16 %v3601
          %v4434 = vunpack.c.l.b16 %v3602
          %v4435 = vunpack.c.h.b16 %v3602
          %v4436 = vunpack.c.l.b16 %v3603
          %v4437 = vunpack.c.h.b16 %v3603
          %v4438 = vunpack.c.l.b16 %v3604
          %v4439 = vunpack.c.h.b16 %v3604
          %v4440 = vunpack.c.l.b16 %v3605
          %v4441 = vunpack.c.h.b16 %v3605
          %v4442 = vunpack.c.l.b16 %v3606
          %v4443 = vunpack.c.h.b16 %v3606
          %v4444 = vunpack.c.l.b16 %v3607
          %v4445 = vunpack.c.h.b16 %v3607
          %v4446 = vunpack.c.l.b16 %v3608
          %v4447 = vunpack.c.h.b16 %v3608
          %v4448 = vunpack.c.l.b16 %v3609
          %v4449 = vunpack.c.h.b16 %v3609
          %v4450 = vunpack.c.l.b16 %v3610
          %v4451 = vunpack.c.h.b16 %v3610
          %v4452 = vunpack.c.l.b16 %v3611
          %v4453 = vunpack.c.h.b16 %v3611
          %v4454 = vunpack.c.l.b16 %v3612
          %v4455 = vunpack.c.h.b16 %v3612
          %v4456 = vunpack.c.l.b16 %v3613
          %v4457 = vunpack.c.h.b16 %v3613
          %v4458 = vunpack.c.l.b16 %v3614
          %v4459 = vunpack.c.h.b16 %v3614
          %v4460 = vunpack.c.l.b16 %v3615
          %v4461 = vunpack.c.h.b16 %v3615
          %v4462 = vunpack.c.l.b16 %v3616
          %v4463 = vunpack.c.h.b16 %v3616
          %v4464 = vunpack.c.l.b16 %v3617
          %v4465 = vunpack.c.h.b16 %v3617
          %v4466 = vunpack.c.l.b16 %v3618
          %v4467 = vunpack.c.h.b16 %v3618
          %v4468 = vunpack.c.l.b16 %v3619
          %v4469 = vunpack.c.h.b16 %v3619
          %v4470 = vunpack.c.l.b16 %v3620
          %v4471 = vunpack.c.h.b16 %v3620
          %v4472 = vunpack.c.l.b16 %v3621
          %v4473 = vunpack.c.h.b16 %v3621
          %v4474 = vunpack.c.l.b16 %v3622
          %v4475 = vunpack.c.h.b16 %v3622
          %v4476 = vunpack.c.l.b16 %v3623
          %v4477 = vunpack.c.h.b16 %v3623
          %v4478 = vunpack.c.l.b16 %v3624
          %v4479 = vunpack.c.h.b16 %v3624
          %v4480 = vunpack.c.l.b16 %v3625
          %v4481 = vunpack.c.h.b16 %v3625
          %v4482 = vunpack.c.l.b16 %v3626
          %v4483 = vunpack.c.h.b16 %v3626
          %v4484 = vunpack.c.l.b16 %v3627
          %v4485 = vunpack.c.h.b16 %v3627
          %v4486 = vunpack.c.l.b16 %v3628
          %v4487 = vunpack.c.h.b16 %v3628
          %v4488 = vunpack.c.l.b16 %v3629
          %v4489 = vunpack.c.h.b16 %v3629
          %v4490 = vunpack.c.l.b16 %v3630
          %v4491 = vunpack.c.h.b16 %v3630
          %v4492 = vunpack.c.l.b16 %v3631
          %v4493 = vunpack.c.h.b16 %v3631
          %v4494 = vunpack.c.l.b16 %v3632
          %v4495 = vunpack.c.h.b16 %v3632
          %v4496 = vunpack.c.l.b16 %v3633
          %v4497 = vunpack.c.h.b16 %v3633
          %v4498 = vpack.c.b16 %v3928, %v3922
          %v4499 = vpack.c.b16 %v3929, %v3923
          %v4500 = vpack.c.b16 %v3930, %v3924
          %v4501 = vpack.c.b16 %v3931, %v3925
          %v4502 = vpack.c.b16 %v3932, %v3926
          %v4503 = vpack.c.b16 %v3933, %v3927
          %v4504 = vpack.c.b16 %v3940, %v3934
          %v4505 = vpack.c.b16 %v3941, %v3935
          %v4506 = vpack.c.b16 %v3942, %v3936
          %v4507 = vpack.c.b16 %v3943, %v3937
          %v4508 = vpack.c.b16 %v3944, %v3938
          %v4509 = vpack.c.b16 %v3945, %v3939
          %v4510 = vpack.c.b16 %v3952, %v3946
          %v4511 = vpack.c.b16 %v3953, %v3947
          %v4512 = vpack.c.b16 %v3954, %v3948
          %v4513 = vpack.c.b16 %v3955, %v3949
          %v4514 = vpack.c.b16 %v3956, %v3950
          %v4515 = vpack.c.b16 %v3957, %v3951
          %v4516 = vpack.c.b16 %v3964, %v3958
          %v4517 = vpack.c.b16 %v3965, %v3959
          %v4518 = vpack.c.b16 %v3966, %v3960
          %v4519 = vpack.c.b16 %v3967, %v3961
          %v4520 = vpack.c.b16 %v3968, %v3962
          %v4521 = vpack.c.b16 %v3969, %v3963
          %v4522 = vpack.c.b16 %v3976, %v3970
          %v4523 = vpack.c.b16 %v3977, %v3971
          %v4524 = vpack.c.b16 %v3978, %v3972
          %v4525 = vpack.c.b16 %v3979, %v3973
          %v4526 = vpack.c.b16 %v3980, %v3974
          %v4527 = vpack.c.b16 %v3981, %v3975
          %v4528 = vpack.c.b16 %v3988, %v3982
          %v4529 = vpack.c.b16 %v3989, %v3983
          %v4530 = vpack.c.b16 %v3990, %v3984
          %v4531 = vpack.c.b16 %v3991, %v3985
          %v4532 = vpack.c.b16 %v3992, %v3986
          %v4533 = vpack.c.b16 %v3993, %v3987
          %v4534 = vpack.c.b16 %v4000, %v3994
          %v4535 = vpack.c.b16 %v4001, %v3995
          %v4536 = vpack.c.b16 %v4002, %v3996
          %v4537 = vpack.c.b16 %v4003, %v3997
          %v4538 = vpack.c.b16 %v4004, %v3998
          %v4539 = vpack.c.b16 %v4005, %v3999
          %v4540 = vpack.c.b16 %v4012, %v4006
          %v4541 = vpack.c.b16 %v4013, %v4007
          %v4542 = vpack.c.b16 %v4014, %v4008
          %v4543 = vpack.c.b16 %v4015, %v4009
          %v4544 = vpack.c.b16 %v4016, %v4010
          %v4545 = vpack.c.b16 %v4017, %v4011
          %v4546 = vpack.c.b16 %v4024, %v4018
          %v4547 = vpack.c.b16 %v4025, %v4019
          %v4548 = vpack.c.b16 %v4026, %v4020
          %v4549 = vpack.c.b16 %v4027, %v4021
          %v4550 = vpack.c.b16 %v4028, %v4022
          %v4551 = vpack.c.b16 %v4029, %v4023
          %v4552 = vpack.c.b16 %v4036, %v4030
          %v4553 = vpack.c.b16 %v4037, %v4031
          %v4554 = vpack.c.b16 %v4038, %v4032
          %v4555 = vpack.c.b16 %v4039, %v4033
          %v4556 = vpack.c.b16 %v4040, %v4034
          %v4557 = vpack.c.b16 %v4041, %v4035
          %v4558 = vpack.c.b16 %v4048, %v4042
          %v4559 = vpack.c.b16 %v4049, %v4043
          %v4560 = vpack.c.b16 %v4050, %v4044
          %v4561 = vpack.c.b16 %v4051, %v4045
          %v4562 = vpack.c.b16 %v4052, %v4046
          %v4563 = vpack.c.b16 %v4053, %v4047
          %v4564 = vpack.c.b16 %v4060, %v4054
          %v4565 = vpack.c.b16 %v4061, %v4055
          %v4566 = vpack.c.b16 %v4062, %v4056
          %v4567 = vpack.c.b16 %v4063, %v4057
          %v4568 = vpack.c.b16 %v4064, %v4058
          %v4569 = vpack.c.b16 %v4065, %v4059
          %v4570 = vpack.c.b16 %v4072, %v4066
          %v4571 = vpack.c.b16 %v4073, %v4067
          %v4572 = vpack.c.b16 %v4074, %v4068
          %v4573 = vpack.c.b16 %v4075, %v4069
          %v4574 = vpack.c.b16 %v4076, %v4070
          %v4575 = vpack.c.b16 %v4077, %v4071
          %v4576 = vpack.c.b16 %v4084, %v4078
          %v4577 = vpack.c.b16 %v4085, %v4079
          %v4578 = vpack.c.b16 %v4086, %v4080
          %v4579 = vpack.c.b16 %v4087, %v4081
          %v4580 = vpack.c.b16 %v4088, %v4082
          %v4581 = vpack.c.b16 %v4089, %v4083
          %v4582 = vpack.c.b16 %v4096, %v4090
          %v4583 = vpack.c.b16 %v4097, %v4091
          %v4584 = vpack.c.b16 %v4098, %v4092
          %v4585 = vpack.c.b16 %v4099, %v4093
          %v4586 = vpack.c.b16 %v4100, %v4094
          %v4587 = vpack.c.b16 %v4101, %v4095
          %v4588 = vpack.c.b16 %v4108, %v4102
          %v4589 = vpack.c.b16 %v4109, %v4103
          %v4590 = vpack.c.b16 %v4110, %v4104
          %v4591 = vpack.c.b16 %v4111, %v4105
          %v4592 = vpack.c.b16 %v4112, %v4106
          %v4593 = vpack.c.b16 %v4113, %v4107
          %v4594 = vpack.c.b16 %v4120, %v4114
          %v4595 = vpack.c.b16 %v4121, %v4115
          %v4596 = vpack.c.b16 %v4122, %v4116
          %v4597 = vpack.c.b16 %v4123, %v4117
          %v4598 = vpack.c.b16 %v4124, %v4118
          %v4599 = vpack.c.b16 %v4125, %v4119
          %v4600 = vpack.c.b16 %v4132, %v4126
          %v4601 = vpack.c.b16 %v4133, %v4127
          %v4602 = vpack.c.b16 %v4134, %v4128
          %v4603 = vpack.c.b16 %v4135, %v4129
          %v4604 = vpack.c.b16 %v4136, %v4130
          %v4605 = vpack.c.b16 %v4137, %v4131
          %v4606 = vpack.c.b16 %v4144, %v4138
          %v4607 = vpack.c.b16 %v4145, %v4139
          %v4608 = vpack.c.b16 %v4146, %v4140
          %v4609 = vpack.c.b16 %v4147, %v4141
          %v4610 = vpack.c.b16 %v4148, %v4142
          %v4611 = vpack.c.b16 %v4149, %v4143
          %v4612 = vpack.c.b16 %v4156, %v4150
          %v4613 = vpack.c.b16 %v4157, %v4151
          %v4614 = vpack.c.b16 %v4158, %v4152
          %v4615 = vpack.c.b16 %v4159, %v4153
          %v4616 = vpack.c.b16 %v4160, %v4154
          %v4617 = vpack.c.b16 %v4161, %v4155
          %v4618 = vpack.c.b16 %v4168, %v4162
          %v4619 = vpack.c.b16 %v4169, %v4163
          %v4620 = vpack.c.b16 %v4170, %v4164
          %v4621 = vpack.c.b16 %v4171, %v4165
          %v4622 = vpack.c.b16 %v4172, %v4166
          %v4623 = vpack.c.b16 %v4173, %v4167
          %v4624 = vpack.c.b16 %v4180, %v4174
          %v4625 = vpack.c.b16 %v4181, %v4175
          %v4626 = vpack.c.b16 %v4182, %v4176
          %v4627 = vpack.c.b16 %v4183, %v4177
          %v4628 = vpack.c.b16 %v4184, %v4178
          %v4629 = vpack.c.b16 %v4185, %v4179
          %v4630 = vpack.c.b16 %v4192, %v4186
          %v4631 = vpack.c.b16 %v4193, %v4187
          %v4632 = vpack.c.b16 %v4194, %v4188
          %v4633 = vpack.c.b16 %v4195, %v4189
          %v4634 = vpack.c.b16 %v4196, %v4190
          %v4635 = vpack.c.b16 %v4197, %v4191
          %v4636 = vpack.c.b16 %v4204, %v4198
          %v4637 = vpack.c.b16 %v4205, %v4199
          %v4638 = vpack.c.b16 %v4206, %v4200
          %v4639 = vpack.c.b16 %v4207, %v4201
          %v4640 = vpack.c.b16 %v4208, %v4202
          %v4641 = vpack.c.b16 %v4209, %v4203
          %v4642 = vpack.c.b16 %v4216, %v4210
          %v4643 = vpack.c.b16 %v4217, %v4211
          %v4644 = vpack.c.b16 %v4218, %v4212
          %v4645 = vpack.c.b16 %v4219, %v4213
          %v4646 = vpack.c.b16 %v4220, %v4214
          %v4647 = vpack.c.b16 %v4221, %v4215
          %v4648 = vpack.c.b16 %v4228, %v4222
          %v4649 = vpack.c.b16 %v4229, %v4223
          %v4650 = vpack.c.b16 %v4230, %v4224
          %v4651 = vpack.c.b16 %v4231, %v4225
          %v4652 = vpack.c.b16 %v4232, %v4226
          %v4653 = vpack.c.b16 %v4233, %v4227
          %v4654 = vpack.c.b16 %v4240, %v4234
          %v4655 = vpack.c.b16 %v4241, %v4235
          %v4656 = vpack.c.b16 %v4242, %v4236
          %v4657 = vpack.c.b16 %v4243, %v4237
          %v4658 = vpack.c.b16 %v4244, %v4238
          %v4659 = vpack.c.b16 %v4245, %v4239
          %v4660 = vpack.c.b16 %v4252, %v4246
          %v4661 = vpack.c.b16 %v4253, %v4247
          %v4662 = vpack.c.b16 %v4254, %v4248
          %v4663 = vpack.c.b16 %v4255, %v4249
          %v4664 = vpack.c.b16 %v4256, %v4250
          %v4665 = vpack.c.b16 %v4257, %v4251
          %v4666 = vpack.c.b16 %v4264, %v4258
          %v4667 = vpack.c.b16 %v4265, %v4259
          %v4668 = vpack.c.b16 %v4266, %v4260
          %v4669 = vpack.c.b16 %v4267, %v4261
          %v4670 = vpack.c.b16 %v4268, %v4262
          %v4671 = vpack.c.b16 %v4269, %v4263
          %v4672 = vpack.c.b16 %v4276, %v4270
          %v4673 = vpack.c.b16 %v4277, %v4271
          %v4674 = vpack.c.b16 %v4278, %v4272
          %v4675 = vpack.c.b16 %v4279, %v4273
          %v4676 = vpack.c.b16 %v4280, %v4274
          %v4677 = vpack.c.b16 %v4281, %v4275
          %v4678 = vpack.c.b16 %v4288, %v4282
          %v4679 = vpack.c.b16 %v4289, %v4283
          %v4680 = vpack.c.b16 %v4290, %v4284
          %v4681 = vpack.c.b16 %v4291, %v4285
          %v4682 = vpack.c.b16 %v4292, %v4286
          %v4683 = vpack.c.b16 %v4293, %v4287
          %v4684 = vpack.c.b16 %v4300, %v4294
          %v4685 = vpack.c.b16 %v4301, %v4295
          %v4686 = vpack.c.b16 %v4302, %v4296
          %v4687 = vpack.c.b16 %v4303, %v4297
          %v4688 = vpack.c.b16 %v4304, %v4298
          %v4689 = vpack.c.b16 %v4305, %v4299
          %v4690 = vpack.c.b16 %v4312, %v4306
          %v4691 = vpack.c.b16 %v4313, %v4307
          %v4692 = vpack.c.b16 %v4314, %v4308
          %v4693 = vpack.c.b16 %v4315, %v4309
          %v4694 = vpack.c.b16 %v4316, %v4310
          %v4695 = vpack.c.b16 %v4317, %v4311
          %v4696 = vpack.c.b16 %v4324, %v4318
          %v4697 = vpack.c.b16 %v4325, %v4319
          %v4698 = vpack.c.b16 %v4326, %v4320
          %v4699 = vpack.c.b16 %v4327, %v4321
          %v4700 = vpack.c.b16 %v4328, %v4322
          %v4701 = vpack.c.b16 %v4329, %v4323
          %v4702 = vpack.c.b16 %v4336, %v4330
          %v4703 = vpack.c.b16 %v4337, %v4331
          %v4704 = vpack.c.b16 %v4338, %v4332
          %v4705 = vpack.c.b16 %v4339, %v4333
          %v4706 = vpack.c.b16 %v4340, %v4334
          %v4707 = vpack.c.b16 %v4341, %v4335
          %v4708 = vpack.c.b16 %v4348, %v4342
          %v4709 = vpack.c.b16 %v4349, %v4343
          %v4710 = vpack.c.b16 %v4350, %v4344
          %v4711 = vpack.c.b16 %v4351, %v4345
          %v4712 = vpack.c.b16 %v4352, %v4346
          %v4713 = vpack.c.b16 %v4353, %v4347
          %v4714 = vpack.c.b16 %v4360, %v4354
          %v4715 = vpack.c.b16 %v4361, %v4355
          %v4716 = vpack.c.b16 %v4362, %v4356
          %v4717 = vpack.c.b16 %v4363, %v4357
          %v4718 = vpack.c.b16 %v4364, %v4358
          %v4719 = vpack.c.b16 %v4365, %v4359
          %v4720 = vpack.c.b16 %v4372, %v4366
          %v4721 = vpack.c.b16 %v4373, %v4367
          %v4722 = vpack.c.b16 %v4374, %v4368
          %v4723 = vpack.c.b16 %v4375, %v4369
          %v4724 = vpack.c.b16 %v4376, %v4370
          %v4725 = vpack.c.b16 %v4377, %v4371
          %v4726 = vpack.c.b16 %v4384, %v4378
          %v4727 = vpack.c.b16 %v4385, %v4379
          %v4728 = vpack.c.b16 %v4386, %v4380
          %v4729 = vpack.c.b16 %v4387, %v4381
          %v4730 = vpack.c.b16 %v4388, %v4382
          %v4731 = vpack.c.b16 %v4389, %v4383
          %v4732 = vpack.c.b16 %v4396, %v4390
          %v4733 = vpack.c.b16 %v4397, %v4391
          %v4734 = vpack.c.b16 %v4398, %v4392
          %v4735 = vpack.c.b16 %v4399, %v4393
          %v4736 = vpack.c.b16 %v4400, %v4394
          %v4737 = vpack.c.b16 %v4401, %v4395
          %v4738 = vpack.c.b16 %v4408, %v4402
          %v4739 = vpack.c.b16 %v4409, %v4403
          %v4740 = vpack.c.b16 %v4410, %v4404
          %v4741 = vpack.c.b16 %v4411, %v4405
          %v4742 = vpack.c.b16 %v4412, %v4406
          %v4743 = vpack.c.b16 %v4413, %v4407
          %v4744 = vpack.c.b16 %v4420, %v4414
          %v4745 = vpack.c.b16 %v4421, %v4415
          %v4746 = vpack.c.b16 %v4422, %v4416
          %v4747 = vpack.c.b16 %v4423, %v4417
          %v4748 = vpack.c.b16 %v4424, %v4418
          %v4749 = vpack.c.b16 %v4425, %v4419
          %v4750 = vpack.c.b16 %v4432, %v4426
          %v4751 = vpack.c.b16 %v4433, %v4427
          %v4752 = vpack.c.b16 %v4434, %v4428
          %v4753 = vpack.c.b16 %v4435, %v4429
          %v4754 = vpack.c.b16 %v4436, %v4430
          %v4755 = vpack.c.b16 %v4437, %v4431
          %v4756 = vpack.c.b16 %v4444, %v4438
          %v4757 = vpack.c.b16 %v4445, %v4439
          %v4758 = vpack.c.b16 %v4446, %v4440
          %v4759 = vpack.c.b16 %v4447, %v4441
          %v4760 = vpack.c.b16 %v4448, %v4442
          %v4761 = vpack.c.b16 %v4449, %v4443
          %v4762 = vpack.c.b16 %v4456, %v4450
          %v4763 = vpack.c.b16 %v4457, %v4451
          %v4764 = vpack.c.b16 %v4458, %v4452
          %v4765 = vpack.c.b16 %v4459, %v4453
          %v4766 = vpack.c.b16 %v4460, %v4454
          %v4767 = vpack.c.b16 %v4461, %v4455
          %v4768 = vpack.c.b16 %v4468, %v4462
          %v4769 = vpack.c.b16 %v4469, %v4463
          %v4770 = vpack.c.b16 %v4470, %v4464
          %v4771 = vpack.c.b16 %v4471, %v4465
          %v4772 = vpack.c.b16 %v4472, %v4466
          %v4773 = vpack.c.b16 %v4473, %v4467
          %v4774 = vpack.c.b16 %v4480, %v4474
          %v4775 = vpack.c.b16 %v4481, %v4475
          %v4776 = vpack.c.b16 %v4482, %v4476
          %v4777 = vpack.c.b16 %v4483, %v4477
          %v4778 = vpack.c.b16 %v4484, %v4478
          %v4779 = vpack.c.b16 %v4485, %v4479
          %v4780 = vpack.c.b16 %v4492, %v4486
          %v4781 = vpack.c.b16 %v4493, %v4487
          %v4782 = vpack.c.b16 %v4494, %v4488
          %v4783 = vpack.c.b16 %v4495, %v4489
          %v4784 = vpack.c.b16 %v4496, %v4490
          %v4785 = vpack.c.b16 %v4497, %v4491
          %5074 = vmatpush.bf16.msra.mxu0 %v4540
          %5075 = vmatpush.bf16.msra.mxu0 %v4534
          %5076 = vmatpush.bf16.msra.mxu0 %v4528
          %5077 = vmatpush.bf16.msra.mxu0 %v4522
          %5078 = vmatpush.bf16.msra.mxu0 %v4516
          %5079 = vmatpush.bf16.msra.mxu0 %v4510
          %5080 = vmatpush.bf16.msra.mxu0 %v4504
          %5081 = vmatpush.bf16.msra.mxu0 %v4498
          %5082 = vmatmul.bf16.gmra.mxu0 %v3340
          %v5083 = vpop.f32.mrf.mxu0
          %v5084 = vadd.f32 0.0, %v5083
          %v5085 = vpop.f32.mrf.mxu0
          %5086 = vdwg.mxu0
          %5087 = vmatpush.bf16.msra.mxu0 %v4588
          %5088 = vmatpush.bf16.msra.mxu0 %v4582
          %5089 = vmatpush.bf16.msra.mxu0 %v4576
          %5090 = vmatpush.bf16.msra.mxu0 %v4570
          %5091 = vmatpush.bf16.msra.mxu0 %v4564
          %5092 = vmatpush.bf16.msra.mxu0 %v4558
          %5093 = vmatpush.bf16.msra.mxu0 %v4552
          %5094 = vmatpush.bf16.msra.mxu0 %v4546
          %5095 = vmatmul.bf16.gmra.mxu0 %v3341
          %v5096 = vpop.f32.mrf.mxu0
          %v5097 = vadd.f32 %v5084, %v5096
          %v5098 = vpop.f32.mrf.mxu0
          %5099 = vdwg.mxu0
          %5100 = vmatpush.bf16.msra.mxu0 %v4636
          %5101 = vmatpush.bf16.msra.mxu0 %v4630
          %5102 = vmatpush.bf16.msra.mxu0 %v4624
          %5103 = vmatpush.bf16.msra.mxu0 %v4618
          %5104 = vmatpush.bf16.msra.mxu0 %v4612
          %5105 = vmatpush.bf16.msra.mxu0 %v4606
          %5106 = vmatpush.bf16.msra.mxu0 %v4600
          %5107 = vmatpush.bf16.msra.mxu0 %v4594
          %5108 = vmatmul.bf16.gmra.mxu0 %v3342
          %v5109 = vpop.f32.mrf.mxu0
          %v5110 = vadd.f32 %v5097, %v5109
          %v5111 = vpop.f32.mrf.mxu0
          %5112 = vdwg.mxu0
          %5113 = vmatpush.bf16.msra.mxu0 %v4684
          %5114 = vmatpush.bf16.msra.mxu0 %v4678
          %5115 = vmatpush.bf16.msra.mxu0 %v4672
          %5116 = vmatpush.bf16.msra.mxu0 %v4666
          %5117 = vmatpush.bf16.msra.mxu0 %v4660
          %5118 = vmatpush.bf16.msra.mxu0 %v4654
          %5119 = vmatpush.bf16.msra.mxu0 %v4648
          %5120 = vmatpush.bf16.msra.mxu0 %v4642
          %5121 = vmatmul.bf16.gmra.mxu0 %v3343
          %v5122 = vpop.f32.mrf.mxu0
          %v5123 = vadd.f32 %v5110, %v5122
          %v5124 = vpop.f32.mrf.mxu0
          %5125 = vdwg.mxu0
          %5126 = vmatpush.bf16.msra.mxu0 %v4732
          %5127 = vmatpush.bf16.msra.mxu0 %v4726
          %5128 = vmatpush.bf16.msra.mxu0 %v4720
          %5129 = vmatpush.bf16.msra.mxu0 %v4714
          %5130 = vmatpush.bf16.msra.mxu0 %v4708
          %5131 = vmatpush.bf16.msra.mxu0 %v4702
          %5132 = vmatpush.bf16.msra.mxu0 %v4696
          %5133 = vmatpush.bf16.msra.mxu0 %v4690
          %5134 = vmatmul.bf16.gmra.mxu0 %v3344
          %v5135 = vpop.f32.mrf.mxu0
          %v5136 = vadd.f32 %v5123, %v5135
          %v5137 = vpop.f32.mrf.mxu0
          %5138 = vdwg.mxu0
          %5139 = vmatpush.bf16.msra.mxu0 %v4780
          %5140 = vmatpush.bf16.msra.mxu0 %v4774
          %5141 = vmatpush.bf16.msra.mxu0 %v4768
          %5142 = vmatpush.bf16.msra.mxu0 %v4762
          %5143 = vmatpush.bf16.msra.mxu0 %v4756
          %5144 = vmatpush.bf16.msra.mxu0 %v4750
          %5145 = vmatpush.bf16.msra.mxu0 %v4744
          %5146 = vmatpush.bf16.msra.mxu0 %v4738
          %5147 = vmatmul.bf16.gmra.mxu0 %v3345
          %v5148 = vpop.f32.mrf.mxu0
          %v5149 = vadd.f32 %v5136, %v5148
          %v5150 = vpop.f32.mrf.mxu0
          %5151 = vdwg.mxu0
          %5152 = vmatpush.bf16.msra.mxu0 %v4541
          %5153 = vmatpush.bf16.msra.mxu0 %v4535
          %5154 = vmatpush.bf16.msra.mxu0 %v4529
          %5155 = vmatpush.bf16.msra.mxu0 %v4523
          %5156 = vmatpush.bf16.msra.mxu0 %v4517
          %5157 = vmatpush.bf16.msra.mxu0 %v4511
          %5158 = vmatpush.bf16.msra.mxu0 %v4505
          %5159 = vmatpush.bf16.msra.mxu0 %v4499
          %5160 = vmatmul.bf16.gmra.mxu0 %v3340
          %v5161 = vpop.f32.mrf.mxu0
          %v5162 = vadd.f32 0.0, %v5161
          %v5163 = vpop.f32.mrf.mxu0
          %5164 = vdwg.mxu0
          %5165 = vmatpush.bf16.msra.mxu0 %v4589
          %5166 = vmatpush.bf16.msra.mxu0 %v4583
          %5167 = vmatpush.bf16.msra.mxu0 %v4577
          %5168 = vmatpush.bf16.msra.mxu0 %v4571
          %5169 = vmatpush.bf16.msra.mxu0 %v4565
          %5170 = vmatpush.bf16.msra.mxu0 %v4559
          %5171 = vmatpush.bf16.msra.mxu0 %v4553
          %5172 = vmatpush.bf16.msra.mxu0 %v4547
          %5173 = vmatmul.bf16.gmra.mxu0 %v3341
          %v5174 = vpop.f32.mrf.mxu0
          %v5175 = vadd.f32 %v5162, %v5174
          %v5176 = vpop.f32.mrf.mxu0
          %5177 = vdwg.mxu0
          %5178 = vmatpush.bf16.msra.mxu0 %v4637
          %5179 = vmatpush.bf16.msra.mxu0 %v4631
          %5180 = vmatpush.bf16.msra.mxu0 %v4625
          %5181 = vmatpush.bf16.msra.mxu0 %v4619
          %5182 = vmatpush.bf16.msra.mxu0 %v4613
          %5183 = vmatpush.bf16.msra.mxu0 %v4607
          %5184 = vmatpush.bf16.msra.mxu0 %v4601
          %5185 = vmatpush.bf16.msra.mxu0 %v4595
          %5186 = vmatmul.bf16.gmra.mxu0 %v3342
          %v5187 = vpop.f32.mrf.mxu0
          %v5188 = vadd.f32 %v5175, %v5187
          %v5189 = vpop.f32.mrf.mxu0
          %5190 = vdwg.mxu0
          %5191 = vmatpush.bf16.msra.mxu0 %v4685
          %5192 = vmatpush.bf16.msra.mxu0 %v4679
          %5193 = vmatpush.bf16.msra.mxu0 %v4673
          %5194 = vmatpush.bf16.msra.mxu0 %v4667
          %5195 = vmatpush.bf16.msra.mxu0 %v4661
          %5196 = vmatpush.bf16.msra.mxu0 %v4655
          %5197 = vmatpush.bf16.msra.mxu0 %v4649
          %5198 = vmatpush.bf16.msra.mxu0 %v4643
          %5199 = vmatmul.bf16.gmra.mxu0 %v3343
          %v5200 = vpop.f32.mrf.mxu0
          %v5201 = vadd.f32 %v5188, %v5200
          %v5202 = vpop.f32.mrf.mxu0
          %5203 = vdwg.mxu0
          %5204 = vmatpush.bf16.msra.mxu0 %v4733
          %5205 = vmatpush.bf16.msra.mxu0 %v4727
          %5206 = vmatpush.bf16.msra.mxu0 %v4721
          %5207 = vmatpush.bf16.msra.mxu0 %v4715
          %5208 = vmatpush.bf16.msra.mxu0 %v4709
          %5209 = vmatpush.bf16.msra.mxu0 %v4703
          %5210 = vmatpush.bf16.msra.mxu0 %v4697
          %5211 = vmatpush.bf16.msra.mxu0 %v4691
          %5212 = vmatmul.bf16.gmra.mxu0 %v3344
          %v5213 = vpop.f32.mrf.mxu0
          %v5214 = vadd.f32 %v5201, %v5213
          %v5215 = vpop.f32.mrf.mxu0
          %5216 = vdwg.mxu0
          %5217 = vmatpush.bf16.msra.mxu0 %v4781
          %5218 = vmatpush.bf16.msra.mxu0 %v4775
          %5219 = vmatpush.bf16.msra.mxu0 %v4769
          %5220 = vmatpush.bf16.msra.mxu0 %v4763
          %5221 = vmatpush.bf16.msra.mxu0 %v4757
          %5222 = vmatpush.bf16.msra.mxu0 %v4751
          %5223 = vmatpush.bf16.msra.mxu0 %v4745
          %5224 = vmatpush.bf16.msra.mxu0 %v4739
          %5225 = vmatmul.bf16.gmra.mxu0 %v3345
          %v5226 = vpop.f32.mrf.mxu0
          %v5227 = vadd.f32 %v5214, %v5226
          %v5228 = vpop.f32.mrf.mxu0
          %5229 = vdwg.mxu0
          %5230 = vmatpush.bf16.msra.mxu0 %v4542
          %5231 = vmatpush.bf16.msra.mxu0 %v4536
          %5232 = vmatpush.bf16.msra.mxu0 %v4530
          %5233 = vmatpush.bf16.msra.mxu0 %v4524
          %5234 = vmatpush.bf16.msra.mxu0 %v4518
          %5235 = vmatpush.bf16.msra.mxu0 %v4512
          %5236 = vmatpush.bf16.msra.mxu0 %v4506
          %5237 = vmatpush.bf16.msra.mxu0 %v4500
          %5238 = vmatmul.bf16.gmra.mxu0 %v3340
          %v5239 = vpop.f32.mrf.mxu0
          %v5240 = vadd.f32 0.0, %v5239
          %v5241 = vpop.f32.mrf.mxu0
          %5242 = vdwg.mxu0
          %5243 = vmatpush.bf16.msra.mxu0 %v4590
          %5244 = vmatpush.bf16.msra.mxu0 %v4584
          %5245 = vmatpush.bf16.msra.mxu0 %v4578
          %5246 = vmatpush.bf16.msra.mxu0 %v4572
          %5247 = vmatpush.bf16.msra.mxu0 %v4566
          %5248 = vmatpush.bf16.msra.mxu0 %v4560
          %5249 = vmatpush.bf16.msra.mxu0 %v4554
          %5250 = vmatpush.bf16.msra.mxu0 %v4548
          %5251 = vmatmul.bf16.gmra.mxu0 %v3341
          %v5252 = vpop.f32.mrf.mxu0
          %v5253 = vadd.f32 %v5240, %v5252
          %v5254 = vpop.f32.mrf.mxu0
          %5255 = vdwg.mxu0
          %5256 = vmatpush.bf16.msra.mxu0 %v4638
          %5257 = vmatpush.bf16.msra.mxu0 %v4632
          %5258 = vmatpush.bf16.msra.mxu0 %v4626
          %5259 = vmatpush.bf16.msra.mxu0 %v4620
          %5260 = vmatpush.bf16.msra.mxu0 %v4614
          %5261 = vmatpush.bf16.msra.mxu0 %v4608
          %5262 = vmatpush.bf16.msra.mxu0 %v4602
          %5263 = vmatpush.bf16.msra.mxu0 %v4596
          %5264 = vmatmul.bf16.gmra.mxu0 %v3342
          %v5265 = vpop.f32.mrf.mxu0
          %v5266 = vadd.f32 %v5253, %v5265
          %v5267 = vpop.f32.mrf.mxu0
          %5268 = vdwg.mxu0
          %5269 = vmatpush.bf16.msra.mxu0 %v4686
          %5270 = vmatpush.bf16.msra.mxu0 %v4680
          %5271 = vmatpush.bf16.msra.mxu0 %v4674
          %5272 = vmatpush.bf16.msra.mxu0 %v4668
          %5273 = vmatpush.bf16.msra.mxu0 %v4662
          %5274 = vmatpush.bf16.msra.mxu0 %v4656
          %5275 = vmatpush.bf16.msra.mxu0 %v4650
          %5276 = vmatpush.bf16.msra.mxu0 %v4644
          %5277 = vmatmul.bf16.gmra.mxu0 %v3343
          %v5278 = vpop.f32.mrf.mxu0
          %v5279 = vadd.f32 %v5266, %v5278
          %v5280 = vpop.f32.mrf.mxu0
          %5281 = vdwg.mxu0
          %5282 = vmatpush.bf16.msra.mxu0 %v4734
          %5283 = vmatpush.bf16.msra.mxu0 %v4728
          %5284 = vmatpush.bf16.msra.mxu0 %v4722
          %5285 = vmatpush.bf16.msra.mxu0 %v4716
          %5286 = vmatpush.bf16.msra.mxu0 %v4710
          %5287 = vmatpush.bf16.msra.mxu0 %v4704
          %5288 = vmatpush.bf16.msra.mxu0 %v4698
          %5289 = vmatpush.bf16.msra.mxu0 %v4692
          %5290 = vmatmul.bf16.gmra.mxu0 %v3344
          %v5291 = vpop.f32.mrf.mxu0
          %v5292 = vadd.f32 %v5279, %v5291
          %v5293 = vpop.f32.mrf.mxu0
          %5294 = vdwg.mxu0
          %5295 = vmatpush.bf16.msra.mxu0 %v4782
          %5296 = vmatpush.bf16.msra.mxu0 %v4776
          %5297 = vmatpush.bf16.msra.mxu0 %v4770
          %5298 = vmatpush.bf16.msra.mxu0 %v4764
          %5299 = vmatpush.bf16.msra.mxu0 %v4758
          %5300 = vmatpush.bf16.msra.mxu0 %v4752
          %5301 = vmatpush.bf16.msra.mxu0 %v4746
          %5302 = vmatpush.bf16.msra.mxu0 %v4740
          %5303 = vmatmul.bf16.gmra.mxu0 %v3345
          %v5304 = vpop.f32.mrf.mxu0
          %v5305 = vadd.f32 %v5292, %v5304
          %v5306 = vpop.f32.mrf.mxu0
          %5307 = vdwg.mxu0
          %5308 = vmatpush.bf16.msra.mxu0 %v4543
          %5309 = vmatpush.bf16.msra.mxu0 %v4537
          %5310 = vmatpush.bf16.msra.mxu0 %v4531
          %5311 = vmatpush.bf16.msra.mxu0 %v4525
          %5312 = vmatpush.bf16.msra.mxu0 %v4519
          %5313 = vmatpush.bf16.msra.mxu0 %v4513
          %5314 = vmatpush.bf16.msra.mxu0 %v4507
          %5315 = vmatpush.bf16.msra.mxu0 %v4501
          %5316 = vmatmul.bf16.gmra.mxu0 %v3340
          %v5317 = vpop.f32.mrf.mxu0
          %v5318 = vadd.f32 0.0, %v5317
          %v5319 = vpop.f32.mrf.mxu0
          %5320 = vdwg.mxu0
          %5321 = vmatpush.bf16.msra.mxu0 %v4591
          %5322 = vmatpush.bf16.msra.mxu0 %v4585
          %5323 = vmatpush.bf16.msra.mxu0 %v4579
          %5324 = vmatpush.bf16.msra.mxu0 %v4573
          %5325 = vmatpush.bf16.msra.mxu0 %v4567
          %5326 = vmatpush.bf16.msra.mxu0 %v4561
          %5327 = vmatpush.bf16.msra.mxu0 %v4555
          %5328 = vmatpush.bf16.msra.mxu0 %v4549
          %5329 = vmatmul.bf16.gmra.mxu0 %v3341
          %v5330 = vpop.f32.mrf.mxu0
          %v5331 = vadd.f32 %v5318, %v5330
          %v5332 = vpop.f32.mrf.mxu0
          %5333 = vdwg.mxu0
          %5334 = vmatpush.bf16.msra.mxu0 %v4639
          %5335 = vmatpush.bf16.msra.mxu0 %v4633
          %5336 = vmatpush.bf16.msra.mxu0 %v4627
          %5337 = vmatpush.bf16.msra.mxu0 %v4621
          %5338 = vmatpush.bf16.msra.mxu0 %v4615
          %5339 = vmatpush.bf16.msra.mxu0 %v4609
          %5340 = vmatpush.bf16.msra.mxu0 %v4603
          %5341 = vmatpush.bf16.msra.mxu0 %v4597
          %5342 = vmatmul.bf16.gmra.mxu0 %v3342
          %v5343 = vpop.f32.mrf.mxu0
          %v5344 = vadd.f32 %v5331, %v5343
          %v5345 = vpop.f32.mrf.mxu0
          %5346 = vdwg.mxu0
          %5347 = vmatpush.bf16.msra.mxu0 %v4687
          %5348 = vmatpush.bf16.msra.mxu0 %v4681
          %5349 = vmatpush.bf16.msra.mxu0 %v4675
          %5350 = vmatpush.bf16.msra.mxu0 %v4669
          %5351 = vmatpush.bf16.msra.mxu0 %v4663
          %5352 = vmatpush.bf16.msra.mxu0 %v4657
          %5353 = vmatpush.bf16.msra.mxu0 %v4651
          %5354 = vmatpush.bf16.msra.mxu0 %v4645
          %5355 = vmatmul.bf16.gmra.mxu0 %v3343
          %v5356 = vpop.f32.mrf.mxu0
          %v5357 = vadd.f32 %v5344, %v5356
          %v5358 = vpop.f32.mrf.mxu0
          %5359 = vdwg.mxu0
          %5360 = vmatpush.bf16.msra.mxu0 %v4735
          %5361 = vmatpush.bf16.msra.mxu0 %v4729
          %5362 = vmatpush.bf16.msra.mxu0 %v4723
          %5363 = vmatpush.bf16.msra.mxu0 %v4717
          %5364 = vmatpush.bf16.msra.mxu0 %v4711
          %5365 = vmatpush.bf16.msra.mxu0 %v4705
          %5366 = vmatpush.bf16.msra.mxu0 %v4699
          %5367 = vmatpush.bf16.msra.mxu0 %v4693
          %5368 = vmatmul.bf16.gmra.mxu0 %v3344
          %v5369 = vpop.f32.mrf.mxu0
          %v5370 = vadd.f32 %v5357, %v5369
          %v5371 = vpop.f32.mrf.mxu0
          %5372 = vdwg.mxu0
          %5373 = vmatpush.bf16.msra.mxu0 %v4783
          %5374 = vmatpush.bf16.msra.mxu0 %v4777
          %5375 = vmatpush.bf16.msra.mxu0 %v4771
          %5376 = vmatpush.bf16.msra.mxu0 %v4765
          %5377 = vmatpush.bf16.msra.mxu0 %v4759
          %5378 = vmatpush.bf16.msra.mxu0 %v4753
          %5379 = vmatpush.bf16.msra.mxu0 %v4747
          %5380 = vmatpush.bf16.msra.mxu0 %v4741
          %5381 = vmatmul.bf16.gmra.mxu0 %v3345
          %v5382 = vpop.f32.mrf.mxu0
          %v5383 = vadd.f32 %v5370, %v5382
          %v5384 = vpop.f32.mrf.mxu0
          %5385 = vdwg.mxu0
          %5386 = vmatpush.bf16.msra.mxu0 %v4544
          %5387 = vmatpush.bf16.msra.mxu0 %v4538
          %5388 = vmatpush.bf16.msra.mxu0 %v4532
          %5389 = vmatpush.bf16.msra.mxu0 %v4526
          %5390 = vmatpush.bf16.msra.mxu0 %v4520
          %5391 = vmatpush.bf16.msra.mxu0 %v4514
          %5392 = vmatpush.bf16.msra.mxu0 %v4508
          %5393 = vmatpush.bf16.msra.mxu0 %v4502
          %5394 = vmatmul.bf16.gmra.mxu0 %v3340
          %v5395 = vpop.f32.mrf.mxu0
          %v5396 = vadd.f32 0.0, %v5395
          %v5397 = vpop.f32.mrf.mxu0
          %5398 = vdwg.mxu0
          %5399 = vmatpush.bf16.msra.mxu0 %v4592
          %5400 = vmatpush.bf16.msra.mxu0 %v4586
          %5401 = vmatpush.bf16.msra.mxu0 %v4580
          %5402 = vmatpush.bf16.msra.mxu0 %v4574
          %5403 = vmatpush.bf16.msra.mxu0 %v4568
          %5404 = vmatpush.bf16.msra.mxu0 %v4562
          %5405 = vmatpush.bf16.msra.mxu0 %v4556
          %5406 = vmatpush.bf16.msra.mxu0 %v4550
          %5407 = vmatmul.bf16.gmra.mxu0 %v3341
          %v5408 = vpop.f32.mrf.mxu0
          %v5409 = vadd.f32 %v5396, %v5408
          %v5410 = vpop.f32.mrf.mxu0
          %5411 = vdwg.mxu0
          %5412 = vmatpush.bf16.msra.mxu0 %v4640
          %5413 = vmatpush.bf16.msra.mxu0 %v4634
          %5414 = vmatpush.bf16.msra.mxu0 %v4628
          %5415 = vmatpush.bf16.msra.mxu0 %v4622
          %5416 = vmatpush.bf16.msra.mxu0 %v4616
          %5417 = vmatpush.bf16.msra.mxu0 %v4610
          %5418 = vmatpush.bf16.msra.mxu0 %v4604
          %5419 = vmatpush.bf16.msra.mxu0 %v4598
          %5420 = vmatmul.bf16.gmra.mxu0 %v3342
          %v5421 = vpop.f32.mrf.mxu0
          %v5422 = vadd.f32 %v5409, %v5421
          %v5423 = vpop.f32.mrf.mxu0
          %5424 = vdwg.mxu0
          %5425 = vmatpush.bf16.msra.mxu0 %v4688
          %5426 = vmatpush.bf16.msra.mxu0 %v4682
          %5427 = vmatpush.bf16.msra.mxu0 %v4676
          %5428 = vmatpush.bf16.msra.mxu0 %v4670
          %5429 = vmatpush.bf16.msra.mxu0 %v4664
          %5430 = vmatpush.bf16.msra.mxu0 %v4658
          %5431 = vmatpush.bf16.msra.mxu0 %v4652
          %5432 = vmatpush.bf16.msra.mxu0 %v4646
          %5433 = vmatmul.bf16.gmra.mxu0 %v3343
          %v5434 = vpop.f32.mrf.mxu0
          %v5435 = vadd.f32 %v5422, %v5434
          %v5436 = vpop.f32.mrf.mxu0
          %5437 = vdwg.mxu0
          %5438 = vmatpush.bf16.msra.mxu0 %v4736
          %5439 = vmatpush.bf16.msra.mxu0 %v4730
          %5440 = vmatpush.bf16.msra.mxu0 %v4724
          %5441 = vmatpush.bf16.msra.mxu0 %v4718
          %5442 = vmatpush.bf16.msra.mxu0 %v4712
          %5443 = vmatpush.bf16.msra.mxu0 %v4706
          %5444 = vmatpush.bf16.msra.mxu0 %v4700
          %5445 = vmatpush.bf16.msra.mxu0 %v4694
          %5446 = vmatmul.bf16.gmra.mxu0 %v3344
          %v5447 = vpop.f32.mrf.mxu0
          %v5448 = vadd.f32 %v5435, %v5447
          %v5449 = vpop.f32.mrf.mxu0
          %5450 = vdwg.mxu0
          %5451 = vmatpush.bf16.msra.mxu0 %v4784
          %5452 = vmatpush.bf16.msra.mxu0 %v4778
          %5453 = vmatpush.bf16.msra.mxu0 %v4772
          %5454 = vmatpush.bf16.msra.mxu0 %v4766
          %5455 = vmatpush.bf16.msra.mxu0 %v4760
          %5456 = vmatpush.bf16.msra.mxu0 %v4754
          %5457 = vmatpush.bf16.msra.mxu0 %v4748
          %5458 = vmatpush.bf16.msra.mxu0 %v4742
          %5459 = vmatmul.bf16.gmra.mxu0 %v3345
          %v5460 = vpop.f32.mrf.mxu0
          %v5461 = vadd.f32 %v5448, %v5460
          %v5462 = vpop.f32.mrf.mxu0
          %5463 = vdwg.mxu0
          %5464 = vmatpush.bf16.msra.mxu0 %v4545
          %5465 = vmatpush.bf16.msra.mxu0 %v4539
          %5466 = vmatpush.bf16.msra.mxu0 %v4533
          %5467 = vmatpush.bf16.msra.mxu0 %v4527
          %5468 = vmatpush.bf16.msra.mxu0 %v4521
          %5469 = vmatpush.bf16.msra.mxu0 %v4515
          %5470 = vmatpush.bf16.msra.mxu0 %v4509
          %5471 = vmatpush.bf16.msra.mxu0 %v4503
          %5472 = vmatmul.bf16.gmra.mxu0 %v3340
          %v5473 = vpop.f32.mrf.mxu0
          %v5474 = vadd.f32 0.0, %v5473
          %v5475 = vpop.f32.mrf.mxu0
          %5476 = vdwg.mxu0
          %5477 = vmatpush.bf16.msra.mxu0 %v4593
          %5478 = vmatpush.bf16.msra.mxu0 %v4587
          %5479 = vmatpush.bf16.msra.mxu0 %v4581
          %5480 = vmatpush.bf16.msra.mxu0 %v4575
          %5481 = vmatpush.bf16.msra.mxu0 %v4569
          %5482 = vmatpush.bf16.msra.mxu0 %v4563
          %5483 = vmatpush.bf16.msra.mxu0 %v4557
          %5484 = vmatpush.bf16.msra.mxu0 %v4551
          %5485 = vmatmul.bf16.gmra.mxu0 %v3341
          %v5486 = vpop.f32.mrf.mxu0
          %v5487 = vadd.f32 %v5474, %v5486
          %v5488 = vpop.f32.mrf.mxu0
          %5489 = vdwg.mxu0
          %5490 = vmatpush.bf16.msra.mxu0 %v4641
          %5491 = vmatpush.bf16.msra.mxu0 %v4635
          %5492 = vmatpush.bf16.msra.mxu0 %v4629
          %5493 = vmatpush.bf16.msra.mxu0 %v4623
          %5494 = vmatpush.bf16.msra.mxu0 %v4617
          %5495 = vmatpush.bf16.msra.mxu0 %v4611
          %5496 = vmatpush.bf16.msra.mxu0 %v4605
          %5497 = vmatpush.bf16.msra.mxu0 %v4599
          %5498 = vmatmul.bf16.gmra.mxu0 %v3342
          %v5499 = vpop.f32.mrf.mxu0
          %v5500 = vadd.f32 %v5487, %v5499
          %v5501 = vpop.f32.mrf.mxu0
          %5502 = vdwg.mxu0
          %5503 = vmatpush.bf16.msra.mxu0 %v4689
          %5504 = vmatpush.bf16.msra.mxu0 %v4683
          %5505 = vmatpush.bf16.msra.mxu0 %v4677
          %5506 = vmatpush.bf16.msra.mxu0 %v4671
          %5507 = vmatpush.bf16.msra.mxu0 %v4665
          %5508 = vmatpush.bf16.msra.mxu0 %v4659
          %5509 = vmatpush.bf16.msra.mxu0 %v4653
          %5510 = vmatpush.bf16.msra.mxu0 %v4647
          %5511 = vmatmul.bf16.gmra.mxu0 %v3343
          %v5512 = vpop.f32.mrf.mxu0
          %v5513 = vadd.f32 %v5500, %v5512
          %v5514 = vpop.f32.mrf.mxu0
          %5515 = vdwg.mxu0
          %5516 = vmatpush.bf16.msra.mxu0 %v4737
          %5517 = vmatpush.bf16.msra.mxu0 %v4731
          %5518 = vmatpush.bf16.msra.mxu0 %v4725
          %5519 = vmatpush.bf16.msra.mxu0 %v4719
          %5520 = vmatpush.bf16.msra.mxu0 %v4713
          %5521 = vmatpush.bf16.msra.mxu0 %v4707
          %5522 = vmatpush.bf16.msra.mxu0 %v4701
          %5523 = vmatpush.bf16.msra.mxu0 %v4695
          %5524 = vmatmul.bf16.gmra.mxu0 %v3344
          %v5525 = vpop.f32.mrf.mxu0
          %v5526 = vadd.f32 %v5513, %v5525
          %v5527 = vpop.f32.mrf.mxu0
          %5528 = vdwg.mxu0
          %5529 = vmatpush.bf16.msra.mxu0 %v4785
          %5530 = vmatpush.bf16.msra.mxu0 %v4779
          %5531 = vmatpush.bf16.msra.mxu0 %v4773
          %5532 = vmatpush.bf16.msra.mxu0 %v4767
          %5533 = vmatpush.bf16.msra.mxu0 %v4761
          %5534 = vmatpush.bf16.msra.mxu0 %v4755
          %5535 = vmatpush.bf16.msra.mxu0 %v4749
          %5536 = vmatpush.bf16.msra.mxu0 %v4743
          %5537 = vmatmul.bf16.gmra.mxu0 %v3345
          %v5538 = vpop.f32.mrf.mxu0
          %v5539 = vadd.f32 %v5526, %v5538
          %v5540 = vpop.f32.mrf.mxu0
          %5541 = vdwg.mxu0
          %v5542 = vld [vmem:[#allocation3] sm:$0xff]
          %v5543 = vld [vmem:[#allocation3 + $0x8] sm:$0xff]
          %v5544 = vld [vmem:[#allocation3 + $0x10] sm:$0xff]
          %v5545 = vld [vmem:[#allocation3 + $0x18] sm:$0xff]
          %v5546 = vld [vmem:[#allocation3 + $0x20] sm:$0xff]
          %v5547 = vld [vmem:[#allocation3 + $0x28] sm:$0xff]
          %v5548 = vld [vmem:[#allocation3 + $0x30] sm:$0xff]
          %v5549 = vld [vmem:[#allocation3 + $0x38] sm:$0xff]
          %v5550 = vld [vmem:[#allocation3 + $0x40] sm:$0xff]
          %v5551 = vld [vmem:[#allocation3 + $0x48] sm:$0xff]
          %v5552 = vld [vmem:[#allocation3 + $0x50] sm:$0xff]
          %v5553 = vld [vmem:[#allocation3 + $0x58] sm:$0xff]
          %v5554 = vld [vmem:[#allocation3 + $0x60] sm:$0xff]
          %v5555 = vld [vmem:[#allocation3 + $0x68] sm:$0xff]
          %v5556 = vld [vmem:[#allocation3 + $0x70] sm:$0xff]
          %v5557 = vld [vmem:[#allocation3 + $0x78] sm:$0xff]
          %v5558 = vld [vmem:[#allocation3 + $0x80] sm:$0xff]
          %v5559 = vld [vmem:[#allocation3 + $0x88] sm:$0xff]
          %v5560 = vld [vmem:[#allocation3 + $0x90] sm:$0xff]
          %v5561 = vld [vmem:[#allocation3 + $0x98] sm:$0xff]
          %v5562 = vld [vmem:[#allocation3 + $0xa0] sm:$0xff]
          %v5563 = vld [vmem:[#allocation3 + $0xa8] sm:$0xff]
          %v5564 = vld [vmem:[#allocation3 + $0xb0] sm:$0xff]
          %v5565 = vld [vmem:[#allocation3 + $0xb8] sm:$0xff]
          %v5566 = vld [vmem:[#allocation3 + $0xc0] sm:$0xff]
          %v5567 = vld [vmem:[#allocation3 + $0xc8] sm:$0xff]
          %v5568 = vld [vmem:[#allocation3 + $0xd0] sm:$0xff]
          %v5569 = vld [vmem:[#allocation3 + $0xd8] sm:$0xff]
          %v5570 = vld [vmem:[#allocation3 + $0xe0] sm:$0xff]
          %v5571 = vld [vmem:[#allocation3 + $0xe8] sm:$0xff]
          %v5572 = vld [vmem:[#allocation3 + $0xf0] sm:$0xff]
          %v5573 = vld [vmem:[#allocation3 + $0xf8] sm:$0xff]
          %v5574 = vld [vmem:[#allocation3 + $0x100] sm:$0xff]
          %v5575 = vld [vmem:[#allocation3 + $0x108] sm:$0xff]
          %v5576 = vld [vmem:[#allocation3 + $0x110] sm:$0xff]
          %v5577 = vld [vmem:[#allocation3 + $0x118] sm:$0xff]
          %v5578 = vld [vmem:[#allocation3 + $0x120] sm:$0xff]
          %v5579 = vld [vmem:[#allocation3 + $0x128] sm:$0xff]
          %v5580 = vld [vmem:[#allocation3 + $0x130] sm:$0xff]
          %v5581 = vld [vmem:[#allocation3 + $0x138] sm:$0xff]
          %v5582 = vld [vmem:[#allocation3 + $0x140] sm:$0xff]
          %v5583 = vld [vmem:[#allocation3 + $0x148] sm:$0xff]
          %v5584 = vld [vmem:[#allocation3 + $0x150] sm:$0xff]
          %v5585 = vld [vmem:[#allocation3 + $0x158] sm:$0xff]
          %v5586 = vld [vmem:[#allocation3 + $0x160] sm:$0xff]
          %v5587 = vld [vmem:[#allocation3 + $0x168] sm:$0xff]
          %v5588 = vld [vmem:[#allocation3 + $0x170] sm:$0xff]
          %v5589 = vld [vmem:[#allocation3 + $0x178] sm:$0xff]
          %v5590 = vld [vmem:[#allocation3 + $0x180] sm:$0xff]
          %v5591 = vld [vmem:[#allocation3 + $0x188] sm:$0xff]
          %v5592 = vld [vmem:[#allocation3 + $0x190] sm:$0xff]
          %v5593 = vld [vmem:[#allocation3 + $0x198] sm:$0xff]
          %v5594 = vld [vmem:[#allocation3 + $0x1a0] sm:$0xff]
          %v5595 = vld [vmem:[#allocation3 + $0x1a8] sm:$0xff]
          %v5596 = vld [vmem:[#allocation3 + $0x1b0] sm:$0xff]
          %v5597 = vld [vmem:[#allocation3 + $0x1b8] sm:$0xff]
          %v5598 = vld [vmem:[#allocation3 + $0x1c0] sm:$0xff]
          %v5599 = vld [vmem:[#allocation3 + $0x1c8] sm:$0xff]
          %v5600 = vld [vmem:[#allocation3 + $0x1d0] sm:$0xff]
          %v5601 = vld [vmem:[#allocation3 + $0x1d8] sm:$0xff]
          %v5602 = vld [vmem:[#allocation3 + $0x1e0] sm:$0xff]
          %v5603 = vld [vmem:[#allocation3 + $0x1e8] sm:$0xff]
          %v5604 = vld [vmem:[#allocation3 + $0x1f0] sm:$0xff]
          %v5605 = vld [vmem:[#allocation3 + $0x1f8] sm:$0xff]
          %v5606 = vld [vmem:[#allocation3 + $0x200] sm:$0xff]
          %v5607 = vld [vmem:[#allocation3 + $0x208] sm:$0xff]
          %v5608 = vld [vmem:[#allocation3 + $0x210] sm:$0xff]
          %v5609 = vld [vmem:[#allocation3 + $0x218] sm:$0xff]
          %v5610 = vld [vmem:[#allocation3 + $0x220] sm:$0xff]
          %v5611 = vld [vmem:[#allocation3 + $0x228] sm:$0xff]
          %v5612 = vld [vmem:[#allocation3 + $0x230] sm:$0xff]
          %v5613 = vld [vmem:[#allocation3 + $0x238] sm:$0xff]
          %v5614 = vld [vmem:[#allocation3 + $0x240] sm:$0xff]
          %v5615 = vld [vmem:[#allocation3 + $0x248] sm:$0xff]
          %v5616 = vld [vmem:[#allocation3 + $0x250] sm:$0xff]
          %v5617 = vld [vmem:[#allocation3 + $0x258] sm:$0xff]
          %v5618 = vld [vmem:[#allocation3 + $0x260] sm:$0xff]
          %v5619 = vld [vmem:[#allocation3 + $0x268] sm:$0xff]
          %v5620 = vld [vmem:[#allocation3 + $0x270] sm:$0xff]
          %v5621 = vld [vmem:[#allocation3 + $0x278] sm:$0xff]
          %v5622 = vld [vmem:[#allocation3 + $0x280] sm:$0xff]
          %v5623 = vld [vmem:[#allocation3 + $0x288] sm:$0xff]
          %v5624 = vld [vmem:[#allocation3 + $0x290] sm:$0xff]
          %v5625 = vld [vmem:[#allocation3 + $0x298] sm:$0xff]
          %v5626 = vld [vmem:[#allocation3 + $0x2a0] sm:$0xff]
          %v5627 = vld [vmem:[#allocation3 + $0x2a8] sm:$0xff]
          %v5628 = vld [vmem:[#allocation3 + $0x2b0] sm:$0xff]
          %v5629 = vld [vmem:[#allocation3 + $0x2b8] sm:$0xff]
          %v5630 = vld [vmem:[#allocation3 + $0x2c0] sm:$0xff]
          %v5631 = vld [vmem:[#allocation3 + $0x2c8] sm:$0xff]
          %v5632 = vld [vmem:[#allocation3 + $0x2d0] sm:$0xff]
          %v5633 = vld [vmem:[#allocation3 + $0x2d8] sm:$0xff]
          %v5634 = vld [vmem:[#allocation3 + $0x2e0] sm:$0xff]
          %v5635 = vld [vmem:[#allocation3 + $0x2e8] sm:$0xff]
          %v5636 = vld [vmem:[#allocation3 + $0x2f0] sm:$0xff]
          %v5637 = vld [vmem:[#allocation3 + $0x2f8] sm:$0xff]
          %5638 = vmatpush.msra.mxu0 %v5557
          %5639 = vmatpush.msra.mxu0 %v5556
          %5640 = vmatpush.msra.mxu0 %v5555
          %5641 = vmatpush.msra.mxu0 %v5554
          %5642 = vmatpush.msra.mxu0 %v5553
          %5643 = vmatpush.msra.mxu0 %v5552
          %5644 = vmatpush.msra.mxu0 %v5551
          %5645 = vmatpush.msra.mxu0 %v5550
          %5646 = vmatpush.msra.mxu0 %v5549
          %5647 = vmatpush.msra.mxu0 %v5548
          %5648 = vmatpush.msra.mxu0 %v5547
          %5649 = vmatpush.msra.mxu0 %v5546
          %5650 = vmatpush.msra.mxu0 %v5545
          %5651 = vmatpush.msra.mxu0 %v5544
          %5652 = vmatpush.msra.mxu0 %v5543
          %5653 = vmatpush.msra.mxu0 %v5542
          %5654 = vmatmul.f32.gmra.mxu0 %v5149
          %v5655 = vpop.f32.mrf.mxu0
          %v5656 = vadd.f32 0.0, %v5655
          %5657 = vdwg.mxu0
          %5658 = vmatpush.msra.mxu0 %v5573
          %5659 = vmatpush.msra.mxu0 %v5572
          %5660 = vmatpush.msra.mxu0 %v5571
          %5661 = vmatpush.msra.mxu0 %v5570
          %5662 = vmatpush.msra.mxu0 %v5569
          %5663 = vmatpush.msra.mxu0 %v5568
          %5664 = vmatpush.msra.mxu0 %v5567
          %5665 = vmatpush.msra.mxu0 %v5566
          %5666 = vmatpush.msra.mxu0 %v5565
          %5667 = vmatpush.msra.mxu0 %v5564
          %5668 = vmatpush.msra.mxu0 %v5563
          %5669 = vmatpush.msra.mxu0 %v5562
          %5670 = vmatpush.msra.mxu0 %v5561
          %5671 = vmatpush.msra.mxu0 %v5560
          %5672 = vmatpush.msra.mxu0 %v5559
          %5673 = vmatpush.msra.mxu0 %v5558
          %5674 = vmatmul.f32.gmra.mxu0 %v5227
          %v5675 = vpop.f32.mrf.mxu0
          %v5676 = vadd.f32 %v5656, %v5675
          %5677 = vdwg.mxu0
          %5678 = vmatpush.msra.mxu0 %v5589
          %5679 = vmatpush.msra.mxu0 %v5588
          %5680 = vmatpush.msra.mxu0 %v5587
          %5681 = vmatpush.msra.mxu0 %v5586
          %5682 = vmatpush.msra.mxu0 %v5585
          %5683 = vmatpush.msra.mxu0 %v5584
          %5684 = vmatpush.msra.mxu0 %v5583
          %5685 = vmatpush.msra.mxu0 %v5582
          %5686 = vmatpush.msra.mxu0 %v5581
          %5687 = vmatpush.msra.mxu0 %v5580
          %5688 = vmatpush.msra.mxu0 %v5579
          %5689 = vmatpush.msra.mxu0 %v5578
          %5690 = vmatpush.msra.mxu0 %v5577
          %5691 = vmatpush.msra.mxu0 %v5576
          %5692 = vmatpush.msra.mxu0 %v5575
          %5693 = vmatpush.msra.mxu0 %v5574
          %5694 = vmatmul.f32.gmra.mxu0 %v5305
          %v5695 = vpop.f32.mrf.mxu0
          %v5696 = vadd.f32 %v5676, %v5695
          %5697 = vdwg.mxu0
          %5698 = vmatpush.msra.mxu0 %v5605
          %5699 = vmatpush.msra.mxu0 %v5604
          %5700 = vmatpush.msra.mxu0 %v5603
          %5701 = vmatpush.msra.mxu0 %v5602
          %5702 = vmatpush.msra.mxu0 %v5601
          %5703 = vmatpush.msra.mxu0 %v5600
          %5704 = vmatpush.msra.mxu0 %v5599
          %5705 = vmatpush.msra.mxu0 %v5598
          %5706 = vmatpush.msra.mxu0 %v5597
          %5707 = vmatpush.msra.mxu0 %v5596
          %5708 = vmatpush.msra.mxu0 %v5595
          %5709 = vmatpush.msra.mxu0 %v5594
          %5710 = vmatpush.msra.mxu0 %v5593
          %5711 = vmatpush.msra.mxu0 %v5592
          %5712 = vmatpush.msra.mxu0 %v5591
          %5713 = vmatpush.msra.mxu0 %v5590
          %5714 = vmatmul.f32.gmra.mxu0 %v5383
          %v5715 = vpop.f32.mrf.mxu0
          %v5716 = vadd.f32 %v5696, %v5715
          %5717 = vdwg.mxu0
          %5718 = vmatpush.msra.mxu0 %v5621
          %5719 = vmatpush.msra.mxu0 %v5620
          %5720 = vmatpush.msra.mxu0 %v5619
          %5721 = vmatpush.msra.mxu0 %v5618
          %5722 = vmatpush.msra.mxu0 %v5617
          %5723 = vmatpush.msra.mxu0 %v5616
          %5724 = vmatpush.msra.mxu0 %v5615
          %5725 = vmatpush.msra.mxu0 %v5614
          %5726 = vmatpush.msra.mxu0 %v5613
          %5727 = vmatpush.msra.mxu0 %v5612
          %5728 = vmatpush.msra.mxu0 %v5611
          %5729 = vmatpush.msra.mxu0 %v5610
          %5730 = vmatpush.msra.mxu0 %v5609
          %5731 = vmatpush.msra.mxu0 %v5608
          %5732 = vmatpush.msra.mxu0 %v5607
          %5733 = vmatpush.msra.mxu0 %v5606
          %5734 = vmatmul.f32.gmra.mxu0 %v5461
          %v5735 = vpop.f32.mrf.mxu0
          %v5736 = vadd.f32 %v5716, %v5735
          %5737 = vdwg.mxu0
          %5738 = vmatpush.msra.mxu0 %v5637
          %5739 = vmatpush.msra.mxu0 %v5636
          %5740 = vmatpush.msra.mxu0 %v5635
          %5741 = vmatpush.msra.mxu0 %v5634
          %5742 = vmatpush.msra.mxu0 %v5633
          %5743 = vmatpush.msra.mxu0 %v5632
          %5744 = vmatpush.msra.mxu0 %v5631
          %5745 = vmatpush.msra.mxu0 %v5630
          %5746 = vmatpush.msra.mxu0 %v5629
          %5747 = vmatpush.msra.mxu0 %v5628
          %5748 = vmatpush.msra.mxu0 %v5627
          %5749 = vmatpush.msra.mxu0 %v5626
          %5750 = vmatpush.msra.mxu0 %v5625
          %5751 = vmatpush.msra.mxu0 %v5624
          %5752 = vmatpush.msra.mxu0 %v5623
          %5753 = vmatpush.msra.mxu0 %v5622
          %5754 = vmatmul.f32.gmra.mxu0 %v5539
          %v5755 = vpop.f32.mrf.mxu0
          %v5756 = vadd.f32 %v5736, %v5755
          %5757 = vdwg.mxu0
          %v5758 = vld [vmem:[#allocation12] sm:$0xff]
          %vm5759 = vcmask 64512
          %v5761 = vsel %vm5759, %v5756, 0
          %v5764 = vsel %vm5759, %v5758, 0
          %5766 = vmatpush.xpose.msra.mxu0 0.0
          %5767 = vmatpush.xpose.msra.mxu0 0.0
          %5768 = vmatpush.xpose.msra.mxu0 0.0
          %5769 = vmatpush.xpose.msra.mxu0 0.0
          %5770 = vmatpush.xpose.msra.mxu0 0.0
          %5771 = vmatpush.xpose.msra.mxu0 0.0
          %5772 = vmatpush.xpose.msra.mxu0 0.0
          %5773 = vmatpush.xpose.msra.mxu0 0.0
          %5774 = vmatpush.xpose.msra.mxu0 0.0
          %5775 = vmatpush.xpose.msra.mxu0 0.0
          %5776 = vmatpush.xpose.msra.mxu0 0.0
          %5777 = vmatpush.xpose.msra.mxu0 0.0
          %5778 = vmatpush.xpose.msra.mxu0 0.0
          %5779 = vmatpush.xpose.msra.mxu0 0.0
          %5780 = vmatpush.xpose.msra.mxu0 0.0
          %5781 = vmatpush.xpose.msra.mxu0 %v5764
          %5782 = vmatmul.f32.gmra.mxu0 %v5761
          %v5783 = vpop.f32.mrf.mxu0
          %v5784 = vadd.f32 0.0, %v5783
          %5785 = vdwg.mxu0
          %vm5786 = vcmask 58368
          %5787 = vst.msk [vmem:[#allocation15] sm:$0x3] %vm5786, %v5784
        $region76: #{tpu_custom_call.1} parent=43 // pred_fallthru
          _
        // Predicated region
        $region77: #{tpu_custom_call.1} parent=43 // pred_check
          %p5788 = pneg %p168
        $region78: #{tpu_custom_call.1} parent=43 // pred_check_branch
          %5790 = sbr.rel (%p5788) target = $region80
        $region79: #{tpu_custom_call.1} parent=43 // pred_region
          %5792 = vsyncadd [#allocation6], 0
          %s5794 = sshll.u32 [#allocation15], 4
          %s5795 = int_to_ptr.vmem [resolvable:$true] %s5794
          %s5796 = sshll.u32 %s6, 4
          %s5797 = int_to_ptr.hbm [resolvable:$true] %s5796
          %5799 = dma.vmem_to_hbm [thread:$0]  %s5795, 32, %s5797, [#allocation6]
        $region80: #{tpu_custom_call.1} parent=43 // pred_fallthru
          _
        // Predicated region
        $region81: #{tpu_custom_call.1} parent=43 // pred_check
          %p5800 = pneg %p168
        $region82: #{tpu_custom_call.1} parent=43 // pred_check_branch
          %5802 = sbr.rel (%p5800) target = $region84
        $region83: #{tpu_custom_call.1} parent=43 // pred_region
          %5804 = dma.done [#allocation6], 32
        $region84: #{tpu_custom_call.1} parent=43 // pred_fallthru
          _
      $region44: #{tpu_custom_call.1} parent=5 // pred_fallthru
        _
      %p5805 = scmp.le.s32.totalorder 2, %s19
      // Predicated region
      $region85: #{tpu_custom_call.1} parent=5 // pred_check
        %p5806 = pneg %p5805
      $region86: #{tpu_custom_call.1} parent=5 // pred_check_branch
        %5808 = sbr.rel (%p5806) target = $region88
      $region87: #{tpu_custom_call.1} parent=5 // pred_region
        %s5809 = ssub.s32 %s19, 2
      $region88: #{tpu_custom_call.1} parent=5 // pred_fallthru
        _
    $region6: #{tpu_custom_call.1} parent=1 // loop_footer
      %s23 = sadd.s32 1, %s19
    $region7: #{tpu_custom_call.1} parent=1 // loop_footer_branch
      %18 = sbr.rel target = $region3
    $region8: #{tpu_custom_call.1} parent=1 // loop_exit
      _
    %5810 = vsyncpa [#allocation5], 1
    %s5811 = scalar_lea.sflag [#allocation5], 1
    %5812 = vsyncpa %s5811, 1
    %5813 = vsyncpa [#allocation8], 1
    %5814 = vsyncpa [#allocation11], 1
    %5815 = vsyncpa [#allocation14], 1
    %s5816 = scalar_lea.sflag [#allocation14], 1
    %5817 = vsyncpa %s5816, 1
    %5818 = vsyncpa [#allocation6], 1
    %s5819 = scalar_lea.sflag [#allocation6], 1
    %5820 = vsyncpa %s5819, 1

</llo_original>
